<compile_context>
chip_gen: v7x
topology: tpu7x:2x2x1
jax: 0.10.0
libtpu: 0.0.40
codegen_flags: <defaults>
</compile_context>

<pallas_src>
import functools

import jax
import jax.numpy as jnp
import numpy as np
from jax.experimental import pallas as pl
from jax.experimental.pallas import tpu as pltpu


_VMEM_LIMIT = 48 * 1024 * 1024          # <= v7x's 64 MiB/TC physical VMEM
_TILE_VMEM_BUDGET = 8 * 1024 * 1024     # rough per-tile working-set target


def _round_up(x, m):
    return (x + m - 1) // m * m


def _largest_divisor_at_most(n, cap):
    cap = int(max(1, min(n, cap)))
    for d in range(cap, 0, -1):
        if n % d == 0:
            return d
    return 1


# -----------------------------------------------------------------------------
# Conv 3x3, stride 1, pad 1, + bias + ReLU  (Pallas kernel)
#
# Each grid step owns TH output rows.  The input block is a halo tile of
# TH+3 padded rows, flattened to ((TH+3)*Wp, Cin) so every one of the 9 taps
# is a contiguous 2D slice; the conv is 9 accumulated bf16 MXU matmuls into a
# tile-sized f32 accumulator.  The wrap-around junk columns are dropped before
# the store, so the kernel writes the exact (TH, W, Cout) output block.
# -----------------------------------------------------------------------------
def _conv3x3_relu_kernel(x_ref, w_ref, b_ref, o_ref, *, Wp, TH, W):
    L = TH * Wp
    cout = o_ref.shape[-1]
    acc = jnp.zeros((L, cout), jnp.float32)
    for t in range(9):                       # 9 MXU matmuls, K = Cin (bf16)
        dy, dx = divmod(t, 3)
        shift = dy * Wp + dx                 # static; dy*Wp is sublane-aligned
        patch = x_ref[0, 0, pl.ds(shift, L), :]            # (L, Cin) bf16
        acc = acc + jnp.dot(patch, w_ref[t], preferred_element_type=jnp.float32)
    acc = jnp.maximum(acc + b_ref[0], 0.0)                  # f32 epilogue (VPU)
    out = acc.reshape(TH, Wp, cout)[:, :W, :]               # drop junk columns
    o_ref[0] = out.astype(o_ref.dtype)


def _pick_conv_tile_h(H, Wp, cin, cout):
    # bf16 input + f32 accumulator + bf16 output, ~double buffered.
    per_row = Wp * (2 * cin + 4 * cout + 2 * cout) * 2
    return _largest_divisor_at_most(H, _TILE_VMEM_BUDGET // max(per_row, 1))


def conv3x3_relu(x, w9, b, *, tile_h=None):
    """x: (N,H,W,Cx), w9: (9,Cin,Cout) bf16, b: (1,Cout) f32 -> (N,H,W,Cout) bf16."""
    N, H, W, cx = x.shape
    _, cin, cout = w9.shape
    x = x.astype(jnp.bfloat16)
    if cx < cin:                                   # pad RGB(3)/RGB+flow(6) -> 8
        x = jnp.pad(x, ((0, 0), (0, 0), (0, 0), (0, cin - cx)))
    Wp = _round_up(W + 2, 8)                       # 8-aligned dy*Wp flat shifts
    TH = tile_h if tile_h is not None else _pick_conv_tile_h(H, Wp, cin, cout)
    assert H % TH == 0, (H, TH)
    nT = H // TH
    # "same"-conv zero border: 1 top row, 2 bottom rows, 1 left col, rest right.
    xp = jnp.pad(x, ((0, 0), (1, 2), (1, Wp - W - 1), (0, 0)))
    if nT == 1:
        tiles = xp[:, None]
    else:                                          # halo tiles: rows [i*TH, i*TH+TH+3)
        tiles = jnp.stack([xp[:, i * TH:i * TH + TH + 3] for i in range(nT)], axis=1)
    tiles = tiles.reshape(N, nT, (TH + 3) * Wp, cin)

    kernel = functools.partial(_conv3x3_relu_kernel, Wp=Wp, TH=TH, W=W)
    return pl.pallas_call(
        kernel,
        out_shape=jax.ShapeDtypeStruct((N, H, W, cout), jnp.bfloat16),
        grid=(N, nT),
        in_specs=[
            pl.BlockSpec((1, 1, (TH + 3) * Wp, cin), lambda n, i: (n, i, 0, 0)),
            pl.BlockSpec((9, cin, cout), lambda n, i: (0, 0, 0)),
            pl.BlockSpec((1, cout), lambda n, i: (0, 0)),
        ],
        out_specs=pl.BlockSpec((1, TH, W, cout), lambda n, i: (n, i, 0, 0)),
        compiler_params=pltpu.CompilerParams(
            dimension_semantics=("parallel", "parallel"),
            vmem_limit_bytes=_VMEM_LIMIT),
    )(tiles, w9, b)


# -----------------------------------------------------------------------------
# MaxPool 2x2, stride 2  (Pallas kernel, row-tiled)
#
# Glue does a contiguous reshape (N,H,W,C) -> (N,Ho,2,Wo,2C) so the two
# W-neighbours sit next to each other on the lane dim; the kernel max-reduces
# the two H rows and the two lane halves.
# TODO(synk): fuse into the preceding conv tile to drop one feature-map
#             read+write per pool.
# -----------------------------------------------------------------------------
def _maxpool2x2_kernel(x_ref, o_ref):
    C = o_ref.shape[-1]
    m = jnp.maximum(x_ref[0, :, 0, :, :], x_ref[0, :, 1, :, :])   # pool over H
    o_ref[0] = jnp.maximum(m[:, :, :C], m[:, :, C:])              # pool over W


def maxpool2x2(x, *, tile_h=None):
    """x: (N,H,W,C) -> (N,H//2,W//2,C)."""
    N, H, W, C = x.shape
    Ho, Wo = H // 2, W // 2
    xr = x.reshape(N, Ho, 2, Wo, 2 * C)
    per_row = Wo * 2 * C * x.dtype.itemsize * 4
    th = tile_h if tile_h is not None else _largest_divisor_at_most(
        Ho, _TILE_VMEM_BUDGET // max(per_row, 1))
    assert Ho % th == 0, (Ho, th)
    nT = Ho // th
    return pl.pallas_call(
        _maxpool2x2_kernel,
        out_shape=jax.ShapeDtypeStruct((N, Ho, Wo, C), x.dtype),
        grid=(N, nT),
        in_specs=[pl.BlockSpec((1, th, 2, Wo, 2 * C), lambda n, i: (n, i, 0, 0, 0))],
        out_specs=pl.BlockSpec((1, th, Wo, C), lambda n, i: (n, i, 0, 0)),
        compiler_params=pltpu.CompilerParams(
            dimension_semantics=("parallel", "parallel"),
            vmem_limit_bytes=_VMEM_LIMIT),
    )(xr)


# -----------------------------------------------------------------------------
# 1x1 conv (+ optional sigmoid) for the FCN8 decoder heads  (Pallas kernel)
# -----------------------------------------------------------------------------
def _conv1x1_kernel(x_ref, w_ref, b_ref, o_ref, *, sigmoid):
    acc = jnp.dot(x_ref[0], w_ref[...], preferred_element_type=jnp.float32)
    acc = acc + b_ref[0]
    if sigmoid:
        acc = 1.0 / (1.0 + jnp.exp(-acc))
    o_ref[0] = acc.astype(o_ref.dtype)


def conv1x1(x, w, b, *, sigmoid=False):
    """x: (N,H,W,C), w: (C,K) bf16, b: (1,K) f32 -> (N,H,W,K) f32."""
    N, H, W, C = x.shape
    K = w.shape[-1]
    xf = x.reshape(N, H * W, C).astype(jnp.bfloat16)
    out = pl.pallas_call(
        functools.partial(_conv1x1_kernel, sigmoid=sigmoid),
        out_shape=jax.ShapeDtypeStruct((N, H * W, K), jnp.float32),
        grid=(N,),
        in_specs=[
            pl.BlockSpec((1, H * W, C), lambda n: (n, 0, 0)),
            pl.BlockSpec((C, K), lambda n: (0, 0)),
            pl.BlockSpec((1, K), lambda n: (0, 0)),
        ],
        out_specs=pl.BlockSpec((1, H * W, K), lambda n: (n, 0, 0)),
        compiler_params=pltpu.CompilerParams(dimension_semantics=("parallel",)),
    )(xf, w, b)
    return out.reshape(N, H, W, K)


# -----------------------------------------------------------------------------
# Transposed conv (2 channels) -- plain XLA glue.
# -----------------------------------------------------------------------------
def _conv_transpose(x, w, *, stride):
    # TODO(synk): 2-channel ConvTranspose2d kept in plain XLA (lhs-dilated conv);
    # a lane dim of 2 has no efficient Pallas/MXU mapping.
    k = w.shape[0]
    return jax.lax.conv_general_dilated(
        x, w, window_strides=(1, 1),
        padding=[(k - 1, k - 1), (k - 1, k - 1)],
        lhs_dilation=(stride, stride),
        dimension_numbers=("NHWC", "HWIO", "NHWC"))


# -----------------------------------------------------------------------------
# Pure-JAX references (same bf16 dtype policy) for correctness checking.
# -----------------------------------------------------------------------------
def _conv3x3_relu_ref(x, w9, b):
    _, cin, cout = w9.shape
    x = x.astype(jnp.bfloat16)
    if x.shape[-1] < cin:
        x = jnp.pad(x, ((0, 0), (0, 0), (0, 0), (0, cin - x.shape[-1])))
    w = w9.reshape(3, 3, cin, cout)
    y = jax.lax.conv_general_dilated(
        x, w, (1, 1), "SAME", dimension_numbers=("NHWC", "HWIO", "NHWC"),
        preferred_element_type=jnp.float32)
    return jnp.maximum(y + b[0], 0.0).astype(jnp.bfloat16)


def _maxpool2x2_ref(x):
    return jax.lax.reduce_window(x, jnp.array(-jnp.inf, x.dtype), jax.lax.max,
                                 (1, 2, 2, 1), (1, 2, 2, 1), "VALID")


def _conv1x1_ref(x, w, b, *, sigmoid=False):
    y = jnp.einsum("nhwc,ck->nhwk", x.astype(jnp.bfloat16), w,
                   preferred_element_type=jnp.float32) + b[0]
    return jax.nn.sigmoid(y) if sigmoid else y


# -----------------------------------------------------------------------------
# Parameters
# -----------------------------------------------------------------------------
_VGG16_CFG = [64, 64, "M", 128, 128, "M", 256, 256, 256, "M",
              512, 512, 512, "M", 512, 512, 512, "M"]
_STAGE_SPLITS = (10, 14)   # features[:17] / features[17:24] / features[24:]


def init_encoder_params(key, in_ch):
    """VGG16 conv stack; first conv takes `in_ch` (3 for encoder, 6 for encoder_2)."""
    params = []
    cin = in_ch
    for v in _VGG16_CFG:
        if v == "M":
            continue
        key, kw, kb = jax.random.split(key, 3)
        cin_p = _round_up(cin, 8)
        w = jax.random.normal(kw, (3, 3, cin, v), jnp.float32) * np.sqrt(2.0 / (9 * cin))
        w = jnp.pad(w, ((0, 0), (0, 0), (0, cin_p - cin), (0, 0)))
        w9 = w.reshape(9, cin_p, v).astype(jnp.bfloat16)   # bf16 once, at init
        b = 0.01 * jax.random.normal(kb, (1, v), jnp.float32)
        params.append((w9, b))
        cin = v
    return params


def init_decoder_params(key, n_classes=2):
    def c1x1(k, cin):
        kw, _ = jax.random.split(k)
        w = (jax.random.normal(kw, (cin, n_classes), jnp.float32)
             * np.sqrt(2.0 / cin)).astype(jnp.bfloat16)
        b = jnp.zeros((1, n_classes), jnp.float32)
        return w, b
    k1, k2, k3, k4, k5 = jax.random.split(key, 5)
    return dict(
        score_pool3=c1x1(k1, 256),
        score_pool4=c1x1(k2, 512),
        classifier=c1x1(k3, 512),
        up2=0.1 * jax.random.normal(k4, (4, 4, n_classes, n_classes), jnp.float32),
        up8=0.01 * jax.random.normal(k5, (16, 16, n_classes, n_classes), jnp.float32),
    )


# -----------------------------------------------------------------------------
# Forward passes
# -----------------------------------------------------------------------------
def encoder_forward(params, x_nhwc, *, conv_fn=conv3x3_relu, pool_fn=maxpool2x2):
    """VGG16 stages; returns (pool_3, pool_4, pool_5) in NHWC / bf16."""
    x = x_nhwc.astype(jnp.bfloat16)
    stages = (_VGG16_CFG[:_STAGE_SPLITS[0]],
              _VGG16_CFG[_STAGE_SPLITS[0]:_STAGE_SPLITS[1]],
              _VGG16_CFG[_STAGE_SPLITS[1]:])
    outs, idx = [], 0
    for cfg in stages:
        for v in cfg:
            if v == "M":
                x = pool_fn(x)
            else:
                w9, b = params[idx]
                idx += 1
                x = conv_fn(x, w9, b)
        outs.append(x)
    return tuple(outs)


def decoder_forward(dp, pool3, pool4, pool5, out_hw, *, conv1x1_fn=conv1x1):
    """FCN8 head, matching decoder.forward (NHWC in, NHWC f32 out)."""
    o = conv1x1_fn(pool5, *dp["classifier"], sigmoid=True)
    o = _conv_transpose(o, dp["up2"], stride=2)
    o2 = conv1x1_fn(pool4, *dp["score_pool4"])
    o = o[:, 1:1 + o2.shape[1], 1:1 + o2.shape[2], :] + o2
    o = _conv_transpose(o, dp["up2"], stride=2)
    o2 = conv1x1_fn(pool3, *dp["score_pool3"])
    o = o[:, 1:1 + o2.shape[1], 1:1 + o2.shape[2], :] + o2
    o = _conv_transpose(o, dp["up8"], stride=8)
    H_out, W_out = out_hw
    cy = (o.shape[1] - H_out) // 2
    cx = (o.shape[2] - W_out) // 2
    return o[:, cy:cy + H_out, cx:cx + W_out, :]


def modnet2_forward(params, rgb, of, *, conv_fn=conv3x3_relu,
                    pool_fn=maxpool2x2, conv1x1_fn=conv1x1):
    """Matches modnet_2.forward: NCHW in, (spatial_out, motion_out) NCHW out."""
    _, _, H, W = rgb.shape
    to_nhwc = lambda t: jnp.transpose(t, (0, 2, 3, 1))
    to_nchw = lambda t: jnp.transpose(t, (0, 3, 1, 2))
    combined = jnp.concatenate([rgb, of], axis=1)
    p1 = encoder_forward(params["enc1"], to_nhwc(rgb), conv_fn=conv_fn, pool_fn=pool_fn)
    p2 = encoder_forward(params["enc2"], to_nhwc(combined), conv_fn=conv_fn, pool_fn=pool_fn)
    pool3, pool4, pool5 = (a + b for a, b in zip(p1, p2))
    spatial = decoder_forward(params["dec1"], pool3, pool4, pool5, (H, W),
                              conv1x1_fn=conv1x1_fn)
    motion = decoder_forward(params["dec2"], pool3, pool4, pool5, (H, W),
                             conv1x1_fn=conv1x1_fn)
    return to_nchw(spatial), to_nchw(motion)


if __name__ == "__main__":
    key = jax.random.PRNGKey(0)
    k_e1, k_e2, k_d1, k_d2, k_rgb, k_of, k_t = jax.random.split(key, 7)
    params = dict(
        enc1=init_encoder_params(k_e1, 3),
        enc2=init_encoder_params(k_e2, 6),
        dec1=init_decoder_params(k_d1),
        dec2=init_decoder_params(k_d2),
    )
    rgb = jax.random.normal(k_rgb, (2, 3, 32, 32), jnp.float32)   # NCHW like PyTorch
    of = jax.random.normal(k_of, (2, 3, 32, 32), jnp.float32)

    # ---- unit check of the row-tiled paths (forces nT > 1) ------------------
    xt = jax.random.normal(k_t, (2, 32, 32, 64), jnp.float32).astype(jnp.bfloat16)
    w9_t, b_t = params["enc1"][1]                                 # the 64->64 conv
    got = conv3x3_relu(xt, w9_t, b_t, tile_h=8)
    want = _conv3x3_relu_ref(xt, w9_t, b_t)
    np.testing.assert_allclose(np.asarray(got.astype(jnp.float32)),
                               np.asarray(want.astype(jnp.float32)),
                               rtol=1e-2, atol=1e-2)
    np.testing.assert_allclose(
        np.asarray(maxpool2x2(xt, tile_h=4).astype(jnp.float32)),
        np.asarray(_maxpool2x2_ref(xt).astype(jnp.float32)), rtol=0, atol=0)

    # ---- full modnet_2 forward (Pallas kernels) ------------------------------
    fwd = jax.jit(lambda p, a, b: modnet2_forward(p, a, b))
    spatial, motion = jax.block_until_ready(fwd(params, rgb, of))
    assert spatial.shape == (2, 2, 32, 32), spatial.shape
    assert motion.shape == (2, 2, 32, 32), motion.shape

    # ---- pure-JAX reference with the same bf16 policy ------------------------
    ref_fwd = jax.jit(lambda p, a, b: modnet2_forward(
        p, a, b, conv_fn=_conv3x3_relu_ref, pool_fn=_maxpool2x2_ref,
        conv1x1_fn=_conv1x1_ref))
    r_spatial, r_motion = jax.block_until_ready(ref_fwd(params, rgb, of))
    np.testing.assert_allclose(np.asarray(spatial), np.asarray(r_spatial),
                               rtol=2e-2, atol=2e-2)
    np.testing.assert_allclose(np.asarray(motion), np.asarray(r_motion),
                               rtol=2e-2, atol=2e-2)

    print("KERNEL_OK")
</pallas_src>

<mosaic_0001>
module attributes {stable_mosaic.version = 11 : i64} {
  func.func @_conv3x3_relu_kernel(%arg0: i32, %arg1: i32, %arg2: memref<1x1x440x64xbf16, #tpu.memory_space<vmem>>, %arg3: memref<9x64x64xbf16, #tpu.memory_space<vmem>>, %arg4: memref<1x64xf32, #tpu.memory_space<vmem>>, %arg5: memref<1x8x32x64xbf16, #tpu.memory_space<vmem>>) attributes {dimension_semantics = [#tpu.dimension_semantics<parallel>, #tpu.dimension_semantics<parallel>], iteration_bounds = array<i64: 2, 4>, scalar_prefetch = 0 : i64, scratch_operands = 0 : i64, tpu.core_type = #tpu.core_type<tc>, window_params = [{transform_indices = @transform_0, window_bounds = array<i64: 1, 1, 440, 64>}, {pipeline_mode = #tpu.pipeline_mode<synchronous>, transform_indices = @transform_1, window_bounds = array<i64: 9, 64, 64>}, {pipeline_mode = #tpu.pipeline_mode<synchronous>, transform_indices = @transform_2, window_bounds = array<i64: 1, 64>}, {transform_indices = @transform_3, window_bounds = array<i64: 1, 8, 32, 64>}]} {
    %cst = arith.constant 0.000000e+00 : f32
    %0 = vector.broadcast %cst : f32 to vector<320x64xf32>
    %c0 = arith.constant 0 : index
    %c0_0 = arith.constant 0 : index
    %c0_1 = arith.constant 0 : index
    %c0_2 = arith.constant 0 : index
    %1 = vector.load %arg2[%c0, %c0_0, %c0_1, %c0_2] : memref<1x1x440x64xbf16, #tpu.memory_space<vmem>>, vector<1x1x320x64xbf16>
    %2 = vector.shape_cast %1 : vector<1x1x320x64xbf16> to vector<320x64xbf16>
    %c0_3 = arith.constant 0 : index
    %c0_4 = arith.constant 0 : index
    %c0_5 = arith.constant 0 : index
    %3 = vector.load %arg3[%c0_3, %c0_4, %c0_5] : memref<9x64x64xbf16, #tpu.memory_space<vmem>>, vector<1x64x64xbf16>
    %4 = vector.shape_cast %3 : vector<1x64x64xbf16> to vector<64x64xbf16>
    %cst_6 = arith.constant dense<0.000000e+00> : vector<320x64xf32>
    %5 = tpu.matmul %2, %4, %cst_6 {dimension_numbers = #tpu.dot_dimension_numbers<[1], [0], [0], [1], [0, 0, 1, 1], [], []>} : vector<320x64xbf16>, vector<64x64xbf16>, vector<320x64xf32> -> vector<320x64xf32>
    %6 = arith.addf %0, %5 : vector<320x64xf32>
    %c0_7 = arith.constant 0 : index
    %c0_8 = arith.constant 0 : index
    %c1 = arith.constant 1 : index
    %c0_9 = arith.constant 0 : index
    %7 = vector.load %arg2[%c0_7, %c0_8, %c1, %c0_9] : memref<1x1x440x64xbf16, #tpu.memory_space<vmem>>, vector<1x1x320x64xbf16>
    %8 = vector.shape_cast %7 : vector<1x1x320x64xbf16> to vector<320x64xbf16>
    %c1_10 = arith.constant 1 : index
    %c0_11 = arith.constant 0 : index
    %c0_12 = arith.constant 0 : index
    %9 = vector.load %arg3[%c1_10, %c0_11, %c0_12] : memref<9x64x64xbf16, #tpu.memory_space<vmem>>, vector<1x64x64xbf16>
    %10 = vector.shape_cast %9 : vector<1x64x64xbf16> to vector<64x64xbf16>
    %cst_13 = arith.constant dense<0.000000e+00> : vector<320x64xf32>
    %11 = tpu.matmul %8, %10, %cst_13 {dimension_numbers = #tpu.dot_dimension_numbers<[1], [0], [0], [1], [0, 0, 1, 1], [], []>} : vector<320x64xbf16>, vector<64x64xbf16>, vector<320x64xf32> -> vector<320x64xf32>
    %12 = arith.addf %6, %11 : vector<320x64xf32>
    %c0_14 = arith.constant 0 : index
    %c0_15 = arith.constant 0 : index
    %c2 = arith.constant 2 : index
    %c0_16 = arith.constant 0 : index
    %13 = vector.load %arg2[%c0_14, %c0_15, %c2, %c0_16] : memref<1x1x440x64xbf16, #tpu.memory_space<vmem>>, vector<1x1x320x64xbf16>
    %14 = vector.shape_cast %13 : vector<1x1x320x64xbf16> to vector<320x64xbf16>
    %c2_17 = arith.constant 2 : index
    %c0_18 = arith.constant 0 : index
    %c0_19 = arith.constant 0 : index
    %15 = vector.load %arg3[%c2_17, %c0_18, %c0_19] : memref<9x64x64xbf16, #tpu.memory_space<vmem>>, vector<1x64x64xbf16>
    %16 = vector.shape_cast %15 : vector<1x64x64xbf16> to vector<64x64xbf16>
    %cst_20 = arith.constant dense<0.000000e+00> : vector<320x64xf32>
    %17 = tpu.matmul %14, %16, %cst_20 {dimension_numbers = #tpu.dot_dimension_numbers<[1], [0], [0], [1], [0, 0, 1, 1], [], []>} : vector<320x64xbf16>, vector<64x64xbf16>, vector<320x64xf32> -> vector<320x64xf32>
    %18 = arith.addf %12, %17 : vector<320x64xf32>
    %c0_21 = arith.constant 0 : index
    %c0_22 = arith.constant 0 : index
    %c40 = arith.constant 40 : index
    %c0_23 = arith.constant 0 : index
    %19 = vector.load %arg2[%c0_21, %c0_22, %c40, %c0_23] : memref<1x1x440x64xbf16, #tpu.memory_space<vmem>>, vector<1x1x320x64xbf16>
    %20 = vector.shape_cast %19 : vector<1x1x320x64xbf16> to vector<320x64xbf16>
    %c3 = arith.constant 3 : index
    %c0_24 = arith.constant 0 : index
    %c0_25 = arith.constant 0 : index
    %21 = vector.load %arg3[%c3, %c0_24, %c0_25] : memref<9x64x64xbf16, #tpu.memory_space<vmem>>, vector<1x64x64xbf16>
    %22 = vector.shape_cast %21 : vector<1x64x64xbf16> to vector<64x64xbf16>
    %cst_26 = arith.constant dense<0.000000e+00> : vector<320x64xf32>
    %23 = tpu.matmul %20, %22, %cst_26 {dimension_numbers = #tpu.dot_dimension_numbers<[1], [0], [0], [1], [0, 0, 1, 1], [], []>} : vector<320x64xbf16>, vector<64x64xbf16>, vector<320x64xf32> -> vector<320x64xf32>
    %24 = arith.addf %18, %23 : vector<320x64xf32>
    %c0_27 = arith.constant 0 : index
    %c0_28 = arith.constant 0 : index
    %c41 = arith.constant 41 : index
    %c0_29 = arith.constant 0 : index
    %25 = vector.load %arg2[%c0_27, %c0_28, %c41, %c0_29] : memref<1x1x440x64xbf16, #tpu.memory_space<vmem>>, vector<1x1x320x64xbf16>
    %26 = vector.shape_cast %25 : vector<1x1x320x64xbf16> to vector<320x64xbf16>
    %c4 = arith.constant 4 : index
    %c0_30 = arith.constant 0 : index
    %c0_31 = arith.constant 0 : index
    %27 = vector.load %arg3[%c4, %c0_30, %c0_31] : memref<9x64x64xbf16, #tpu.memory_space<vmem>>, vector<1x64x64xbf16>
    %28 = vector.shape_cast %27 : vector<1x64x64xbf16> to vector<64x64xbf16>
    %cst_32 = arith.constant dense<0.000000e+00> : vector<320x64xf32>
    %29 = tpu.matmul %26, %28, %cst_32 {dimension_numbers = #tpu.dot_dimension_numbers<[1], [0], [0], [1], [0, 0, 1, 1], [], []>} : vector<320x64xbf16>, vector<64x64xbf16>, vector<320x64xf32> -> vector<320x64xf32>
    %30 = arith.addf %24, %29 : vector<320x64xf32>
    %c0_33 = arith.constant 0 : index
    %c0_34 = arith.constant 0 : index
    %c42 = arith.constant 42 : index
    %c0_35 = arith.constant 0 : index
    %31 = vector.load %arg2[%c0_33, %c0_34, %c42, %c0_35] : memref<1x1x440x64xbf16, #tpu.memory_space<vmem>>, vector<1x1x320x64xbf16>
    %32 = vector.shape_cast %31 : vector<1x1x320x64xbf16> to vector<320x64xbf16>
    %c5 = arith.constant 5 : index
    %c0_36 = arith.constant 0 : index
    %c0_37 = arith.constant 0 : index
    %33 = vector.load %arg3[%c5, %c0_36, %c0_37] : memref<9x64x64xbf16, #tpu.memory_space<vmem>>, vector<1x64x64xbf16>
    %34 = vector.shape_cast %33 : vector<1x64x64xbf16> to vector<64x64xbf16>
    %cst_38 = arith.constant dense<0.000000e+00> : vector<320x64xf32>
    %35 = tpu.matmul %32, %34, %cst_38 {dimension_numbers = #tpu.dot_dimension_numbers<[1], [0], [0], [1], [0, 0, 1, 1], [], []>} : vector<320x64xbf16>, vector<64x64xbf16>, vector<320x64xf32> -> vector<320x64xf32>
    %36 = arith.addf %30, %35 : vector<320x64xf32>
    %c0_39 = arith.constant 0 : index
    %c0_40 = arith.constant 0 : index
    %c80 = arith.constant 80 : index
    %c0_41 = arith.constant 0 : index
    %37 = vector.load %arg2[%c0_39, %c0_40, %c80, %c0_41] : memref<1x1x440x64xbf16, #tpu.memory_space<vmem>>, vector<1x1x320x64xbf16>
    %38 = vector.shape_cast %37 : vector<1x1x320x64xbf16> to vector<320x64xbf16>
    %c6 = arith.constant 6 : index
    %c0_42 = arith.constant 0 : index
    %c0_43 = arith.constant 0 : index
    %39 = vector.load %arg3[%c6, %c0_42, %c0_43] : memref<9x64x64xbf16, #tpu.memory_space<vmem>>, vector<1x64x64xbf16>
    %40 = vector.shape_cast %39 : vector<1x64x64xbf16> to vector<64x64xbf16>
    %cst_44 = arith.constant dense<0.000000e+00> : vector<320x64xf32>
    %41 = tpu.matmul %38, %40, %cst_44 {dimension_numbers = #tpu.dot_dimension_numbers<[1], [0], [0], [1], [0, 0, 1, 1], [], []>} : vector<320x64xbf16>, vector<64x64xbf16>, vector<320x64xf32> -> vector<320x64xf32>
    %42 = arith.addf %36, %41 : vector<320x64xf32>
    %c0_45 = arith.constant 0 : index
    %c0_46 = arith.constant 0 : index
    %c81 = arith.constant 81 : index
    %c0_47 = arith.constant 0 : index
    %43 = vector.load %arg2[%c0_45, %c0_46, %c81, %c0_47] : memref<1x1x440x64xbf16, #tpu.memory_space<vmem>>, vector<1x1x320x64xbf16>
    %44 = vector.shape_cast %43 : vector<1x1x320x64xbf16> to vector<320x64xbf16>
    %c7 = arith.constant 7 : index
    %c0_48 = arith.constant 0 : index
    %c0_49 = arith.constant 0 : index
    %45 = vector.load %arg3[%c7, %c0_48, %c0_49] : memref<9x64x64xbf16, #tpu.memory_space<vmem>>, vector<1x64x64xbf16>
    %46 = vector.shape_cast %45 : vector<1x64x64xbf16> to vector<64x64xbf16>
    %cst_50 = arith.constant dense<0.000000e+00> : vector<320x64xf32>
    %47 = tpu.matmul %44, %46, %cst_50 {dimension_numbers = #tpu.dot_dimension_numbers<[1], [0], [0], [1], [0, 0, 1, 1], [], []>} : vector<320x64xbf16>, vector<64x64xbf16>, vector<320x64xf32> -> vector<320x64xf32>
    %48 = arith.addf %42, %47 : vector<320x64xf32>
    %c0_51 = arith.constant 0 : index
    %c0_52 = arith.constant 0 : index
    %c82 = arith.constant 82 : index
    %c0_53 = arith.constant 0 : index
    %49 = vector.load %arg2[%c0_51, %c0_52, %c82, %c0_53] : memref<1x1x440x64xbf16, #tpu.memory_space<vmem>>, vector<1x1x320x64xbf16>
    %50 = vector.shape_cast %49 : vector<1x1x320x64xbf16> to vector<320x64xbf16>
    %c8 = arith.constant 8 : index
    %c0_54 = arith.constant 0 : index
    %c0_55 = arith.constant 0 : index
    %51 = vector.load %arg3[%c8, %c0_54, %c0_55] : memref<9x64x64xbf16, #tpu.memory_space<vmem>>, vector<1x64x64xbf16>
    %52 = vector.shape_cast %51 : vector<1x64x64xbf16> to vector<64x64xbf16>
    %cst_56 = arith.constant dense<0.000000e+00> : vector<320x64xf32>
    %53 = tpu.matmul %50, %52, %cst_56 {dimension_numbers = #tpu.dot_dimension_numbers<[1], [0], [0], [1], [0, 0, 1, 1], [], []>} : vector<320x64xbf16>, vector<64x64xbf16>, vector<320x64xf32> -> vector<320x64xf32>
    %54 = arith.addf %48, %53 : vector<320x64xf32>
    %c0_57 = arith.constant 0 : index
    %c0_58 = arith.constant 0 : index
    %55 = vector.load %arg4[%c0_57, %c0_58] : memref<1x64xf32, #tpu.memory_space<vmem>>, vector<1x64xf32>
    %56 = vector.shape_cast %55 : vector<1x64xf32> to vector<64xf32>
    %57 = vector.shape_cast %56 : vector<64xf32> to vector<1x64xf32>
    %58 = vector.broadcast %57 : vector<1x64xf32> to vector<320x64xf32>
    %59 = arith.addf %54, %58 : vector<320x64xf32>
    %cst_59 = arith.constant 0.000000e+00 : f32
    %60 = vector.broadcast %cst_59 : f32 to vector<320x64xf32>
    %61 = arith.maximumf %59, %60 : vector<320x64xf32>
    %62 = vector.shape_cast %61 : vector<320x64xf32> to vector<8x40x64xf32>
    %63 = vector.extract_strided_slice %62 {offsets = [0, 0, 0], sizes = [8, 32, 64], strides = [1, 1, 1]} : vector<8x40x64xf32> to vector<8x32x64xf32>
    %64 = arith.truncf %63 : vector<8x32x64xf32> to vector<8x32x64xbf16>
    %c0_60 = arith.constant 0 : index
    %c0_61 = arith.constant 0 : index
    %c0_62 = arith.constant 0 : index
    %c0_63 = arith.constant 0 : index
    %65 = vector.load %arg5[%c0_60, %c0_61, %c0_62, %c0_63] : memref<1x8x32x64xbf16, #tpu.memory_space<vmem>>, vector<1x8x32x64xbf16>
    %66 = vector.shape_cast %65 : vector<1x8x32x64xbf16> to vector<8x32x64xbf16>
    %67 = vector.shape_cast %64 : vector<8x32x64xbf16> to vector<1x8x32x64xbf16>
    tpu.vector_store %arg5[%c0_60, %c0_61, %c0_62, %c0_63], %67 {strides = array<i32>} : memref<1x8x32x64xbf16, #tpu.memory_space<vmem>>, vector<1x8x32x64xbf16>,
    return
  }
  func.func @transform_0(%arg0: i32, %arg1: i32) -> (i32, i32, i32, i32) {
    %c0_i32 = arith.constant 0 : i32
    %c0_i32_0 = arith.constant 0 : i32
    %c0_i32_1 = arith.constant 0 : i32
    return %arg0, %arg1, %c0_i32, %c0_i32_0 : i32, i32, i32, i32
  }
  func.func @transform_1(%arg0: i32, %arg1: i32) -> (i32, i32, i32) {
    %c0_i32 = arith.constant 0 : i32
    %c0_i32_0 = arith.constant 0 : i32
    %c0_i32_1 = arith.constant 0 : i32
    %c0_i32_2 = arith.constant 0 : i32
    return %c0_i32, %c0_i32_0, %c0_i32_1 : i32, i32, i32
  }
  func.func @transform_2(%arg0: i32, %arg1: i32) -> (i32, i32) {
    %c0_i32 = arith.constant 0 : i32
    %c0_i32_0 = arith.constant 0 : i32
    %c0_i32_1 = arith.constant 0 : i32
    return %c0_i32, %c0_i32_0 : i32, i32
  }
  func.func @transform_3(%arg0: i32, %arg1: i32) -> (i32, i32, i32, i32) {
    %c0_i32 = arith.constant 0 : i32
    %c0_i32_0 = arith.constant 0 : i32
    %c0_i32_1 = arith.constant 0 : i32
    return %arg0, %arg1, %c0_i32, %c0_i32_0 : i32, i32, i32, i32
  }
}

</mosaic_0001>

<llo_original>
// kernel: tpu_custom_call.1
$region0: #{tpu_custom_call.1}
  #allocation0 [shape = 'u32[]', space=smem, size = 0x4, offset = 0x4, fixed_abs, tag = 'smem constant byte address 0x4 - core index']
  #allocation1 [shape = 'u32[144,128]{1,0:T(1,128)}', space=vmem, size = 0x12000, scoped, tag = 'internal scratch']
  %s0 = inlined_call_operand.vmem [shape: bf16[2,4,440,64], index: 0, kind: input, shape index: {}]
  %s1 = inlined_call_operand.vmem [shape: bf16[9,64,64], index: 1, kind: input, shape index: {}]
  %s2 = inlined_call_operand.vmem [shape: f32[1,64], index: 2, kind: input, shape index: {}]
  %s3 = inlined_call_operand.hbm [shape: bf16[2,32,32,64], index: 3, kind: output, shape index: {}]
  %s4 = sld [smem:[#allocation0]]
  $region45: #{tpu_custom_call.1} parent=0
    _
  %s6 = ssub.s32 1, %s4
  %s7 = scalar_select 0, %s6, %s4
  $region1: #{tpu_custom_call.1} parent=0
    #allocation2 [shape = 'u8[131072]{0}', space=vmem, size = 0x20000, scoped, tag = 'output window, operand 0']
    #allocation3 [shape = 's32[2]{0}', space=sflag, size = 0x8, scoped, tag = 'scoped memory for tpu_custom_call.1']
    %8 = vsyncpa [#allocation3], 0
    %s9 = scalar_lea.sflag [#allocation3], 1
    %10 = vsyncpa %s9, 0
    loop: start=0, step=1, limit=10
    $region2: #{tpu_custom_call.1} parent=1 // loop_pre_header
      _
    $region3: #{tpu_custom_call.1} parent=1 // loop_header
      %s12 = sphi 0, %s16
      %p13 = scmp.ge.s32.totalorder %s12, 10
      %s19 = sphi 0, %s31
      %s20 = sphi 0, %s27
      %s21 = sphi 0, %s19
      %s22 = sphi 0, %s20
      %s23 = sphi 0, %s21
      %s24 = sphi 0, %s22
      %s36 = sphi 0, %s38
      %s39 = sphi 0, %s36
      %s40 = sphi 0, %s39
      %s56 = sphi 0, %s40
      %s60 = sphi 0, %s60
      %s62 = sphi 0, %s60
      %s63 = sphi 0, %s62
      %s77 = sphi 0, %s63
      %s81 = sphi 0, %s81
      %s83 = sphi 0, %s81
      %s84 = sphi 0, %s83
      %s98 = sphi 0, %s84
      %s106 = sphi 0, %s108
      %s109 = sphi 0, %s106
      %s110 = sphi 0, %s109
      %s126 = sphi 0, %s110
    $region4: #{tpu_custom_call.1} parent=1 // loop_header_branch
      %15 = sbr.rel (%p13) target = $region8
    $region5: #{tpu_custom_call.1} parent=1 // loop_body
      %s17 = ssub.s32 %s12, 1
      %s18 = ssub.s32 %s12, 2
      %s25 = sadd.s32 1, %s20
      %p26 = scmp.ge.s32.totalorder %s25, 4
      %s27 = scalar_select %p26, 0, %s25
      %s28 = sadd.s32 1, %s19
      %s29 = scalar_select %p26, %s28, %s19
      %p30 = scmp.ge.s32.totalorder %s29, 2
      %s31 = scalar_select %p30, 0, %s29
      %s32 = ssub.s32 %s19, %s31
      %s33 = ssub.s32 %s20, %s27
      %s34 = sor.u32 %s32, %s33
      %p35 = scmp.eq.s32.totalorder %s34, 0
      %s37 = sadd.s32 %s36, 1
      %s38 = scalar_select %p35, %s36, %s37
      %p41 = pneg %p35
      %p42 = scmp.eq.s32.totalorder %s12, 7
      %p43 = por %p41, %p42
      %p44 = scmp.ne.s32.totalorder %s36, %s39
      %p45 = scmp.eq.s32.totalorder %s12, 0
      %p46 = por %p44, %p45
      %p47 = scmp.ne.s32.totalorder %s36, %s39
      %p48 = scmp.eq.s32.totalorder %s17, 7
      %p49 = por %p47, %p48
      %p50 = scmp.ne.s32.totalorder %s39, %s40
      %p51 = scmp.eq.s32.totalorder %s17, 0
      %p52 = por %p50, %p51
      %p53 = scmp.ne.s32.totalorder %s39, %s40
      %p54 = scmp.eq.s32.totalorder %s18, 7
      %p55 = por %p53, %p54
      %p57 = scmp.ne.s32.totalorder %s40, %s56
      %p58 = scmp.eq.s32.totalorder %s18, 0
      %p59 = por %p57, %p58
      %s61 = sadd.s32 %s60, 1
      %p64 = scmp.eq.s32.totalorder %s12, 7
      %p65 = scmp.ne.s32.totalorder %s60, %s62
      %p66 = scmp.eq.s32.totalorder %s12, 0
      %p67 = por %p65, %p66
      %p68 = scmp.ne.s32.totalorder %s60, %s62
      %p69 = scmp.eq.s32.totalorder %s17, 7
      %p70 = por %p68, %p69
      %p71 = scmp.ne.s32.totalorder %s62, %s63
      %p72 = scmp.eq.s32.totalorder %s17, 0
      %p73 = por %p71, %p72
      %p74 = scmp.ne.s32.totalorder %s62, %s63
      %p75 = scmp.eq.s32.totalorder %s18, 7
      %p76 = por %p74, %p75
      %p78 = scmp.ne.s32.totalorder %s63, %s77
      %p79 = scmp.eq.s32.totalorder %s18, 0
      %p80 = por %p78, %p79
      %s82 = sadd.s32 %s81, 1
      %p85 = scmp.eq.s32.totalorder %s12, 7
      %p86 = scmp.ne.s32.totalorder %s81, %s83
      %p87 = scmp.eq.s32.totalorder %s12, 0
      %p88 = por %p86, %p87
      %p89 = scmp.ne.s32.totalorder %s81, %s83
      %p90 = scmp.eq.s32.totalorder %s17, 7
      %p91 = por %p89, %p90
      %p92 = scmp.ne.s32.totalorder %s83, %s84
      %p93 = scmp.eq.s32.totalorder %s17, 0
      %p94 = por %p92, %p93
      %p95 = scmp.ne.s32.totalorder %s83, %s84
      %p96 = scmp.eq.s32.totalorder %s18, 7
      %p97 = por %p95, %p96
      %p99 = scmp.ne.s32.totalorder %s84, %s98
      %p100 = scmp.eq.s32.totalorder %s18, 0
      %p101 = por %p99, %p100
      %s102 = ssub.s32 %s19, %s31
      %s103 = ssub.s32 %s20, %s27
      %s104 = sor.u32 %s102, %s103
      %p105 = scmp.eq.s32.totalorder %s104, 0
      %s107 = sadd.s32 %s106, 1
      %s108 = scalar_select %p105, %s106, %s107
      %p111 = pneg %p105
      %p112 = scmp.eq.s32.totalorder %s12, 7
      %p113 = por %p111, %p112
      %p114 = scmp.ne.s32.totalorder %s106, %s109
      %p115 = scmp.eq.s32.totalorder %s12, 0
      %p116 = por %p114, %p115
      %p117 = scmp.ne.s32.totalorder %s106, %s109
      %p118 = scmp.eq.s32.totalorder %s17, 7
      %p119 = por %p117, %p118
      %p120 = scmp.ne.s32.totalorder %s109, %s110
      %p121 = scmp.eq.s32.totalorder %s17, 0
      %p122 = por %p120, %p121
      %p123 = scmp.ne.s32.totalorder %s109, %s110
      %p124 = scmp.eq.s32.totalorder %s18, 7
      %p125 = por %p123, %p124
      %p127 = scmp.ne.s32.totalorder %s110, %s126
      %p128 = scmp.eq.s32.totalorder %s18, 0
      %p129 = por %p127, %p128
      %p130 = scmp.le.s32.totalorder 1, %s12
      %p131 = scmp.lt.s32.totalorder %s12, 9
      %p132 = pnand %p130, %p131
      %p133 = pneg %p132
      // Predicated region
      $region9: #{tpu_custom_call.1} parent=5 // pred_check
        _
      $region10: #{tpu_custom_call.1} parent=5 // pred_check_branch
        %135 = sbr.rel (%p132) target = $region12
      $region11: #{tpu_custom_call.1} parent=5 // pred_region
        %s136 = ssub.s32 %s12, 1
        // Predicated region
        $region13: #{tpu_custom_call.1} parent=11 // pred_check
          %p137 = pneg %p73
        $region14: #{tpu_custom_call.1} parent=11 // pred_check_branch
          %139 = sbr.rel (%p137) target = $region16
        $region15: #{tpu_custom_call.1} parent=11 // pred_region
          _
        $region16: #{tpu_custom_call.1} parent=11 // pred_fallthru
          _
        // Predicated region
        $region17: #{tpu_custom_call.1} parent=11 // pred_check
          %p140 = pneg %p94
        $region18: #{tpu_custom_call.1} parent=11 // pred_check_branch
          %142 = sbr.rel (%p140) target = $region20
        $region19: #{tpu_custom_call.1} parent=11 // pred_region
          _
        $region20: #{tpu_custom_call.1} parent=11 // pred_fallthru
          _
      $region12: #{tpu_custom_call.1} parent=5 // pred_fallthru
        _
      %p143 = scmp.lt.s32.totalorder %s12, 8
      // Predicated region
      $region21: #{tpu_custom_call.1} parent=5 // pred_check
        %p144 = pneg %p143
      $region22: #{tpu_custom_call.1} parent=5 // pred_check_branch
        %146 = sbr.rel (%p144) target = $region24
      $region23: #{tpu_custom_call.1} parent=5 // pred_region
        // Predicated region
        $region25: #{tpu_custom_call.1} parent=23 // pred_check
          %p147 = pneg %p46
        $region26: #{tpu_custom_call.1} parent=23 // pred_check_branch
          %149 = sbr.rel (%p147) target = $region28
        $region27: #{tpu_custom_call.1} parent=23 // pred_region
          %p150 = scmp.lt.s32.totalorder %s19, 1
          %s151 = scalar_select %p150, %s19, 1
          %p152 = scmp.lt.s32.totalorder %s20, 3
          %s153 = scalar_select %p152, %s20, 3
          %s154 = smul.addr %s153, 55
          %s155 = smul.addr %s151, 220
          %s156 = sadd.s32 %s154, %s155
          %s157 = smul.addr %s156, 4
          %s158 = scalar_lea.vmem %s0, %s157
        $region28: #{tpu_custom_call.1} parent=23 // pred_fallthru
          _
      $region24: #{tpu_custom_call.1} parent=5 // pred_fallthru
        _
      %p159 = scmp.le.s32.totalorder 1, %s12
      %p160 = scmp.lt.s32.totalorder %s12, 9
      %p161 = pnand %p159, %p160
      %p162 = pneg %p161
      // Predicated region
      $region29: #{tpu_custom_call.1} parent=5 // pred_check
        _
      $region30: #{tpu_custom_call.1} parent=5 // pred_check_branch
        %164 = sbr.rel (%p161) target = $region32
      $region31: #{tpu_custom_call.1} parent=5 // pred_region
        %s165 = ssub.s32 %s12, 1
        %p166 = scmp.lt.s32.totalorder %s21, 1
        %s167 = scalar_select %p166, %s21, 1
        %p168 = scmp.lt.s32.totalorder %s22, 3
        %s169 = scalar_select %p168, %s22, 3
        %s170 = smul.addr %s169, 55
        %s171 = smul.addr %s167, 220
        %s172 = sadd.s32 %s170, %s171
        %s173 = smul.addr %s172, 4
        %s174 = scalar_lea.vmem %s0, %s173
        %p175 = pneg %p52
        %p176 = pneg %p49
        %p177 = pneg %p73
        %p178 = pneg %p70
        %p179 = pneg %p94
        %p180 = pneg %p91
        %p181 = pneg %p122
        %p182 = pneg %p119
        %s183 = sand.u32 %s109, 1
        %s184 = scalar_lea.sflag [#allocation3], %s183
        %s185 = sand.u32 %s109, 1
        %s186 = smul.addr %s185, 128
        %s187 = scalar_lea.vmem [#allocation2], %s186
        %p188 = scmp.lt.s32.totalorder %s21, 1
        %s189 = scalar_select %p188, %s21, 1
        %p190 = scmp.lt.s32.totalorder %s22, 3
        %s191 = scalar_select %p190, %s22, 3
        %s192 = smul.addr %s191, 55
        %s193 = smul.addr %s189, 220
        %s194 = sadd.s32 %s192, %s193
        %s195 = smul.addr %s194, 4
        %s196 = scalar_lea.vmem %s0, %s195
        %s197 = smul.u32 8, %s22
        %v199 = vld [vmem:[%s196] sm:$0xf]
        %v200 = vld [vmem:[%s196 + $0x4] sm:$0xf]
        %v201 = vld [vmem:[%s196 + $0x8] sm:$0xf]
        %v202 = vld [vmem:[%s196 + $0xc] sm:$0xf]
        %v203 = vld [vmem:[%s196 + $0x10] sm:$0xf]
        %v204 = vld [vmem:[%s196 + $0x14] sm:$0xf]
        %v205 = vld [vmem:[%s196 + $0x18] sm:$0xf]
        %v206 = vld [vmem:[%s196 + $0x1c] sm:$0xf]
        %v207 = vld [vmem:[%s196 + $0x20] sm:$0xf]
        %v208 = vld [vmem:[%s196 + $0x24] sm:$0xf]
        %v209 = vld [vmem:[%s196 + $0x28] sm:$0xf]
        %v210 = vld [vmem:[%s196 + $0x2c] sm:$0xf]
        %v211 = vld [vmem:[%s196 + $0x30] sm:$0xf]
        %v212 = vld [vmem:[%s196 + $0x34] sm:$0xf]
        %v213 = vld [vmem:[%s196 + $0x38] sm:$0xf]
        %v214 = vld [vmem:[%s196 + $0x3c] sm:$0xf]
        %v215 = vld [vmem:[%s196 + $0x40] sm:$0xf]
        %v216 = vld [vmem:[%s196 + $0x44] sm:$0xf]
        %v217 = vld [vmem:[%s196 + $0x48] sm:$0xf]
        %v218 = vld [vmem:[%s196 + $0x4c] sm:$0xf]
        %v219 = vld [vmem:[%s196 + $0x50] sm:$0xf]
        %v220 = vld [vmem:[%s196 + $0x54] sm:$0xf]
        %v221 = vld [vmem:[%s196 + $0x58] sm:$0xf]
        %v222 = vld [vmem:[%s196 + $0x5c] sm:$0xf]
        %v223 = vld [vmem:[%s196 + $0x60] sm:$0xf]
        %v224 = vld [vmem:[%s196 + $0x64] sm:$0xf]
        %v225 = vld [vmem:[%s196 + $0x68] sm:$0xf]
        %v226 = vld [vmem:[%s196 + $0x6c] sm:$0xf]
        %v227 = vld [vmem:[%s196 + $0x70] sm:$0xf]
        %v228 = vld [vmem:[%s196 + $0x74] sm:$0xf]
        %v229 = vld [vmem:[%s196 + $0x78] sm:$0xf]
        %v230 = vld [vmem:[%s196 + $0x7c] sm:$0xf]
        %v231 = vld [vmem:[%s196 + $0x80] sm:$0xf]
        %v232 = vld [vmem:[%s196 + $0x84] sm:$0xf]
        %v233 = vld [vmem:[%s196 + $0x88] sm:$0xf]
        %v234 = vld [vmem:[%s196 + $0x8c] sm:$0xf]
        %v235 = vld [vmem:[%s196 + $0x90] sm:$0xf]
        %v236 = vld [vmem:[%s196 + $0x94] sm:$0xf]
        %v237 = vld [vmem:[%s196 + $0x98] sm:$0xf]
        %v238 = vld [vmem:[%s196 + $0x9c] sm:$0xf]
        %v239 = vld [vmem:[%s1] sm:$0xf]
        %v240 = vld [vmem:[%s1 + $0x4] sm:$0xf]
        %v241 = vld [vmem:[%s1 + $0x8] sm:$0xf]
        %v242 = vld [vmem:[%s1 + $0xc] sm:$0xf]
        %v243 = vld [vmem:[%s1 + $0x10] sm:$0xf]
        %v244 = vld [vmem:[%s1 + $0x14] sm:$0xf]
        %v245 = vld [vmem:[%s1 + $0x18] sm:$0xf]
        %v246 = vld [vmem:[%s1 + $0x1c] sm:$0xf]
        %v247 = vld [vmem:[%s196 + $0xa0] sm:$0x1]
        %s248 = scalar_lea.vmem %s1, 32
        %v249 = vld [vmem:[%s248] sm:$0xf]
        %v250 = vld [vmem:[%s248 + $0x4] sm:$0xf]
        %v251 = vld [vmem:[%s248 + $0x8] sm:$0xf]
        %v252 = vld [vmem:[%s248 + $0xc] sm:$0xf]
        %v253 = vld [vmem:[%s248 + $0x10] sm:$0xf]
        %v254 = vld [vmem:[%s248 + $0x14] sm:$0xf]
        %v255 = vld [vmem:[%s248 + $0x18] sm:$0xf]
        %v256 = vld [vmem:[%s248 + $0x1c] sm:$0xf]
        %v298 = vunpack.c.l.b16 %v199
        %v299 = vunpack.c.l.b16 %v200
        %v300 = vunpack.c.l.b16 %v201
        %v301 = vunpack.c.l.b16 %v202
        %v302 = vunpack.c.l.b16 %v203
        %v303 = vunpack.c.l.b16 %v204
        %v304 = vunpack.c.l.b16 %v205
        %v305 = vunpack.c.l.b16 %v206
        %v306 = vunpack.c.l.b16 %v207
        %v307 = vunpack.c.l.b16 %v208
        %v308 = vunpack.c.l.b16 %v209
        %v309 = vunpack.c.l.b16 %v210
        %v310 = vunpack.c.l.b16 %v211
        %v311 = vunpack.c.l.b16 %v212
        %v312 = vunpack.c.l.b16 %v213
        %v313 = vunpack.c.l.b16 %v214
        %v314 = vunpack.c.l.b16 %v215
        %v315 = vunpack.c.l.b16 %v216
        %v316 = vunpack.c.l.b16 %v217
        %v317 = vunpack.c.l.b16 %v218
        %v318 = vunpack.c.l.b16 %v219
        %v319 = vunpack.c.l.b16 %v220
        %v320 = vunpack.c.l.b16 %v221
        %v321 = vunpack.c.l.b16 %v222
        %v322 = vunpack.c.l.b16 %v223
        %v323 = vunpack.c.l.b16 %v224
        %v324 = vunpack.c.l.b16 %v225
        %v325 = vunpack.c.l.b16 %v226
        %v326 = vunpack.c.l.b16 %v227
        %v327 = vunpack.c.l.b16 %v228
        %v328 = vunpack.c.l.b16 %v229
        %v329 = vunpack.c.l.b16 %v230
        %v330 = vunpack.c.l.b16 %v231
        %v331 = vunpack.c.l.b16 %v232
        %v332 = vunpack.c.l.b16 %v233
        %v333 = vunpack.c.l.b16 %v234
        %v334 = vunpack.c.l.b16 %v235
        %v335 = vunpack.c.l.b16 %v236
        %v336 = vunpack.c.l.b16 %v237
        %v337 = vunpack.c.l.b16 %v238
        %v338 = vunpack.c.l.b16 %v247
        %v339 = vpack.c.b16 %v299, %v298
        %v340 = vpack.c.b16 %v301, %v300
        %v341 = vpack.c.b16 %v303, %v302
        %v342 = vpack.c.b16 %v305, %v304
        %v343 = vpack.c.b16 %v307, %v306
        %v344 = vpack.c.b16 %v309, %v308
        %v345 = vpack.c.b16 %v311, %v310
        %v346 = vpack.c.b16 %v313, %v312
        %v347 = vpack.c.b16 %v315, %v314
        %v348 = vpack.c.b16 %v317, %v316
        %v349 = vpack.c.b16 %v319, %v318
        %v350 = vpack.c.b16 %v321, %v320
        %v351 = vpack.c.b16 %v323, %v322
        %v352 = vpack.c.b16 %v325, %v324
        %v353 = vpack.c.b16 %v327, %v326
        %v354 = vpack.c.b16 %v329, %v328
        %v355 = vpack.c.b16 %v331, %v330
        %v356 = vpack.c.b16 %v333, %v332
        %v357 = vpack.c.b16 %v335, %v334
        %v358 = vpack.c.b16 %v337, %v336
        %v359 = vpack.c.b16 %v338, %v338
        %vm360 = vsmask.f32 7424
        %v362 = vshrl.u32 %v339, 16
        %v364 = vshll.u32 %v339, 16
        %v366 = vrot.slane %v364, 1
        %v367 = vor.u32 %v362, %v366
        %v369 = vshll.u32 %v340, 16
        %v371 = vrot.slane %v369, 1
        %v372 = vsel %vm360, %v367, %v371
        %v373 = vshrl.u32 %v340, 16
        %v375 = vor.u32 %v373, %v371
        %v377 = vshll.u32 %v341, 16
        %v379 = vrot.slane %v377, 1
        %v380 = vsel %vm360, %v375, %v379
        %v381 = vshrl.u32 %v341, 16
        %v383 = vor.u32 %v381, %v379
        %v385 = vshll.u32 %v342, 16
        %v387 = vrot.slane %v385, 1
        %v388 = vsel %vm360, %v383, %v387
        %v389 = vshrl.u32 %v342, 16
        %v391 = vor.u32 %v389, %v387
        %v393 = vshll.u32 %v343, 16
        %v395 = vrot.slane %v393, 1
        %v396 = vsel %vm360, %v391, %v395
        %v397 = vshrl.u32 %v343, 16
        %v399 = vor.u32 %v397, %v395
        %v401 = vshll.u32 %v344, 16
        %v403 = vrot.slane %v401, 1
        %v404 = vsel %vm360, %v399, %v403
        %v405 = vshrl.u32 %v344, 16
        %v407 = vor.u32 %v405, %v403
        %v409 = vshll.u32 %v345, 16
        %v411 = vrot.slane %v409, 1
        %v412 = vsel %vm360, %v407, %v411
        %v413 = vshrl.u32 %v345, 16
        %v415 = vor.u32 %v413, %v411
        %v417 = vshll.u32 %v346, 16
        %v419 = vrot.slane %v417, 1
        %v420 = vsel %vm360, %v415, %v419
        %v421 = vshrl.u32 %v346, 16
        %v423 = vor.u32 %v421, %v419
        %v425 = vshll.u32 %v347, 16
        %v427 = vrot.slane %v425, 1
        %v428 = vsel %vm360, %v423, %v427
        %v429 = vshrl.u32 %v347, 16
        %v431 = vor.u32 %v429, %v427
        %v433 = vshll.u32 %v348, 16
        %v435 = vrot.slane %v433, 1
        %v436 = vsel %vm360, %v431, %v435
        %v437 = vshrl.u32 %v348, 16
        %v439 = vor.u32 %v437, %v435
        %v441 = vshll.u32 %v349, 16
        %v443 = vrot.slane %v441, 1
        %v444 = vsel %vm360, %v439, %v443
        %v445 = vshrl.u32 %v349, 16
        %v447 = vor.u32 %v445, %v443
        %v449 = vshll.u32 %v350, 16
        %v451 = vrot.slane %v449, 1
        %v452 = vsel %vm360, %v447, %v451
        %v453 = vshrl.u32 %v350, 16
        %v455 = vor.u32 %v453, %v451
        %v457 = vshll.u32 %v351, 16
        %v459 = vrot.slane %v457, 1
        %v460 = vsel %vm360, %v455, %v459
        %v461 = vshrl.u32 %v351, 16
        %v463 = vor.u32 %v461, %v459
        %v465 = vshll.u32 %v352, 16
        %v467 = vrot.slane %v465, 1
        %v468 = vsel %vm360, %v463, %v467
        %v469 = vshrl.u32 %v352, 16
        %v471 = vor.u32 %v469, %v467
        %v473 = vshll.u32 %v353, 16
        %v475 = vrot.slane %v473, 1
        %v476 = vsel %vm360, %v471, %v475
        %v477 = vshrl.u32 %v353, 16
        %v479 = vor.u32 %v477, %v475
        %v481 = vshll.u32 %v354, 16
        %v483 = vrot.slane %v481, 1
        %v484 = vsel %vm360, %v479, %v483
        %v485 = vshrl.u32 %v354, 16
        %v487 = vor.u32 %v485, %v483
        %v489 = vshll.u32 %v355, 16
        %v491 = vrot.slane %v489, 1
        %v492 = vsel %vm360, %v487, %v491
        %v493 = vshrl.u32 %v355, 16
        %v495 = vor.u32 %v493, %v491
        %v497 = vshll.u32 %v356, 16
        %v499 = vrot.slane %v497, 1
        %v500 = vsel %vm360, %v495, %v499
        %v501 = vshrl.u32 %v356, 16
        %v503 = vor.u32 %v501, %v499
        %v505 = vshll.u32 %v357, 16
        %v507 = vrot.slane %v505, 1
        %v508 = vsel %vm360, %v503, %v507
        %v509 = vshrl.u32 %v357, 16
        %v511 = vor.u32 %v509, %v507
        %v513 = vshll.u32 %v358, 16
        %v515 = vrot.slane %v513, 1
        %v516 = vsel %vm360, %v511, %v515
        %v517 = vshrl.u32 %v358, 16
        %v519 = vor.u32 %v517, %v515
        %v521 = vshll.u32 %v359, 16
        %v523 = vrot.slane %v521, 1
        %v524 = vsel %vm360, %v519, %v523
        %v533 = vunpack.c.l.b16 %v249
        %v534 = vunpack.c.l.b16 %v250
        %v535 = vunpack.c.l.b16 %v251
        %v536 = vunpack.c.l.b16 %v252
        %v537 = vunpack.c.l.b16 %v253
        %v538 = vunpack.c.l.b16 %v254
        %v539 = vunpack.c.l.b16 %v255
        %v540 = vunpack.c.l.b16 %v256
        %v541 = vpack.c.b16 %v534, %v533
        %v542 = vpack.c.b16 %v536, %v535
        %v543 = vpack.c.b16 %v538, %v537
        %v544 = vpack.c.b16 %v540, %v539
        %vm549 = vcmask 523264
        %v551 = vsel %vm549, %v372, 0
        %v554 = vsel %vm549, %v380, 0
        %v557 = vsel %vm549, %v388, 0
        %v560 = vsel %vm549, %v396, 0
        %v563 = vsel %vm549, %v404, 0
        %v566 = vsel %vm549, %v412, 0
        %v569 = vsel %vm549, %v420, 0
        %v572 = vsel %vm549, %v428, 0
        %v575 = vsel %vm549, %v436, 0
        %v578 = vsel %vm549, %v444, 0
        %v581 = vsel %vm549, %v452, 0
        %v584 = vsel %vm549, %v460, 0
        %v587 = vsel %vm549, %v468, 0
        %v590 = vsel %vm549, %v476, 0
        %v593 = vsel %vm549, %v484, 0
        %v596 = vsel %vm549, %v492, 0
        %v599 = vsel %vm549, %v500, 0
        %v602 = vsel %vm549, %v508, 0
        %v605 = vsel %vm549, %v516, 0
        %v608 = vsel %vm549, %v524, 0
        %610 = vmatprep.subr.bf16.mxu0 0
        %611 = vmatpush1.bf16.msra.mxu0 %v541
        %612 = vmatprep.subr.bf16.mxu0 0
        %613 = vmatpush1.bf16.msra.mxu0 %v542
        %614 = vmatprep.subr.bf16.mxu0 0
        %615 = vmatpush1.bf16.msra.mxu0 %v543
        %616 = vmatprep.subr.bf16.mxu0 0
        %617 = vmatpush1.bf16.msra.mxu0 %v544
        %618 = vmatprep.subr.bf16.mxu0 0
        %619 = vmatpush1.bf16.msra.mxu0 0
        %620 = vmatprep.subr.bf16.mxu0 0
        %621 = vmatpush1.bf16.msra.mxu0 0
        %622 = vmatprep.subr.bf16.mxu0 0
        %623 = vmatpush1.bf16.msra.mxu0 0
        %624 = vmatprep.subr.bf16.mxu0 0
        %625 = vmatpush1.bf16.msra.mxu0 0
        %626 = vmatprep.subr.bf16.mxu0 0
        %627 = vmatpush1.bf16.msra.mxu0 0
        %628 = vmatprep.subr.bf16.mxu0 0
        %629 = vmatpush1.bf16.msra.mxu0 0
        %630 = vmatprep.subr.bf16.mxu0 0
        %631 = vmatpush1.bf16.msra.mxu0 0
        %632 = vmatprep.subr.bf16.mxu0 0
        %633 = vmatpush1.bf16.msra.mxu0 0
        %634 = vmatprep.subr.bf16.mxu0 0
        %635 = vmatpush1.bf16.msra.mxu0 0
        %636 = vmatprep.subr.bf16.mxu0 0
        %637 = vmatpush1.bf16.msra.mxu0 0
        %638 = vmatprep.subr.bf16.mxu0 0
        %639 = vmatpush1.bf16.msra.mxu0 0
        %640 = vmatprep.subr.bf16.mxu0 0
        %641 = vmatpush1.bf16.msra.mxu0 0
        %642 = vmatprep.mubr.bf16.mxu0 0
        %643 = vmatmul.mubr.bf16.gmra.mrb[0].mxu0 %v551
        %v644 = vpop.f32.mrb[0].mxu0
        %v645 = vadd.f32 0.0, %v644
        %v646 = vpop.f32.mrb[0].mxu0
        %v647 = vpop.f32.mrb[0].mxu0
        %v648 = vadd.f32 0.0, %v647
        %v649 = vpop.f32.mrb[0].mxu0
        %650 = vmatprep.mubr.bf16.mxu0 0
        %651 = vmatmul.mubr.bf16.gmra.mrb[0].mxu0 %v554
        %v652 = vpop.f32.mrb[0].mxu0
        %v653 = vadd.f32 0.0, %v652
        %v654 = vpop.f32.mrb[0].mxu0
        %v655 = vpop.f32.mrb[0].mxu0
        %v656 = vadd.f32 0.0, %v655
        %v657 = vpop.f32.mrb[0].mxu0
        %658 = vmatprep.mubr.bf16.mxu0 0
        %659 = vmatmul.mubr.bf16.gmra.mrb[0].mxu0 %v557
        %v660 = vpop.f32.mrb[0].mxu0
        %v661 = vpop.f32.mrb[0].mxu0
        %v662 = vpop.f32.mrb[0].mxu0
        %v663 = vadd.f32 0.0, %v662
        %v664 = vpop.f32.mrb[0].mxu0
        %665 = vmatprep.mubr.bf16.mxu0 0
        %666 = vmatmul.mubr.bf16.gmra.mrb[0].mxu0 %v560
        %v667 = vpop.f32.mrb[0].mxu0
        %v668 = vadd.f32 0.0, %v667
        %v669 = vpop.f32.mrb[0].mxu0
        %v670 = vpop.f32.mrb[0].mxu0
        %v671 = vadd.f32 0.0, %v670
        %v672 = vpop.f32.mrb[0].mxu0
        %673 = vmatprep.mubr.bf16.mxu0 0
        %674 = vmatmul.mubr.bf16.gmra.mrb[0].mxu0 %v563
        %v675 = vpop.f32.mrb[0].mxu0
        %v676 = vadd.f32 0.0, %v675
        %v677 = vpop.f32.mrb[0].mxu0
        %v678 = vpop.f32.mrb[0].mxu0
        %v679 = vpop.f32.mrb[0].mxu0
        %680 = vmatprep.mubr.bf16.mxu0 0
        %681 = vmatmul.mubr.bf16.gmra.mrb[0].mxu0 %v566
        %v682 = vpop.f32.mrb[0].mxu0
        %v683 = vadd.f32 0.0, %v682
        %v684 = vpop.f32.mrb[0].mxu0
        %v685 = vpop.f32.mrb[0].mxu0
        %v686 = vadd.f32 0.0, %v685
        %v687 = vpop.f32.mrb[0].mxu0
        %688 = vmatprep.mubr.bf16.mxu0 0
        %689 = vmatmul.mubr.bf16.gmra.mrb[0].mxu0 %v569
        %v690 = vpop.f32.mrb[0].mxu0
        %v691 = vadd.f32 0.0, %v690
        %v692 = vpop.f32.mrb[0].mxu0
        %v693 = vpop.f32.mrb[0].mxu0
        %v694 = vadd.f32 0.0, %v693
        %v695 = vpop.f32.mrb[0].mxu0
        %696 = vmatprep.mubr.bf16.mxu0 0
        %697 = vmatmul.mubr.bf16.gmra.mrb[0].mxu0 %v572
        %v698 = vpop.f32.mrb[0].mxu0
        %v699 = vpop.f32.mrb[0].mxu0
        %v700 = vpop.f32.mrb[0].mxu0
        %v701 = vadd.f32 0.0, %v700
        %v702 = vpop.f32.mrb[0].mxu0
        %703 = vmatprep.mubr.bf16.mxu0 0
        %704 = vmatmul.mubr.bf16.gmra.mrb[0].mxu0 %v575
        %v705 = vpop.f32.mrb[0].mxu0
        %v706 = vadd.f32 0.0, %v705
        %v707 = vpop.f32.mrb[0].mxu0
        %v708 = vpop.f32.mrb[0].mxu0
        %v709 = vadd.f32 0.0, %v708
        %v710 = vpop.f32.mrb[0].mxu0
        %711 = vmatprep.mubr.bf16.mxu0 0
        %712 = vmatmul.mubr.bf16.gmra.mrb[0].mxu0 %v578
        %v713 = vpop.f32.mrb[0].mxu0
        %v714 = vadd.f32 0.0, %v713
        %v715 = vpop.f32.mrb[0].mxu0
        %v716 = vpop.f32.mrb[0].mxu0
        %v717 = vpop.f32.mrb[0].mxu0
        %718 = vmatprep.mubr.bf16.mxu0 0
        %719 = vmatmul.mubr.bf16.gmra.mrb[0].mxu0 %v581
        %v720 = vpop.f32.mrb[0].mxu0
        %v721 = vadd.f32 0.0, %v720
        %v722 = vpop.f32.mrb[0].mxu0
        %v723 = vpop.f32.mrb[0].mxu0
        %v724 = vadd.f32 0.0, %v723
        %v725 = vpop.f32.mrb[0].mxu0
        %726 = vmatprep.mubr.bf16.mxu0 0
        %727 = vmatmul.mubr.bf16.gmra.mrb[0].mxu0 %v584
        %v728 = vpop.f32.mrb[0].mxu0
        %v729 = vadd.f32 0.0, %v728
        %v730 = vpop.f32.mrb[0].mxu0
        %v731 = vpop.f32.mrb[0].mxu0
        %v732 = vadd.f32 0.0, %v731
        %v733 = vpop.f32.mrb[0].mxu0
        %734 = vmatprep.mubr.bf16.mxu0 0
        %735 = vmatmul.mubr.bf16.gmra.mrb[0].mxu0 %v587
        %v736 = vpop.f32.mrb[0].mxu0
        %v737 = vpop.f32.mrb[0].mxu0
        %v738 = vpop.f32.mrb[0].mxu0
        %v739 = vadd.f32 0.0, %v738
        %v740 = vpop.f32.mrb[0].mxu0
        %741 = vmatprep.mubr.bf16.mxu0 0
        %742 = vmatmul.mubr.bf16.gmra.mrb[0].mxu0 %v590
        %v743 = vpop.f32.mrb[0].mxu0
        %v744 = vadd.f32 0.0, %v743
        %v745 = vpop.f32.mrb[0].mxu0
        %v746 = vpop.f32.mrb[0].mxu0
        %v747 = vadd.f32 0.0, %v746
        %v748 = vpop.f32.mrb[0].mxu0
        %749 = vmatprep.mubr.bf16.mxu0 0
        %750 = vmatmul.mubr.bf16.gmra.mrb[0].mxu0 %v593
        %v751 = vpop.f32.mrb[0].mxu0
        %v752 = vadd.f32 0.0, %v751
        %v753 = vpop.f32.mrb[0].mxu0
        %v754 = vpop.f32.mrb[0].mxu0
        %v755 = vpop.f32.mrb[0].mxu0
        %756 = vmatprep.mubr.bf16.mxu0 0
        %757 = vmatmul.mubr.bf16.gmra.mrb[0].mxu0 %v596
        %v758 = vpop.f32.mrb[0].mxu0
        %v759 = vadd.f32 0.0, %v758
        %v760 = vpop.f32.mrb[0].mxu0
        %v761 = vpop.f32.mrb[0].mxu0
        %v762 = vadd.f32 0.0, %v761
        %v763 = vpop.f32.mrb[0].mxu0
        %764 = vmatprep.mubr.bf16.mxu0 0
        %765 = vmatmul.mubr.bf16.gmra.mrb[0].mxu0 %v599
        %v766 = vpop.f32.mrb[0].mxu0
        %v767 = vadd.f32 0.0, %v766
        %v768 = vpop.f32.mrb[0].mxu0
        %v769 = vpop.f32.mrb[0].mxu0
        %v770 = vadd.f32 0.0, %v769
        %v771 = vpop.f32.mrb[0].mxu0
        %772 = vmatprep.mubr.bf16.mxu0 0
        %773 = vmatmul.mubr.bf16.gmra.mrb[0].mxu0 %v602
        %v774 = vpop.f32.mrb[0].mxu0
        %v775 = vpop.f32.mrb[0].mxu0
        %v776 = vpop.f32.mrb[0].mxu0
        %v777 = vadd.f32 0.0, %v776
        %v778 = vpop.f32.mrb[0].mxu0
        %779 = vmatprep.mubr.bf16.mxu0 0
        %780 = vmatmul.mubr.bf16.gmra.mrb[0].mxu0 %v605
        %v781 = vpop.f32.mrb[0].mxu0
        %v782 = vadd.f32 0.0, %v781
        %v783 = vpop.f32.mrb[0].mxu0
        %v784 = vpop.f32.mrb[0].mxu0
        %v785 = vadd.f32 0.0, %v784
        %v786 = vpop.f32.mrb[0].mxu0
        %787 = vmatprep.mubr.bf16.mxu0 0
        %788 = vmatmul.mubr.bf16.gmra.mrb[0].mxu0 %v608
        %v789 = vpop.f32.mrb[0].mxu0
        %v790 = vadd.f32 0.0, %v789
        %v791 = vpop.f32.mrb[0].mxu0
        %v792 = vpop.f32.mrb[0].mxu0
        %v793 = vpop.f32.mrb[0].mxu0
        %794 = vdwg.mxu0
        %v803 = vunpack.c.l.b16 %v239
        %v804 = vunpack.c.l.b16 %v240
        %v805 = vunpack.c.l.b16 %v241
        %v806 = vunpack.c.l.b16 %v242
        %v807 = vunpack.c.l.b16 %v243
        %v808 = vunpack.c.l.b16 %v244
        %v809 = vunpack.c.l.b16 %v245
        %v810 = vunpack.c.l.b16 %v246
        %v811 = vpack.c.b16 %v804, %v803
        %v812 = vpack.c.b16 %v806, %v805
        %v813 = vpack.c.b16 %v808, %v807
        %v814 = vpack.c.b16 %v810, %v809
        %v819 = vsel %vm549, %v339, 0
        %v821 = vsel %vm549, %v340, 0
        %v823 = vsel %vm549, %v341, 0
        %v825 = vsel %vm549, %v342, 0
        %v827 = vsel %vm549, %v343, 0
        %v829 = vsel %vm549, %v344, 0
        %v831 = vsel %vm549, %v345, 0
        %v833 = vsel %vm549, %v346, 0
        %v835 = vsel %vm549, %v347, 0
        %v837 = vsel %vm549, %v348, 0
        %v839 = vsel %vm549, %v349, 0
        %v841 = vsel %vm549, %v350, 0
        %v843 = vsel %vm549, %v351, 0
        %v845 = vsel %vm549, %v352, 0
        %v847 = vsel %vm549, %v353, 0
        %v849 = vsel %vm549, %v354, 0
        %v851 = vsel %vm549, %v355, 0
        %v853 = vsel %vm549, %v356, 0
        %v855 = vsel %vm549, %v357, 0
        %v857 = vsel %vm549, %v358, 0
        %859 = vmatprep.subr.bf16.mxu0 0
        %860 = vmatpush1.bf16.msra.mxu0 %v811
        %861 = vmatprep.subr.bf16.mxu0 0
        %862 = vmatpush1.bf16.msra.mxu0 %v812
        %863 = vmatprep.subr.bf16.mxu0 0
        %864 = vmatpush1.bf16.msra.mxu0 %v813
        %865 = vmatprep.subr.bf16.mxu0 0
        %866 = vmatpush1.bf16.msra.mxu0 %v814
        %867 = vmatprep.subr.bf16.mxu0 0
        %868 = vmatpush1.bf16.msra.mxu0 0
        %869 = vmatprep.subr.bf16.mxu0 0
        %870 = vmatpush1.bf16.msra.mxu0 0
        %871 = vmatprep.subr.bf16.mxu0 0
        %872 = vmatpush1.bf16.msra.mxu0 0
        %873 = vmatprep.subr.bf16.mxu0 0
        %874 = vmatpush1.bf16.msra.mxu0 0
        %875 = vmatprep.subr.bf16.mxu0 0
        %876 = vmatpush1.bf16.msra.mxu0 0
        %877 = vmatprep.subr.bf16.mxu0 0
        %878 = vmatpush1.bf16.msra.mxu0 0
        %879 = vmatprep.subr.bf16.mxu0 0
        %880 = vmatpush1.bf16.msra.mxu0 0
        %881 = vmatprep.subr.bf16.mxu0 0
        %882 = vmatpush1.bf16.msra.mxu0 0
        %883 = vmatprep.subr.bf16.mxu0 0
        %884 = vmatpush1.bf16.msra.mxu0 0
        %885 = vmatprep.subr.bf16.mxu0 0
        %886 = vmatpush1.bf16.msra.mxu0 0
        %887 = vmatprep.subr.bf16.mxu0 0
        %888 = vmatpush1.bf16.msra.mxu0 0
        %889 = vmatprep.subr.bf16.mxu0 0
        %890 = vmatpush1.bf16.msra.mxu0 0
        %891 = vmatprep.mubr.bf16.mxu0 0
        %892 = vmatmul.mubr.bf16.gmra.mrb[0].mxu0 %v819
        %v893 = vpop.f32.mrb[0].mxu0
        %v894 = vadd.f32 %v645, %v893
        %v895 = vpop.f32.mrb[0].mxu0
        %v896 = vpop.f32.mrb[0].mxu0
        %v897 = vadd.f32 %v648, %v896
        %v898 = vpop.f32.mrb[0].mxu0
        %899 = vmatprep.mubr.bf16.mxu0 0
        %900 = vmatmul.mubr.bf16.gmra.mrb[0].mxu0 %v821
        %v901 = vpop.f32.mrb[0].mxu0
        %v902 = vadd.f32 %v653, %v901
        %v903 = vpop.f32.mrb[0].mxu0
        %v904 = vpop.f32.mrb[0].mxu0
        %v905 = vadd.f32 %v656, %v904
        %v906 = vpop.f32.mrb[0].mxu0
        %907 = vmatprep.mubr.bf16.mxu0 0
        %908 = vmatmul.mubr.bf16.gmra.mrb[0].mxu0 %v823
        %v909 = vpop.f32.mrb[0].mxu0
        %v910 = vpop.f32.mrb[0].mxu0
        %v911 = vpop.f32.mrb[0].mxu0
        %v912 = vadd.f32 %v663, %v911
        %v913 = vpop.f32.mrb[0].mxu0
        %914 = vmatprep.mubr.bf16.mxu0 0
        %915 = vmatmul.mubr.bf16.gmra.mrb[0].mxu0 %v825
        %v916 = vpop.f32.mrb[0].mxu0
        %v917 = vadd.f32 %v668, %v916
        %v918 = vpop.f32.mrb[0].mxu0
        %v919 = vpop.f32.mrb[0].mxu0
        %v920 = vadd.f32 %v671, %v919
        %v921 = vpop.f32.mrb[0].mxu0
        %922 = vmatprep.mubr.bf16.mxu0 0
        %923 = vmatmul.mubr.bf16.gmra.mrb[0].mxu0 %v827
        %v924 = vpop.f32.mrb[0].mxu0
        %v925 = vadd.f32 %v676, %v924
        %v926 = vpop.f32.mrb[0].mxu0
        %v927 = vpop.f32.mrb[0].mxu0
        %v928 = vpop.f32.mrb[0].mxu0
        %929 = vmatprep.mubr.bf16.mxu0 0
        %930 = vmatmul.mubr.bf16.gmra.mrb[0].mxu0 %v829
        %v931 = vpop.f32.mrb[0].mxu0
        %v932 = vadd.f32 %v683, %v931
        %v933 = vpop.f32.mrb[0].mxu0
        %v934 = vpop.f32.mrb[0].mxu0
        %v935 = vadd.f32 %v686, %v934
        %v936 = vpop.f32.mrb[0].mxu0
        %937 = vmatprep.mubr.bf16.mxu0 0
        %938 = vmatmul.mubr.bf16.gmra.mrb[0].mxu0 %v831
        %v939 = vpop.f32.mrb[0].mxu0
        %v940 = vadd.f32 %v691, %v939
        %v941 = vpop.f32.mrb[0].mxu0
        %v942 = vpop.f32.mrb[0].mxu0
        %v943 = vadd.f32 %v694, %v942
        %v944 = vpop.f32.mrb[0].mxu0
        %945 = vmatprep.mubr.bf16.mxu0 0
        %946 = vmatmul.mubr.bf16.gmra.mrb[0].mxu0 %v833
        %v947 = vpop.f32.mrb[0].mxu0
        %v948 = vpop.f32.mrb[0].mxu0
        %v949 = vpop.f32.mrb[0].mxu0
        %v950 = vadd.f32 %v701, %v949
        %v951 = vpop.f32.mrb[0].mxu0
        %952 = vmatprep.mubr.bf16.mxu0 0
        %953 = vmatmul.mubr.bf16.gmra.mrb[0].mxu0 %v835
        %v954 = vpop.f32.mrb[0].mxu0
        %v955 = vadd.f32 %v706, %v954
        %v956 = vpop.f32.mrb[0].mxu0
        %v957 = vpop.f32.mrb[0].mxu0
        %v958 = vadd.f32 %v709, %v957
        %v959 = vpop.f32.mrb[0].mxu0
        %960 = vmatprep.mubr.bf16.mxu0 0
        %961 = vmatmul.mubr.bf16.gmra.mrb[0].mxu0 %v837
        %v962 = vpop.f32.mrb[0].mxu0
        %v963 = vadd.f32 %v714, %v962
        %v964 = vpop.f32.mrb[0].mxu0
        %v965 = vpop.f32.mrb[0].mxu0
        %v966 = vpop.f32.mrb[0].mxu0
        %967 = vmatprep.mubr.bf16.mxu0 0
        %968 = vmatmul.mubr.bf16.gmra.mrb[0].mxu0 %v839
        %v969 = vpop.f32.mrb[0].mxu0
        %v970 = vadd.f32 %v721, %v969
        %v971 = vpop.f32.mrb[0].mxu0
        %v972 = vpop.f32.mrb[0].mxu0
        %v973 = vadd.f32 %v724, %v972
        %v974 = vpop.f32.mrb[0].mxu0
        %975 = vmatprep.mubr.bf16.mxu0 0
        %976 = vmatmul.mubr.bf16.gmra.mrb[0].mxu0 %v841
        %v977 = vpop.f32.mrb[0].mxu0
        %v978 = vadd.f32 %v729, %v977
        %v979 = vpop.f32.mrb[0].mxu0
        %v980 = vpop.f32.mrb[0].mxu0
        %v981 = vadd.f32 %v732, %v980
        %v982 = vpop.f32.mrb[0].mxu0
        %983 = vmatprep.mubr.bf16.mxu0 0
        %984 = vmatmul.mubr.bf16.gmra.mrb[0].mxu0 %v843
        %v985 = vpop.f32.mrb[0].mxu0
        %v986 = vpop.f32.mrb[0].mxu0
        %v987 = vpop.f32.mrb[0].mxu0
        %v988 = vadd.f32 %v739, %v987
        %v989 = vpop.f32.mrb[0].mxu0
        %990 = vmatprep.mubr.bf16.mxu0 0
        %991 = vmatmul.mubr.bf16.gmra.mrb[0].mxu0 %v845
        %v992 = vpop.f32.mrb[0].mxu0
        %v993 = vadd.f32 %v744, %v992
        %v994 = vpop.f32.mrb[0].mxu0
        %v995 = vpop.f32.mrb[0].mxu0
        %v996 = vadd.f32 %v747, %v995
        %v997 = vpop.f32.mrb[0].mxu0
        %998 = vmatprep.mubr.bf16.mxu0 0
        %999 = vmatmul.mubr.bf16.gmra.mrb[0].mxu0 %v847
        %v1000 = vpop.f32.mrb[0].mxu0
        %v1001 = vadd.f32 %v752, %v1000
        %v1002 = vpop.f32.mrb[0].mxu0
        %v1003 = vpop.f32.mrb[0].mxu0
        %v1004 = vpop.f32.mrb[0].mxu0
        %1005 = vmatprep.mubr.bf16.mxu0 0
        %1006 = vmatmul.mubr.bf16.gmra.mrb[0].mxu0 %v849
        %v1007 = vpop.f32.mrb[0].mxu0
        %v1008 = vadd.f32 %v759, %v1007
        %v1009 = vpop.f32.mrb[0].mxu0
        %v1010 = vpop.f32.mrb[0].mxu0
        %v1011 = vadd.f32 %v762, %v1010
        %v1012 = vpop.f32.mrb[0].mxu0
        %1013 = vmatprep.mubr.bf16.mxu0 0
        %1014 = vmatmul.mubr.bf16.gmra.mrb[0].mxu0 %v851
        %v1015 = vpop.f32.mrb[0].mxu0
        %v1016 = vadd.f32 %v767, %v1015
        %v1017 = vpop.f32.mrb[0].mxu0
        %v1018 = vpop.f32.mrb[0].mxu0
        %v1019 = vadd.f32 %v770, %v1018
        %v1020 = vpop.f32.mrb[0].mxu0
        %1021 = vmatprep.mubr.bf16.mxu0 0
        %1022 = vmatmul.mubr.bf16.gmra.mrb[0].mxu0 %v853
        %v1023 = vpop.f32.mrb[0].mxu0
        %v1024 = vpop.f32.mrb[0].mxu0
        %v1025 = vpop.f32.mrb[0].mxu0
        %v1026 = vadd.f32 %v777, %v1025
        %v1027 = vpop.f32.mrb[0].mxu0
        %1028 = vmatprep.mubr.bf16.mxu0 0
        %1029 = vmatmul.mubr.bf16.gmra.mrb[0].mxu0 %v855
        %v1030 = vpop.f32.mrb[0].mxu0
        %v1031 = vadd.f32 %v782, %v1030
        %v1032 = vpop.f32.mrb[0].mxu0
        %v1033 = vpop.f32.mrb[0].mxu0
        %v1034 = vadd.f32 %v785, %v1033
        %v1035 = vpop.f32.mrb[0].mxu0
        %1036 = vmatprep.mubr.bf16.mxu0 0
        %1037 = vmatmul.mubr.bf16.gmra.mrb[0].mxu0 %v857
        %v1038 = vpop.f32.mrb[0].mxu0
        %v1039 = vadd.f32 %v790, %v1038
        %v1040 = vpop.f32.mrb[0].mxu0
        %v1041 = vpop.f32.mrb[0].mxu0
        %v1042 = vpop.f32.mrb[0].mxu0
        %1043 = vdwg.mxu0
        %v1044 = vld [vmem:[%s196] sm:$0xe]
        %s1045 = scalar_lea.vmem %s1, 64
        %v1046 = vld [vmem:[%s1045] sm:$0xf]
        %v1047 = vld [vmem:[%s1045 + $0x4] sm:$0xf]
        %v1048 = vld [vmem:[%s1045 + $0x8] sm:$0xf]
        %v1049 = vld [vmem:[%s1045 + $0xc] sm:$0xf]
        %v1050 = vld [vmem:[%s1045 + $0x10] sm:$0xf]
        %v1051 = vld [vmem:[%s1045 + $0x14] sm:$0xf]
        %v1052 = vld [vmem:[%s1045 + $0x18] sm:$0xf]
        %v1053 = vld [vmem:[%s1045 + $0x1c] sm:$0xf]
        %v1055 = vunpack.c.l.b16 %v1044
        %v1056 = vpack.c.b16 %v299, %v1055
        %vm1057 = vcmask 1046528
        %v1058 = vrot.slane %v1056, 1
        %v1059 = vrot.slane %v340, 1
        %v1060 = vsel %vm1057, %v1058, %v1059
        %v1061 = vrot.slane %v341, 1
        %v1062 = vsel %vm1057, %v1059, %v1061
        %v1063 = vrot.slane %v342, 1
        %v1064 = vsel %vm1057, %v1061, %v1063
        %v1065 = vrot.slane %v343, 1
        %v1066 = vsel %vm1057, %v1063, %v1065
        %v1067 = vrot.slane %v344, 1
        %v1068 = vsel %vm1057, %v1065, %v1067
        %v1069 = vrot.slane %v345, 1
        %v1070 = vsel %vm1057, %v1067, %v1069
        %v1071 = vrot.slane %v346, 1
        %v1072 = vsel %vm1057, %v1069, %v1071
        %v1073 = vrot.slane %v347, 1
        %v1074 = vsel %vm1057, %v1071, %v1073
        %v1075 = vrot.slane %v348, 1
        %v1076 = vsel %vm1057, %v1073, %v1075
        %v1077 = vrot.slane %v349, 1
        %v1078 = vsel %vm1057, %v1075, %v1077
        %v1079 = vrot.slane %v350, 1
        %v1080 = vsel %vm1057, %v1077, %v1079
        %v1081 = vrot.slane %v351, 1
        %v1082 = vsel %vm1057, %v1079, %v1081
        %v1083 = vrot.slane %v352, 1
        %v1084 = vsel %vm1057, %v1081, %v1083
        %v1085 = vrot.slane %v353, 1
        %v1086 = vsel %vm1057, %v1083, %v1085
        %v1087 = vrot.slane %v354, 1
        %v1088 = vsel %vm1057, %v1085, %v1087
        %v1089 = vrot.slane %v355, 1
        %v1090 = vsel %vm1057, %v1087, %v1089
        %v1091 = vrot.slane %v356, 1
        %v1092 = vsel %vm1057, %v1089, %v1091
        %v1093 = vrot.slane %v357, 1
        %v1094 = vsel %vm1057, %v1091, %v1093
        %v1095 = vrot.slane %v358, 1
        %v1096 = vsel %vm1057, %v1093, %v1095
        %v1097 = vrot.slane %v359, 1
        %v1098 = vsel %vm1057, %v1095, %v1097
        %v1107 = vunpack.c.l.b16 %v1046
        %v1108 = vunpack.c.l.b16 %v1047
        %v1109 = vunpack.c.l.b16 %v1048
        %v1110 = vunpack.c.l.b16 %v1049
        %v1111 = vunpack.c.l.b16 %v1050
        %v1112 = vunpack.c.l.b16 %v1051
        %v1113 = vunpack.c.l.b16 %v1052
        %v1114 = vunpack.c.l.b16 %v1053
        %v1115 = vpack.c.b16 %v1108, %v1107
        %v1116 = vpack.c.b16 %v1110, %v1109
        %v1117 = vpack.c.b16 %v1112, %v1111
        %v1118 = vpack.c.b16 %v1114, %v1113
        %v1124 = vsel %vm549, %v1060, 0
        %v1127 = vsel %vm549, %v1062, 0
        %v1130 = vsel %vm549, %v1064, 0
        %v1133 = vsel %vm549, %v1066, 0
        %v1136 = vsel %vm549, %v1068, 0
        %v1139 = vsel %vm549, %v1070, 0
        %v1142 = vsel %vm549, %v1072, 0
        %v1145 = vsel %vm549, %v1074, 0
        %v1148 = vsel %vm549, %v1076, 0
        %v1151 = vsel %vm549, %v1078, 0
        %v1154 = vsel %vm549, %v1080, 0
        %v1157 = vsel %vm549, %v1082, 0
        %v1160 = vsel %vm549, %v1084, 0
        %v1163 = vsel %vm549, %v1086, 0
        %v1166 = vsel %vm549, %v1088, 0
        %v1169 = vsel %vm549, %v1090, 0
        %v1172 = vsel %vm549, %v1092, 0
        %v1175 = vsel %vm549, %v1094, 0
        %v1178 = vsel %vm549, %v1096, 0
        %v1181 = vsel %vm549, %v1098, 0
        %1183 = vmatprep.subr.bf16.mxu0 0
        %1184 = vmatpush1.bf16.msra.mxu0 %v1115
        %1185 = vmatprep.subr.bf16.mxu0 0
        %1186 = vmatpush1.bf16.msra.mxu0 %v1116
        %1187 = vmatprep.subr.bf16.mxu0 0
        %1188 = vmatpush1.bf16.msra.mxu0 %v1117
        %1189 = vmatprep.subr.bf16.mxu0 0
        %1190 = vmatpush1.bf16.msra.mxu0 %v1118
        %1191 = vmatprep.subr.bf16.mxu0 0
        %1192 = vmatpush1.bf16.msra.mxu0 0
        %1193 = vmatprep.subr.bf16.mxu0 0
        %1194 = vmatpush1.bf16.msra.mxu0 0
        %1195 = vmatprep.subr.bf16.mxu0 0
        %1196 = vmatpush1.bf16.msra.mxu0 0
        %1197 = vmatprep.subr.bf16.mxu0 0
        %1198 = vmatpush1.bf16.msra.mxu0 0
        %1199 = vmatprep.subr.bf16.mxu0 0
        %1200 = vmatpush1.bf16.msra.mxu0 0
        %1201 = vmatprep.subr.bf16.mxu0 0
        %1202 = vmatpush1.bf16.msra.mxu0 0
        %1203 = vmatprep.subr.bf16.mxu0 0
        %1204 = vmatpush1.bf16.msra.mxu0 0
        %1205 = vmatprep.subr.bf16.mxu0 0
        %1206 = vmatpush1.bf16.msra.mxu0 0
        %1207 = vmatprep.subr.bf16.mxu0 0
        %1208 = vmatpush1.bf16.msra.mxu0 0
        %1209 = vmatprep.subr.bf16.mxu0 0
        %1210 = vmatpush1.bf16.msra.mxu0 0
        %1211 = vmatprep.subr.bf16.mxu0 0
        %1212 = vmatpush1.bf16.msra.mxu0 0
        %1213 = vmatprep.subr.bf16.mxu0 0
        %1214 = vmatpush1.bf16.msra.mxu0 0
        %1215 = vmatprep.mubr.bf16.mxu0 0
        %1216 = vmatmul.mubr.bf16.gmra.mrb[0].mxu0 %v1124
        %v1217 = vpop.f32.mrb[0].mxu0
        %v1218 = vadd.f32 0.0, %v1217
        %v1219 = vpop.f32.mrb[0].mxu0
        %v1220 = vpop.f32.mrb[0].mxu0
        %v1221 = vadd.f32 0.0, %v1220
        %v1222 = vpop.f32.mrb[0].mxu0
        %1223 = vmatprep.mubr.bf16.mxu0 0
        %1224 = vmatmul.mubr.bf16.gmra.mrb[0].mxu0 %v1127
        %v1225 = vpop.f32.mrb[0].mxu0
        %v1226 = vadd.f32 0.0, %v1225
        %v1227 = vpop.f32.mrb[0].mxu0
        %v1228 = vpop.f32.mrb[0].mxu0
        %v1229 = vadd.f32 0.0, %v1228
        %v1230 = vpop.f32.mrb[0].mxu0
        %1231 = vmatprep.mubr.bf16.mxu0 0
        %1232 = vmatmul.mubr.bf16.gmra.mrb[0].mxu0 %v1130
        %v1233 = vpop.f32.mrb[0].mxu0
        %v1234 = vpop.f32.mrb[0].mxu0
        %v1235 = vpop.f32.mrb[0].mxu0
        %v1236 = vadd.f32 0.0, %v1235
        %v1237 = vpop.f32.mrb[0].mxu0
        %1238 = vmatprep.mubr.bf16.mxu0 0
        %1239 = vmatmul.mubr.bf16.gmra.mrb[0].mxu0 %v1133
        %v1240 = vpop.f32.mrb[0].mxu0
        %v1241 = vadd.f32 0.0, %v1240
        %v1242 = vpop.f32.mrb[0].mxu0
        %v1243 = vpop.f32.mrb[0].mxu0
        %v1244 = vadd.f32 0.0, %v1243
        %v1245 = vpop.f32.mrb[0].mxu0
        %1246 = vmatprep.mubr.bf16.mxu0 0
        %1247 = vmatmul.mubr.bf16.gmra.mrb[0].mxu0 %v1136
        %v1248 = vpop.f32.mrb[0].mxu0
        %v1249 = vadd.f32 0.0, %v1248
        %v1250 = vpop.f32.mrb[0].mxu0
        %v1251 = vpop.f32.mrb[0].mxu0
        %v1252 = vpop.f32.mrb[0].mxu0
        %1253 = vmatprep.mubr.bf16.mxu0 0
        %1254 = vmatmul.mubr.bf16.gmra.mrb[0].mxu0 %v1139
        %v1255 = vpop.f32.mrb[0].mxu0
        %v1256 = vadd.f32 0.0, %v1255
        %v1257 = vpop.f32.mrb[0].mxu0
        %v1258 = vpop.f32.mrb[0].mxu0
        %v1259 = vadd.f32 0.0, %v1258
        %v1260 = vpop.f32.mrb[0].mxu0
        %1261 = vmatprep.mubr.bf16.mxu0 0
        %1262 = vmatmul.mubr.bf16.gmra.mrb[0].mxu0 %v1142
        %v1263 = vpop.f32.mrb[0].mxu0
        %v1264 = vadd.f32 0.0, %v1263
        %v1265 = vpop.f32.mrb[0].mxu0
        %v1266 = vpop.f32.mrb[0].mxu0
        %v1267 = vadd.f32 0.0, %v1266
        %v1268 = vpop.f32.mrb[0].mxu0
        %1269 = vmatprep.mubr.bf16.mxu0 0
        %1270 = vmatmul.mubr.bf16.gmra.mrb[0].mxu0 %v1145
        %v1271 = vpop.f32.mrb[0].mxu0
        %v1272 = vpop.f32.mrb[0].mxu0
        %v1273 = vpop.f32.mrb[0].mxu0
        %v1274 = vadd.f32 0.0, %v1273
        %v1275 = vpop.f32.mrb[0].mxu0
        %1276 = vmatprep.mubr.bf16.mxu0 0
        %1277 = vmatmul.mubr.bf16.gmra.mrb[0].mxu0 %v1148
        %v1278 = vpop.f32.mrb[0].mxu0
        %v1279 = vadd.f32 0.0, %v1278
        %v1280 = vpop.f32.mrb[0].mxu0
        %v1281 = vpop.f32.mrb[0].mxu0
        %v1282 = vadd.f32 0.0, %v1281
        %v1283 = vpop.f32.mrb[0].mxu0
        %1284 = vmatprep.mubr.bf16.mxu0 0
        %1285 = vmatmul.mubr.bf16.gmra.mrb[0].mxu0 %v1151
        %v1286 = vpop.f32.mrb[0].mxu0
        %v1287 = vadd.f32 0.0, %v1286
        %v1288 = vpop.f32.mrb[0].mxu0
        %v1289 = vpop.f32.mrb[0].mxu0
        %v1290 = vpop.f32.mrb[0].mxu0
        %1291 = vmatprep.mubr.bf16.mxu0 0
        %1292 = vmatmul.mubr.bf16.gmra.mrb[0].mxu0 %v1154
        %v1293 = vpop.f32.mrb[0].mxu0
        %v1294 = vadd.f32 0.0, %v1293
        %v1295 = vpop.f32.mrb[0].mxu0
        %v1296 = vpop.f32.mrb[0].mxu0
        %v1297 = vadd.f32 0.0, %v1296
        %v1298 = vpop.f32.mrb[0].mxu0
        %1299 = vmatprep.mubr.bf16.mxu0 0
        %1300 = vmatmul.mubr.bf16.gmra.mrb[0].mxu0 %v1157
        %v1301 = vpop.f32.mrb[0].mxu0
        %v1302 = vadd.f32 0.0, %v1301
        %v1303 = vpop.f32.mrb[0].mxu0
        %v1304 = vpop.f32.mrb[0].mxu0
        %v1305 = vadd.f32 0.0, %v1304
        %v1306 = vpop.f32.mrb[0].mxu0
        %1307 = vmatprep.mubr.bf16.mxu0 0
        %1308 = vmatmul.mubr.bf16.gmra.mrb[0].mxu0 %v1160
        %v1309 = vpop.f32.mrb[0].mxu0
        %v1310 = vpop.f32.mrb[0].mxu0
        %v1311 = vpop.f32.mrb[0].mxu0
        %v1312 = vadd.f32 0.0, %v1311
        %v1313 = vpop.f32.mrb[0].mxu0
        %1314 = vmatprep.mubr.bf16.mxu0 0
        %1315 = vmatmul.mubr.bf16.gmra.mrb[0].mxu0 %v1163
        %v1316 = vpop.f32.mrb[0].mxu0
        %v1317 = vadd.f32 0.0, %v1316
        %v1318 = vpop.f32.mrb[0].mxu0
        %v1319 = vpop.f32.mrb[0].mxu0
        %v1320 = vadd.f32 0.0, %v1319
        %v1321 = vpop.f32.mrb[0].mxu0
        %1322 = vmatprep.mubr.bf16.mxu0 0
        %1323 = vmatmul.mubr.bf16.gmra.mrb[0].mxu0 %v1166
        %v1324 = vpop.f32.mrb[0].mxu0
        %v1325 = vadd.f32 0.0, %v1324
        %v1326 = vpop.f32.mrb[0].mxu0
        %v1327 = vpop.f32.mrb[0].mxu0
        %v1328 = vpop.f32.mrb[0].mxu0
        %1329 = vmatprep.mubr.bf16.mxu0 0
        %1330 = vmatmul.mubr.bf16.gmra.mrb[0].mxu0 %v1169
        %v1331 = vpop.f32.mrb[0].mxu0
        %v1332 = vadd.f32 0.0, %v1331
        %v1333 = vpop.f32.mrb[0].mxu0
        %v1334 = vpop.f32.mrb[0].mxu0
        %v1335 = vadd.f32 0.0, %v1334
        %v1336 = vpop.f32.mrb[0].mxu0
        %1337 = vmatprep.mubr.bf16.mxu0 0
        %1338 = vmatmul.mubr.bf16.gmra.mrb[0].mxu0 %v1172
        %v1339 = vpop.f32.mrb[0].mxu0
        %v1340 = vadd.f32 0.0, %v1339
        %v1341 = vpop.f32.mrb[0].mxu0
        %v1342 = vpop.f32.mrb[0].mxu0
        %v1343 = vadd.f32 0.0, %v1342
        %v1344 = vpop.f32.mrb[0].mxu0
        %1345 = vmatprep.mubr.bf16.mxu0 0
        %1346 = vmatmul.mubr.bf16.gmra.mrb[0].mxu0 %v1175
        %v1347 = vpop.f32.mrb[0].mxu0
        %v1348 = vpop.f32.mrb[0].mxu0
        %v1349 = vpop.f32.mrb[0].mxu0
        %v1350 = vadd.f32 0.0, %v1349
        %v1351 = vpop.f32.mrb[0].mxu0
        %1352 = vmatprep.mubr.bf16.mxu0 0
        %1353 = vmatmul.mubr.bf16.gmra.mrb[0].mxu0 %v1178
        %v1354 = vpop.f32.mrb[0].mxu0
        %v1355 = vadd.f32 0.0, %v1354
        %v1356 = vpop.f32.mrb[0].mxu0
        %v1357 = vpop.f32.mrb[0].mxu0
        %v1358 = vadd.f32 0.0, %v1357
        %v1359 = vpop.f32.mrb[0].mxu0
        %1360 = vmatprep.mubr.bf16.mxu0 0
        %1361 = vmatmul.mubr.bf16.gmra.mrb[0].mxu0 %v1181
        %v1362 = vpop.f32.mrb[0].mxu0
        %v1363 = vadd.f32 0.0, %v1362
        %v1364 = vpop.f32.mrb[0].mxu0
        %v1365 = vpop.f32.mrb[0].mxu0
        %v1366 = vpop.f32.mrb[0].mxu0
        %1367 = vdwg.mxu0
        %v1368 = vadd.f32 %v894, %v1218
        %v1369 = vadd.f32 %v897, %v1221
        %v1370 = vadd.f32 %v902, %v1226
        %v1371 = vadd.f32 %v905, %v1229
        %v1372 = vadd.f32 %v912, %v1236
        %v1373 = vadd.f32 %v917, %v1241
        %v1374 = vadd.f32 %v920, %v1244
        %v1375 = vadd.f32 %v925, %v1249
        %v1376 = vadd.f32 %v932, %v1256
        %v1377 = vadd.f32 %v935, %v1259
        %v1378 = vadd.f32 %v940, %v1264
        %v1379 = vadd.f32 %v943, %v1267
        %v1380 = vadd.f32 %v950, %v1274
        %v1381 = vadd.f32 %v955, %v1279
        %v1382 = vadd.f32 %v958, %v1282
        %v1383 = vadd.f32 %v963, %v1287
        %v1384 = vadd.f32 %v970, %v1294
        %v1385 = vadd.f32 %v973, %v1297
        %v1386 = vadd.f32 %v978, %v1302
        %v1387 = vadd.f32 %v981, %v1305
        %v1388 = vadd.f32 %v988, %v1312
        %v1389 = vadd.f32 %v993, %v1317
        %v1390 = vadd.f32 %v996, %v1320
        %v1391 = vadd.f32 %v1001, %v1325
        %v1392 = vadd.f32 %v1008, %v1332
        %v1393 = vadd.f32 %v1011, %v1335
        %v1394 = vadd.f32 %v1016, %v1340
        %v1395 = vadd.f32 %v1019, %v1343
        %v1396 = vadd.f32 %v1026, %v1350
        %v1397 = vadd.f32 %v1031, %v1355
        %v1398 = vadd.f32 %v1034, %v1358
        %v1399 = vadd.f32 %v1039, %v1363
        %v1400 = vld [vmem:[%s196 + $0x14] sm:$0xf]
        %v1401 = vld [vmem:[%s196 + $0x18] sm:$0xf]
        %v1402 = vld [vmem:[%s196 + $0x1c] sm:$0xf]
        %v1403 = vld [vmem:[%s196 + $0x20] sm:$0xf]
        %v1404 = vld [vmem:[%s196 + $0x24] sm:$0xf]
        %v1405 = vld [vmem:[%s196 + $0x28] sm:$0xf]
        %v1406 = vld [vmem:[%s196 + $0x2c] sm:$0xf]
        %v1407 = vld [vmem:[%s196 + $0x30] sm:$0xf]
        %v1408 = vld [vmem:[%s196 + $0x34] sm:$0xf]
        %v1409 = vld [vmem:[%s196 + $0x38] sm:$0xf]
        %v1410 = vld [vmem:[%s196 + $0x3c] sm:$0xf]
        %v1411 = vld [vmem:[%s196 + $0x40] sm:$0xf]
        %v1412 = vld [vmem:[%s196 + $0x44] sm:$0xf]
        %v1413 = vld [vmem:[%s196 + $0x48] sm:$0xf]
        %v1414 = vld [vmem:[%s196 + $0x4c] sm:$0xf]
        %v1415 = vld [vmem:[%s196 + $0x50] sm:$0xf]
        %v1416 = vld [vmem:[%s196 + $0x54] sm:$0xf]
        %v1417 = vld [vmem:[%s196 + $0x58] sm:$0xf]
        %v1418 = vld [vmem:[%s196 + $0x5c] sm:$0xf]
        %v1419 = vld [vmem:[%s196 + $0x60] sm:$0xf]
        %v1420 = vld [vmem:[%s196 + $0x64] sm:$0xf]
        %v1421 = vld [vmem:[%s196 + $0x68] sm:$0xf]
        %v1422 = vld [vmem:[%s196 + $0x6c] sm:$0xf]
        %v1423 = vld [vmem:[%s196 + $0x70] sm:$0xf]
        %v1424 = vld [vmem:[%s196 + $0x74] sm:$0xf]
        %v1425 = vld [vmem:[%s196 + $0x78] sm:$0xf]
        %v1426 = vld [vmem:[%s196 + $0x7c] sm:$0xf]
        %v1427 = vld [vmem:[%s196 + $0x80] sm:$0xf]
        %v1428 = vld [vmem:[%s196 + $0x84] sm:$0xf]
        %v1429 = vld [vmem:[%s196 + $0x88] sm:$0xf]
        %v1430 = vld [vmem:[%s196 + $0x8c] sm:$0xf]
        %v1431 = vld [vmem:[%s196 + $0x90] sm:$0xf]
        %v1432 = vld [vmem:[%s196 + $0x94] sm:$0xf]
        %v1433 = vld [vmem:[%s196 + $0x98] sm:$0xf]
        %v1434 = vld [vmem:[%s196 + $0x9c] sm:$0xf]
        %v1435 = vld [vmem:[%s196 + $0xa0] sm:$0xf]
        %v1436 = vld [vmem:[%s196 + $0xa4] sm:$0xf]
        %v1437 = vld [vmem:[%s196 + $0xa8] sm:$0xf]
        %v1438 = vld [vmem:[%s196 + $0xac] sm:$0xf]
        %v1439 = vld [vmem:[%s196 + $0xb0] sm:$0xf]
        %s1440 = scalar_lea.vmem %s1, 96
        %v1441 = vld [vmem:[%s1440] sm:$0xf]
        %v1442 = vld [vmem:[%s1440 + $0x4] sm:$0xf]
        %v1443 = vld [vmem:[%s1440 + $0x8] sm:$0xf]
        %v1444 = vld [vmem:[%s1440 + $0xc] sm:$0xf]
        %v1445 = vld [vmem:[%s1440 + $0x10] sm:$0xf]
        %v1446 = vld [vmem:[%s1440 + $0x14] sm:$0xf]
        %v1447 = vld [vmem:[%s1440 + $0x18] sm:$0xf]
        %v1448 = vld [vmem:[%s1440 + $0x1c] sm:$0xf]
        %v1489 = vunpack.c.l.b16 %v1400
        %v1490 = vunpack.c.l.b16 %v1401
        %v1491 = vunpack.c.l.b16 %v1402
        %v1492 = vunpack.c.l.b16 %v1403
        %v1493 = vunpack.c.l.b16 %v1404
        %v1494 = vunpack.c.l.b16 %v1405
        %v1495 = vunpack.c.l.b16 %v1406
        %v1496 = vunpack.c.l.b16 %v1407
        %v1497 = vunpack.c.l.b16 %v1408
        %v1498 = vunpack.c.l.b16 %v1409
        %v1499 = vunpack.c.l.b16 %v1410
        %v1500 = vunpack.c.l.b16 %v1411
        %v1501 = vunpack.c.l.b16 %v1412
        %v1502 = vunpack.c.l.b16 %v1413
        %v1503 = vunpack.c.l.b16 %v1414
        %v1504 = vunpack.c.l.b16 %v1415
        %v1505 = vunpack.c.l.b16 %v1416
        %v1506 = vunpack.c.l.b16 %v1417
        %v1507 = vunpack.c.l.b16 %v1418
        %v1508 = vunpack.c.l.b16 %v1419
        %v1509 = vunpack.c.l.b16 %v1420
        %v1510 = vunpack.c.l.b16 %v1421
        %v1511 = vunpack.c.l.b16 %v1422
        %v1512 = vunpack.c.l.b16 %v1423
        %v1513 = vunpack.c.l.b16 %v1424
        %v1514 = vunpack.c.l.b16 %v1425
        %v1515 = vunpack.c.l.b16 %v1426
        %v1516 = vunpack.c.l.b16 %v1427
        %v1517 = vunpack.c.l.b16 %v1428
        %v1518 = vunpack.c.l.b16 %v1429
        %v1519 = vunpack.c.l.b16 %v1430
        %v1520 = vunpack.c.l.b16 %v1431
        %v1521 = vunpack.c.l.b16 %v1432
        %v1522 = vunpack.c.l.b16 %v1433
        %v1523 = vunpack.c.l.b16 %v1434
        %v1524 = vunpack.c.l.b16 %v1435
        %v1525 = vunpack.c.l.b16 %v1436
        %v1526 = vunpack.c.l.b16 %v1437
        %v1527 = vunpack.c.l.b16 %v1438
        %v1528 = vunpack.c.l.b16 %v1439
        %v1529 = vpack.c.b16 %v1490, %v1489
        %v1530 = vpack.c.b16 %v1492, %v1491
        %v1531 = vpack.c.b16 %v1494, %v1493
        %v1532 = vpack.c.b16 %v1496, %v1495
        %v1533 = vpack.c.b16 %v1498, %v1497
        %v1534 = vpack.c.b16 %v1500, %v1499
        %v1535 = vpack.c.b16 %v1502, %v1501
        %v1536 = vpack.c.b16 %v1504, %v1503
        %v1537 = vpack.c.b16 %v1506, %v1505
        %v1538 = vpack.c.b16 %v1508, %v1507
        %v1539 = vpack.c.b16 %v1510, %v1509
        %v1540 = vpack.c.b16 %v1512, %v1511
        %v1541 = vpack.c.b16 %v1514, %v1513
        %v1542 = vpack.c.b16 %v1516, %v1515
        %v1543 = vpack.c.b16 %v1518, %v1517
        %v1544 = vpack.c.b16 %v1520, %v1519
        %v1545 = vpack.c.b16 %v1522, %v1521
        %v1546 = vpack.c.b16 %v1524, %v1523
        %v1547 = vpack.c.b16 %v1526, %v1525
        %v1548 = vpack.c.b16 %v1528, %v1527
        %v1557 = vunpack.c.l.b16 %v1441
        %v1558 = vunpack.c.l.b16 %v1442
        %v1559 = vunpack.c.l.b16 %v1443
        %v1560 = vunpack.c.l.b16 %v1444
        %v1561 = vunpack.c.l.b16 %v1445
        %v1562 = vunpack.c.l.b16 %v1446
        %v1563 = vunpack.c.l.b16 %v1447
        %v1564 = vunpack.c.l.b16 %v1448
        %v1565 = vpack.c.b16 %v1558, %v1557
        %v1566 = vpack.c.b16 %v1560, %v1559
        %v1567 = vpack.c.b16 %v1562, %v1561
        %v1568 = vpack.c.b16 %v1564, %v1563
        %v1574 = vsel %vm549, %v1529, 0
        %v1577 = vsel %vm549, %v1530, 0
        %v1580 = vsel %vm549, %v1531, 0
        %v1583 = vsel %vm549, %v1532, 0
        %v1586 = vsel %vm549, %v1533, 0
        %v1589 = vsel %vm549, %v1534, 0
        %v1592 = vsel %vm549, %v1535, 0
        %v1595 = vsel %vm549, %v1536, 0
        %v1598 = vsel %vm549, %v1537, 0
        %v1601 = vsel %vm549, %v1538, 0
        %v1604 = vsel %vm549, %v1539, 0
        %v1607 = vsel %vm549, %v1540, 0
        %v1610 = vsel %vm549, %v1541, 0
        %v1613 = vsel %vm549, %v1542, 0
        %v1616 = vsel %vm549, %v1543, 0
        %v1619 = vsel %vm549, %v1544, 0
        %v1622 = vsel %vm549, %v1545, 0
        %v1625 = vsel %vm549, %v1546, 0
        %v1628 = vsel %vm549, %v1547, 0
        %v1631 = vsel %vm549, %v1548, 0
        %1633 = vmatprep.subr.bf16.mxu0 0
        %1634 = vmatpush1.bf16.msra.mxu0 %v1565
        %1635 = vmatprep.subr.bf16.mxu0 0
        %1636 = vmatpush1.bf16.msra.mxu0 %v1566
        %1637 = vmatprep.subr.bf16.mxu0 0
        %1638 = vmatpush1.bf16.msra.mxu0 %v1567
        %1639 = vmatprep.subr.bf16.mxu0 0
        %1640 = vmatpush1.bf16.msra.mxu0 %v1568
        %1641 = vmatprep.subr.bf16.mxu0 0
        %1642 = vmatpush1.bf16.msra.mxu0 0
        %1643 = vmatprep.subr.bf16.mxu0 0
        %1644 = vmatpush1.bf16.msra.mxu0 0
        %1645 = vmatprep.subr.bf16.mxu0 0
        %1646 = vmatpush1.bf16.msra.mxu0 0
        %1647 = vmatprep.subr.bf16.mxu0 0
        %1648 = vmatpush1.bf16.msra.mxu0 0
        %1649 = vmatprep.subr.bf16.mxu0 0
        %1650 = vmatpush1.bf16.msra.mxu0 0
        %1651 = vmatprep.subr.bf16.mxu0 0
        %1652 = vmatpush1.bf16.msra.mxu0 0
        %1653 = vmatprep.subr.bf16.mxu0 0
        %1654 = vmatpush1.bf16.msra.mxu0 0
        %1655 = vmatprep.subr.bf16.mxu0 0
        %1656 = vmatpush1.bf16.msra.mxu0 0
        %1657 = vmatprep.subr.bf16.mxu0 0
        %1658 = vmatpush1.bf16.msra.mxu0 0
        %1659 = vmatprep.subr.bf16.mxu0 0
        %1660 = vmatpush1.bf16.msra.mxu0 0
        %1661 = vmatprep.subr.bf16.mxu0 0
        %1662 = vmatpush1.bf16.msra.mxu0 0
        %1663 = vmatprep.subr.bf16.mxu0 0
        %1664 = vmatpush1.bf16.msra.mxu0 0
        %1665 = vmatprep.mubr.bf16.mxu0 0
        %1666 = vmatmul.mubr.bf16.gmra.mrb[0].mxu0 %v1574
        %v1667 = vpop.f32.mrb[0].mxu0
        %v1668 = vadd.f32 0.0, %v1667
        %v1669 = vpop.f32.mrb[0].mxu0
        %v1670 = vpop.f32.mrb[0].mxu0
        %v1671 = vadd.f32 0.0, %v1670
        %v1672 = vpop.f32.mrb[0].mxu0
        %1673 = vmatprep.mubr.bf16.mxu0 0
        %1674 = vmatmul.mubr.bf16.gmra.mrb[0].mxu0 %v1577
        %v1675 = vpop.f32.mrb[0].mxu0
        %v1676 = vadd.f32 0.0, %v1675
        %v1677 = vpop.f32.mrb[0].mxu0
        %v1678 = vpop.f32.mrb[0].mxu0
        %v1679 = vadd.f32 0.0, %v1678
        %v1680 = vpop.f32.mrb[0].mxu0
        %1681 = vmatprep.mubr.bf16.mxu0 0
        %1682 = vmatmul.mubr.bf16.gmra.mrb[0].mxu0 %v1580
        %v1683 = vpop.f32.mrb[0].mxu0
        %v1684 = vpop.f32.mrb[0].mxu0
        %v1685 = vpop.f32.mrb[0].mxu0
        %v1686 = vadd.f32 0.0, %v1685
        %v1687 = vpop.f32.mrb[0].mxu0
        %1688 = vmatprep.mubr.bf16.mxu0 0
        %1689 = vmatmul.mubr.bf16.gmra.mrb[0].mxu0 %v1583
        %v1690 = vpop.f32.mrb[0].mxu0
        %v1691 = vadd.f32 0.0, %v1690
        %v1692 = vpop.f32.mrb[0].mxu0
        %v1693 = vpop.f32.mrb[0].mxu0
        %v1694 = vadd.f32 0.0, %v1693
        %v1695 = vpop.f32.mrb[0].mxu0
        %1696 = vmatprep.mubr.bf16.mxu0 0
        %1697 = vmatmul.mubr.bf16.gmra.mrb[0].mxu0 %v1586
        %v1698 = vpop.f32.mrb[0].mxu0
        %v1699 = vadd.f32 0.0, %v1698
        %v1700 = vpop.f32.mrb[0].mxu0
        %v1701 = vpop.f32.mrb[0].mxu0
        %v1702 = vpop.f32.mrb[0].mxu0
        %1703 = vmatprep.mubr.bf16.mxu0 0
        %1704 = vmatmul.mubr.bf16.gmra.mrb[0].mxu0 %v1589
        %v1705 = vpop.f32.mrb[0].mxu0
        %v1706 = vadd.f32 0.0, %v1705
        %v1707 = vpop.f32.mrb[0].mxu0
        %v1708 = vpop.f32.mrb[0].mxu0
        %v1709 = vadd.f32 0.0, %v1708
        %v1710 = vpop.f32.mrb[0].mxu0
        %1711 = vmatprep.mubr.bf16.mxu0 0
        %1712 = vmatmul.mubr.bf16.gmra.mrb[0].mxu0 %v1592
        %v1713 = vpop.f32.mrb[0].mxu0
        %v1714 = vadd.f32 0.0, %v1713
        %v1715 = vpop.f32.mrb[0].mxu0
        %v1716 = vpop.f32.mrb[0].mxu0
        %v1717 = vadd.f32 0.0, %v1716
        %v1718 = vpop.f32.mrb[0].mxu0
        %1719 = vmatprep.mubr.bf16.mxu0 0
        %1720 = vmatmul.mubr.bf16.gmra.mrb[0].mxu0 %v1595
        %v1721 = vpop.f32.mrb[0].mxu0
        %v1722 = vpop.f32.mrb[0].mxu0
        %v1723 = vpop.f32.mrb[0].mxu0
        %v1724 = vadd.f32 0.0, %v1723
        %v1725 = vpop.f32.mrb[0].mxu0
        %1726 = vmatprep.mubr.bf16.mxu0 0
        %1727 = vmatmul.mubr.bf16.gmra.mrb[0].mxu0 %v1598
        %v1728 = vpop.f32.mrb[0].mxu0
        %v1729 = vadd.f32 0.0, %v1728
        %v1730 = vpop.f32.mrb[0].mxu0
        %v1731 = vpop.f32.mrb[0].mxu0
        %v1732 = vadd.f32 0.0, %v1731
        %v1733 = vpop.f32.mrb[0].mxu0
        %1734 = vmatprep.mubr.bf16.mxu0 0
        %1735 = vmatmul.mubr.bf16.gmra.mrb[0].mxu0 %v1601
        %v1736 = vpop.f32.mrb[0].mxu0
        %v1737 = vadd.f32 0.0, %v1736
        %v1738 = vpop.f32.mrb[0].mxu0
        %v1739 = vpop.f32.mrb[0].mxu0
        %v1740 = vpop.f32.mrb[0].mxu0
        %1741 = vmatprep.mubr.bf16.mxu0 0
        %1742 = vmatmul.mubr.bf16.gmra.mrb[0].mxu0 %v1604
        %v1743 = vpop.f32.mrb[0].mxu0
        %v1744 = vadd.f32 0.0, %v1743
        %v1745 = vpop.f32.mrb[0].mxu0
        %v1746 = vpop.f32.mrb[0].mxu0
        %v1747 = vadd.f32 0.0, %v1746
        %v1748 = vpop.f32.mrb[0].mxu0
        %1749 = vmatprep.mubr.bf16.mxu0 0
        %1750 = vmatmul.mubr.bf16.gmra.mrb[0].mxu0 %v1607
        %v1751 = vpop.f32.mrb[0].mxu0
        %v1752 = vadd.f32 0.0, %v1751
        %v1753 = vpop.f32.mrb[0].mxu0
        %v1754 = vpop.f32.mrb[0].mxu0
        %v1755 = vadd.f32 0.0, %v1754
        %v1756 = vpop.f32.mrb[0].mxu0
        %1757 = vmatprep.mubr.bf16.mxu0 0
        %1758 = vmatmul.mubr.bf16.gmra.mrb[0].mxu0 %v1610
        %v1759 = vpop.f32.mrb[0].mxu0
        %v1760 = vpop.f32.mrb[0].mxu0
        %v1761 = vpop.f32.mrb[0].mxu0
        %v1762 = vadd.f32 0.0, %v1761
        %v1763 = vpop.f32.mrb[0].mxu0
        %1764 = vmatprep.mubr.bf16.mxu0 0
        %1765 = vmatmul.mubr.bf16.gmra.mrb[0].mxu0 %v1613
        %v1766 = vpop.f32.mrb[0].mxu0
        %v1767 = vadd.f32 0.0, %v1766
        %v1768 = vpop.f32.mrb[0].mxu0
        %v1769 = vpop.f32.mrb[0].mxu0
        %v1770 = vadd.f32 0.0, %v1769
        %v1771 = vpop.f32.mrb[0].mxu0
        %1772 = vmatprep.mubr.bf16.mxu0 0
        %1773 = vmatmul.mubr.bf16.gmra.mrb[0].mxu0 %v1616
        %v1774 = vpop.f32.mrb[0].mxu0
        %v1775 = vadd.f32 0.0, %v1774
        %v1776 = vpop.f32.mrb[0].mxu0
        %v1777 = vpop.f32.mrb[0].mxu0
        %v1778 = vpop.f32.mrb[0].mxu0
        %1779 = vmatprep.mubr.bf16.mxu0 0
        %1780 = vmatmul.mubr.bf16.gmra.mrb[0].mxu0 %v1619
        %v1781 = vpop.f32.mrb[0].mxu0
        %v1782 = vadd.f32 0.0, %v1781
        %v1783 = vpop.f32.mrb[0].mxu0
        %v1784 = vpop.f32.mrb[0].mxu0
        %v1785 = vadd.f32 0.0, %v1784
        %v1786 = vpop.f32.mrb[0].mxu0
        %1787 = vmatprep.mubr.bf16.mxu0 0
        %1788 = vmatmul.mubr.bf16.gmra.mrb[0].mxu0 %v1622
        %v1789 = vpop.f32.mrb[0].mxu0
        %v1790 = vadd.f32 0.0, %v1789
        %v1791 = vpop.f32.mrb[0].mxu0
        %v1792 = vpop.f32.mrb[0].mxu0
        %v1793 = vadd.f32 0.0, %v1792
        %v1794 = vpop.f32.mrb[0].mxu0
        %1795 = vmatprep.mubr.bf16.mxu0 0
        %1796 = vmatmul.mubr.bf16.gmra.mrb[0].mxu0 %v1625
        %v1797 = vpop.f32.mrb[0].mxu0
        %v1798 = vpop.f32.mrb[0].mxu0
        %v1799 = vpop.f32.mrb[0].mxu0
        %v1800 = vadd.f32 0.0, %v1799
        %v1801 = vpop.f32.mrb[0].mxu0
        %1802 = vmatprep.mubr.bf16.mxu0 0
        %1803 = vmatmul.mubr.bf16.gmra.mrb[0].mxu0 %v1628
        %v1804 = vpop.f32.mrb[0].mxu0
        %v1805 = vadd.f32 0.0, %v1804
        %v1806 = vpop.f32.mrb[0].mxu0
        %v1807 = vpop.f32.mrb[0].mxu0
        %v1808 = vadd.f32 0.0, %v1807
        %v1809 = vpop.f32.mrb[0].mxu0
        %1810 = vmatprep.mubr.bf16.mxu0 0
        %1811 = vmatmul.mubr.bf16.gmra.mrb[0].mxu0 %v1631
        %v1812 = vpop.f32.mrb[0].mxu0
        %v1813 = vadd.f32 0.0, %v1812
        %v1814 = vpop.f32.mrb[0].mxu0
        %v1815 = vpop.f32.mrb[0].mxu0
        %v1816 = vpop.f32.mrb[0].mxu0
        %1817 = vdwg.mxu0
        %v1818 = vadd.f32 %v1368, %v1668
        %v1819 = vadd.f32 %v1369, %v1671
        %v1820 = vadd.f32 %v1370, %v1676
        %v1821 = vadd.f32 %v1371, %v1679
        %v1822 = vadd.f32 %v1372, %v1686
        %v1823 = vadd.f32 %v1373, %v1691
        %v1824 = vadd.f32 %v1374, %v1694
        %v1825 = vadd.f32 %v1375, %v1699
        %v1826 = vadd.f32 %v1376, %v1706
        %v1827 = vadd.f32 %v1377, %v1709
        %v1828 = vadd.f32 %v1378, %v1714
        %v1829 = vadd.f32 %v1379, %v1717
        %v1830 = vadd.f32 %v1380, %v1724
        %v1831 = vadd.f32 %v1381, %v1729
        %v1832 = vadd.f32 %v1382, %v1732
        %v1833 = vadd.f32 %v1383, %v1737
        %v1834 = vadd.f32 %v1384, %v1744
        %v1835 = vadd.f32 %v1385, %v1747
        %v1836 = vadd.f32 %v1386, %v1752
        %v1837 = vadd.f32 %v1387, %v1755
        %v1838 = vadd.f32 %v1388, %v1762
        %v1839 = vadd.f32 %v1389, %v1767
        %v1840 = vadd.f32 %v1390, %v1770
        %v1841 = vadd.f32 %v1391, %v1775
        %v1842 = vadd.f32 %v1392, %v1782
        %v1843 = vadd.f32 %v1393, %v1785
        %v1844 = vadd.f32 %v1394, %v1790
        %v1845 = vadd.f32 %v1395, %v1793
        %v1846 = vadd.f32 %v1396, %v1800
        %v1847 = vadd.f32 %v1397, %v1805
        %v1848 = vadd.f32 %v1398, %v1808
        %v1849 = vadd.f32 %v1399, %v1813
        %v1850 = vld [vmem:[%s196 + $0x14] sm:$0xf]
        %v1851 = vld [vmem:[%s196 + $0x18] sm:$0xf]
        %v1852 = vld [vmem:[%s196 + $0x1c] sm:$0xf]
        %v1853 = vld [vmem:[%s196 + $0x20] sm:$0xf]
        %v1854 = vld [vmem:[%s196 + $0x24] sm:$0xf]
        %v1855 = vld [vmem:[%s196 + $0x28] sm:$0xf]
        %v1856 = vld [vmem:[%s196 + $0x2c] sm:$0xf]
        %v1857 = vld [vmem:[%s196 + $0x30] sm:$0xf]
        %v1858 = vld [vmem:[%s196 + $0x34] sm:$0xf]
        %v1859 = vld [vmem:[%s196 + $0x38] sm:$0xf]
        %v1860 = vld [vmem:[%s196 + $0x3c] sm:$0xf]
        %v1861 = vld [vmem:[%s196 + $0x40] sm:$0xf]
        %v1862 = vld [vmem:[%s196 + $0x44] sm:$0xf]
        %v1863 = vld [vmem:[%s196 + $0x48] sm:$0xf]
        %v1864 = vld [vmem:[%s196 + $0x4c] sm:$0xf]
        %v1865 = vld [vmem:[%s196 + $0x50] sm:$0xf]
        %v1866 = vld [vmem:[%s196 + $0x54] sm:$0xf]
        %v1867 = vld [vmem:[%s196 + $0x58] sm:$0xf]
        %v1868 = vld [vmem:[%s196 + $0x5c] sm:$0xf]
        %v1869 = vld [vmem:[%s196 + $0x60] sm:$0xf]
        %v1870 = vld [vmem:[%s196 + $0x64] sm:$0xf]
        %v1871 = vld [vmem:[%s196 + $0x68] sm:$0xf]
        %v1872 = vld [vmem:[%s196 + $0x6c] sm:$0xf]
        %v1873 = vld [vmem:[%s196 + $0x70] sm:$0xf]
        %v1874 = vld [vmem:[%s196 + $0x74] sm:$0xf]
        %v1875 = vld [vmem:[%s196 + $0x78] sm:$0xf]
        %v1876 = vld [vmem:[%s196 + $0x7c] sm:$0xf]
        %v1877 = vld [vmem:[%s196 + $0x80] sm:$0xf]
        %v1878 = vld [vmem:[%s196 + $0x84] sm:$0xf]
        %v1879 = vld [vmem:[%s196 + $0x88] sm:$0xf]
        %v1880 = vld [vmem:[%s196 + $0x8c] sm:$0xf]
        %v1881 = vld [vmem:[%s196 + $0x90] sm:$0xf]
        %v1882 = vld [vmem:[%s196 + $0x94] sm:$0xf]
        %v1883 = vld [vmem:[%s196 + $0x98] sm:$0xf]
        %v1884 = vld [vmem:[%s196 + $0x9c] sm:$0xf]
        %v1885 = vld [vmem:[%s196 + $0xa0] sm:$0xf]
        %v1886 = vld [vmem:[%s196 + $0xa4] sm:$0xf]
        %v1887 = vld [vmem:[%s196 + $0xa8] sm:$0xf]
        %v1888 = vld [vmem:[%s196 + $0xac] sm:$0xf]
        %v1889 = vld [vmem:[%s196 + $0xb0] sm:$0xf]
        %v1890 = vld [vmem:[%s196 + $0xb4] sm:$0x1]
        %s1891 = scalar_lea.vmem %s1, 128
        %v1892 = vld [vmem:[%s1891] sm:$0xf]
        %v1893 = vld [vmem:[%s1891 + $0x4] sm:$0xf]
        %v1894 = vld [vmem:[%s1891 + $0x8] sm:$0xf]
        %v1895 = vld [vmem:[%s1891 + $0xc] sm:$0xf]
        %v1896 = vld [vmem:[%s1891 + $0x10] sm:$0xf]
        %v1897 = vld [vmem:[%s1891 + $0x14] sm:$0xf]
        %v1898 = vld [vmem:[%s1891 + $0x18] sm:$0xf]
        %v1899 = vld [vmem:[%s1891 + $0x1c] sm:$0xf]
        %v1941 = vunpack.c.l.b16 %v1850
        %v1942 = vunpack.c.l.b16 %v1851
        %v1943 = vunpack.c.l.b16 %v1852
        %v1944 = vunpack.c.l.b16 %v1853
        %v1945 = vunpack.c.l.b16 %v1854
        %v1946 = vunpack.c.l.b16 %v1855
        %v1947 = vunpack.c.l.b16 %v1856
        %v1948 = vunpack.c.l.b16 %v1857
        %v1949 = vunpack.c.l.b16 %v1858
        %v1950 = vunpack.c.l.b16 %v1859
        %v1951 = vunpack.c.l.b16 %v1860
        %v1952 = vunpack.c.l.b16 %v1861
        %v1953 = vunpack.c.l.b16 %v1862
        %v1954 = vunpack.c.l.b16 %v1863
        %v1955 = vunpack.c.l.b16 %v1864
        %v1956 = vunpack.c.l.b16 %v1865
        %v1957 = vunpack.c.l.b16 %v1866
        %v1958 = vunpack.c.l.b16 %v1867
        %v1959 = vunpack.c.l.b16 %v1868
        %v1960 = vunpack.c.l.b16 %v1869
        %v1961 = vunpack.c.l.b16 %v1870
        %v1962 = vunpack.c.l.b16 %v1871
        %v1963 = vunpack.c.l.b16 %v1872
        %v1964 = vunpack.c.l.b16 %v1873
        %v1965 = vunpack.c.l.b16 %v1874
        %v1966 = vunpack.c.l.b16 %v1875
        %v1967 = vunpack.c.l.b16 %v1876
        %v1968 = vunpack.c.l.b16 %v1877
        %v1969 = vunpack.c.l.b16 %v1878
        %v1970 = vunpack.c.l.b16 %v1879
        %v1971 = vunpack.c.l.b16 %v1880
        %v1972 = vunpack.c.l.b16 %v1881
        %v1973 = vunpack.c.l.b16 %v1882
        %v1974 = vunpack.c.l.b16 %v1883
        %v1975 = vunpack.c.l.b16 %v1884
        %v1976 = vunpack.c.l.b16 %v1885
        %v1977 = vunpack.c.l.b16 %v1886
        %v1978 = vunpack.c.l.b16 %v1887
        %v1979 = vunpack.c.l.b16 %v1888
        %v1980 = vunpack.c.l.b16 %v1889
        %v1981 = vunpack.c.l.b16 %v1890
        %v1982 = vpack.c.b16 %v1942, %v1941
        %v1983 = vpack.c.b16 %v1944, %v1943
        %v1984 = vpack.c.b16 %v1946, %v1945
        %v1985 = vpack.c.b16 %v1948, %v1947
        %v1986 = vpack.c.b16 %v1950, %v1949
        %v1987 = vpack.c.b16 %v1952, %v1951
        %v1988 = vpack.c.b16 %v1954, %v1953
        %v1989 = vpack.c.b16 %v1956, %v1955
        %v1990 = vpack.c.b16 %v1958, %v1957
        %v1991 = vpack.c.b16 %v1960, %v1959
        %v1992 = vpack.c.b16 %v1962, %v1961
        %v1993 = vpack.c.b16 %v1964, %v1963
        %v1994 = vpack.c.b16 %v1966, %v1965
        %v1995 = vpack.c.b16 %v1968, %v1967
        %v1996 = vpack.c.b16 %v1970, %v1969
        %v1997 = vpack.c.b16 %v1972, %v1971
        %v1998 = vpack.c.b16 %v1974, %v1973
        %v1999 = vpack.c.b16 %v1976, %v1975
        %v2000 = vpack.c.b16 %v1978, %v1977
        %v2001 = vpack.c.b16 %v1980, %v1979
        %v2002 = vpack.c.b16 %v1981, %v1981
        %v2004 = vshrl.u32 %v1982, 16
        %v2006 = vshll.u32 %v1982, 16
        %v2008 = vrot.slane %v2006, 1
        %v2009 = vor.u32 %v2004, %v2008
        %v2011 = vshll.u32 %v1983, 16
        %v2013 = vrot.slane %v2011, 1
        %v2014 = vsel %vm360, %v2009, %v2013
        %v2015 = vshrl.u32 %v1983, 16
        %v2017 = vor.u32 %v2015, %v2013
        %v2019 = vshll.u32 %v1984, 16
        %v2021 = vrot.slane %v2019, 1
        %v2022 = vsel %vm360, %v2017, %v2021
        %v2023 = vshrl.u32 %v1984, 16
        %v2025 = vor.u32 %v2023, %v2021
        %v2027 = vshll.u32 %v1985, 16
        %v2029 = vrot.slane %v2027, 1
        %v2030 = vsel %vm360, %v2025, %v2029
        %v2031 = vshrl.u32 %v1985, 16
        %v2033 = vor.u32 %v2031, %v2029
        %v2035 = vshll.u32 %v1986, 16
        %v2037 = vrot.slane %v2035, 1
        %v2038 = vsel %vm360, %v2033, %v2037
        %v2039 = vshrl.u32 %v1986, 16
        %v2041 = vor.u32 %v2039, %v2037
        %v2043 = vshll.u32 %v1987, 16
        %v2045 = vrot.slane %v2043, 1
        %v2046 = vsel %vm360, %v2041, %v2045
        %v2047 = vshrl.u32 %v1987, 16
        %v2049 = vor.u32 %v2047, %v2045
        %v2051 = vshll.u32 %v1988, 16
        %v2053 = vrot.slane %v2051, 1
        %v2054 = vsel %vm360, %v2049, %v2053
        %v2055 = vshrl.u32 %v1988, 16
        %v2057 = vor.u32 %v2055, %v2053
        %v2059 = vshll.u32 %v1989, 16
        %v2061 = vrot.slane %v2059, 1
        %v2062 = vsel %vm360, %v2057, %v2061
        %v2063 = vshrl.u32 %v1989, 16
        %v2065 = vor.u32 %v2063, %v2061
        %v2067 = vshll.u32 %v1990, 16
        %v2069 = vrot.slane %v2067, 1
        %v2070 = vsel %vm360, %v2065, %v2069
        %v2071 = vshrl.u32 %v1990, 16
        %v2073 = vor.u32 %v2071, %v2069
        %v2075 = vshll.u32 %v1991, 16
        %v2077 = vrot.slane %v2075, 1
        %v2078 = vsel %vm360, %v2073, %v2077
        %v2079 = vshrl.u32 %v1991, 16
        %v2081 = vor.u32 %v2079, %v2077
        %v2083 = vshll.u32 %v1992, 16
        %v2085 = vrot.slane %v2083, 1
        %v2086 = vsel %vm360, %v2081, %v2085
        %v2087 = vshrl.u32 %v1992, 16
        %v2089 = vor.u32 %v2087, %v2085
        %v2091 = vshll.u32 %v1993, 16
        %v2093 = vrot.slane %v2091, 1
        %v2094 = vsel %vm360, %v2089, %v2093
        %v2095 = vshrl.u32 %v1993, 16
        %v2097 = vor.u32 %v2095, %v2093
        %v2099 = vshll.u32 %v1994, 16
        %v2101 = vrot.slane %v2099, 1
        %v2102 = vsel %vm360, %v2097, %v2101
        %v2103 = vshrl.u32 %v1994, 16
        %v2105 = vor.u32 %v2103, %v2101
        %v2107 = vshll.u32 %v1995, 16
        %v2109 = vrot.slane %v2107, 1
        %v2110 = vsel %vm360, %v2105, %v2109
        %v2111 = vshrl.u32 %v1995, 16
        %v2113 = vor.u32 %v2111, %v2109
        %v2115 = vshll.u32 %v1996, 16
        %v2117 = vrot.slane %v2115, 1
        %v2118 = vsel %vm360, %v2113, %v2117
        %v2119 = vshrl.u32 %v1996, 16
        %v2121 = vor.u32 %v2119, %v2117
        %v2123 = vshll.u32 %v1997, 16
        %v2125 = vrot.slane %v2123, 1
        %v2126 = vsel %vm360, %v2121, %v2125
        %v2127 = vshrl.u32 %v1997, 16
        %v2129 = vor.u32 %v2127, %v2125
        %v2131 = vshll.u32 %v1998, 16
        %v2133 = vrot.slane %v2131, 1
        %v2134 = vsel %vm360, %v2129, %v2133
        %v2135 = vshrl.u32 %v1998, 16
        %v2137 = vor.u32 %v2135, %v2133
        %v2139 = vshll.u32 %v1999, 16
        %v2141 = vrot.slane %v2139, 1
        %v2142 = vsel %vm360, %v2137, %v2141
        %v2143 = vshrl.u32 %v1999, 16
        %v2145 = vor.u32 %v2143, %v2141
        %v2147 = vshll.u32 %v2000, 16
        %v2149 = vrot.slane %v2147, 1
        %v2150 = vsel %vm360, %v2145, %v2149
        %v2151 = vshrl.u32 %v2000, 16
        %v2153 = vor.u32 %v2151, %v2149
        %v2155 = vshll.u32 %v2001, 16
        %v2157 = vrot.slane %v2155, 1
        %v2158 = vsel %vm360, %v2153, %v2157
        %v2159 = vshrl.u32 %v2001, 16
        %v2161 = vor.u32 %v2159, %v2157
        %v2163 = vshll.u32 %v2002, 16
        %v2165 = vrot.slane %v2163, 1
        %v2166 = vsel %vm360, %v2161, %v2165
        %v2175 = vunpack.c.l.b16 %v1892
        %v2176 = vunpack.c.l.b16 %v1893
        %v2177 = vunpack.c.l.b16 %v1894
        %v2178 = vunpack.c.l.b16 %v1895
        %v2179 = vunpack.c.l.b16 %v1896
        %v2180 = vunpack.c.l.b16 %v1897
        %v2181 = vunpack.c.l.b16 %v1898
        %v2182 = vunpack.c.l.b16 %v1899
        %v2183 = vpack.c.b16 %v2176, %v2175
        %v2184 = vpack.c.b16 %v2178, %v2177
        %v2185 = vpack.c.b16 %v2180, %v2179
        %v2186 = vpack.c.b16 %v2182, %v2181
        %v2192 = vsel %vm549, %v2014, 0
        %v2195 = vsel %vm549, %v2022, 0
        %v2198 = vsel %vm549, %v2030, 0
        %v2201 = vsel %vm549, %v2038, 0
        %v2204 = vsel %vm549, %v2046, 0
        %v2207 = vsel %vm549, %v2054, 0
        %v2210 = vsel %vm549, %v2062, 0
        %v2213 = vsel %vm549, %v2070, 0
        %v2216 = vsel %vm549, %v2078, 0
        %v2219 = vsel %vm549, %v2086, 0
        %v2222 = vsel %vm549, %v2094, 0
        %v2225 = vsel %vm549, %v2102, 0
        %v2228 = vsel %vm549, %v2110, 0
        %v2231 = vsel %vm549, %v2118, 0
        %v2234 = vsel %vm549, %v2126, 0
        %v2237 = vsel %vm549, %v2134, 0
        %v2240 = vsel %vm549, %v2142, 0
        %v2243 = vsel %vm549, %v2150, 0
        %v2246 = vsel %vm549, %v2158, 0
        %v2249 = vsel %vm549, %v2166, 0
        %2251 = vmatprep.subr.bf16.mxu0 0
        %2252 = vmatpush1.bf16.msra.mxu0 %v2183
        %2253 = vmatprep.subr.bf16.mxu0 0
        %2254 = vmatpush1.bf16.msra.mxu0 %v2184
        %2255 = vmatprep.subr.bf16.mxu0 0
        %2256 = vmatpush1.bf16.msra.mxu0 %v2185
        %2257 = vmatprep.subr.bf16.mxu0 0
        %2258 = vmatpush1.bf16.msra.mxu0 %v2186
        %2259 = vmatprep.subr.bf16.mxu0 0
        %2260 = vmatpush1.bf16.msra.mxu0 0
        %2261 = vmatprep.subr.bf16.mxu0 0
        %2262 = vmatpush1.bf16.msra.mxu0 0
        %2263 = vmatprep.subr.bf16.mxu0 0
        %2264 = vmatpush1.bf16.msra.mxu0 0
        %2265 = vmatprep.subr.bf16.mxu0 0
        %2266 = vmatpush1.bf16.msra.mxu0 0
        %2267 = vmatprep.subr.bf16.mxu0 0
        %2268 = vmatpush1.bf16.msra.mxu0 0
        %2269 = vmatprep.subr.bf16.mxu0 0
        %2270 = vmatpush1.bf16.msra.mxu0 0
        %2271 = vmatprep.subr.bf16.mxu0 0
        %2272 = vmatpush1.bf16.msra.mxu0 0
        %2273 = vmatprep.subr.bf16.mxu0 0
        %2274 = vmatpush1.bf16.msra.mxu0 0
        %2275 = vmatprep.subr.bf16.mxu0 0
        %2276 = vmatpush1.bf16.msra.mxu0 0
        %2277 = vmatprep.subr.bf16.mxu0 0
        %2278 = vmatpush1.bf16.msra.mxu0 0
        %2279 = vmatprep.subr.bf16.mxu0 0
        %2280 = vmatpush1.bf16.msra.mxu0 0
        %2281 = vmatprep.subr.bf16.mxu0 0
        %2282 = vmatpush1.bf16.msra.mxu0 0
        %2283 = vmatprep.mubr.bf16.mxu0 0
        %2284 = vmatmul.mubr.bf16.gmra.mrb[0].mxu0 %v2192
        %v2285 = vpop.f32.mrb[0].mxu0
        %v2286 = vadd.f32 0.0, %v2285
        %v2287 = vpop.f32.mrb[0].mxu0
        %v2288 = vpop.f32.mrb[0].mxu0
        %v2289 = vadd.f32 0.0, %v2288
        %v2290 = vpop.f32.mrb[0].mxu0
        %2291 = vmatprep.mubr.bf16.mxu0 0
        %2292 = vmatmul.mubr.bf16.gmra.mrb[0].mxu0 %v2195
        %v2293 = vpop.f32.mrb[0].mxu0
        %v2294 = vadd.f32 0.0, %v2293
        %v2295 = vpop.f32.mrb[0].mxu0
        %v2296 = vpop.f32.mrb[0].mxu0
        %v2297 = vadd.f32 0.0, %v2296
        %v2298 = vpop.f32.mrb[0].mxu0
        %2299 = vmatprep.mubr.bf16.mxu0 0
        %2300 = vmatmul.mubr.bf16.gmra.mrb[0].mxu0 %v2198
        %v2301 = vpop.f32.mrb[0].mxu0
        %v2302 = vpop.f32.mrb[0].mxu0
        %v2303 = vpop.f32.mrb[0].mxu0
        %v2304 = vadd.f32 0.0, %v2303
        %v2305 = vpop.f32.mrb[0].mxu0
        %2306 = vmatprep.mubr.bf16.mxu0 0
        %2307 = vmatmul.mubr.bf16.gmra.mrb[0].mxu0 %v2201
        %v2308 = vpop.f32.mrb[0].mxu0
        %v2309 = vadd.f32 0.0, %v2308
        %v2310 = vpop.f32.mrb[0].mxu0
        %v2311 = vpop.f32.mrb[0].mxu0
        %v2312 = vadd.f32 0.0, %v2311
        %v2313 = vpop.f32.mrb[0].mxu0
        %2314 = vmatprep.mubr.bf16.mxu0 0
        %2315 = vmatmul.mubr.bf16.gmra.mrb[0].mxu0 %v2204
        %v2316 = vpop.f32.mrb[0].mxu0
        %v2317 = vadd.f32 0.0, %v2316
        %v2318 = vpop.f32.mrb[0].mxu0
        %v2319 = vpop.f32.mrb[0].mxu0
        %v2320 = vpop.f32.mrb[0].mxu0
        %2321 = vmatprep.mubr.bf16.mxu0 0
        %2322 = vmatmul.mubr.bf16.gmra.mrb[0].mxu0 %v2207
        %v2323 = vpop.f32.mrb[0].mxu0
        %v2324 = vadd.f32 0.0, %v2323
        %v2325 = vpop.f32.mrb[0].mxu0
        %v2326 = vpop.f32.mrb[0].mxu0
        %v2327 = vadd.f32 0.0, %v2326
        %v2328 = vpop.f32.mrb[0].mxu0
        %2329 = vmatprep.mubr.bf16.mxu0 0
        %2330 = vmatmul.mubr.bf16.gmra.mrb[0].mxu0 %v2210
        %v2331 = vpop.f32.mrb[0].mxu0
        %v2332 = vadd.f32 0.0, %v2331
        %v2333 = vpop.f32.mrb[0].mxu0
        %v2334 = vpop.f32.mrb[0].mxu0
        %v2335 = vadd.f32 0.0, %v2334
        %v2336 = vpop.f32.mrb[0].mxu0
        %2337 = vmatprep.mubr.bf16.mxu0 0
        %2338 = vmatmul.mubr.bf16.gmra.mrb[0].mxu0 %v2213
        %v2339 = vpop.f32.mrb[0].mxu0
        %v2340 = vpop.f32.mrb[0].mxu0
        %v2341 = vpop.f32.mrb[0].mxu0
        %v2342 = vadd.f32 0.0, %v2341
        %v2343 = vpop.f32.mrb[0].mxu0
        %2344 = vmatprep.mubr.bf16.mxu0 0
        %2345 = vmatmul.mubr.bf16.gmra.mrb[0].mxu0 %v2216
        %v2346 = vpop.f32.mrb[0].mxu0
        %v2347 = vadd.f32 0.0, %v2346
        %v2348 = vpop.f32.mrb[0].mxu0
        %v2349 = vpop.f32.mrb[0].mxu0
        %v2350 = vadd.f32 0.0, %v2349
        %v2351 = vpop.f32.mrb[0].mxu0
        %2352 = vmatprep.mubr.bf16.mxu0 0
        %2353 = vmatmul.mubr.bf16.gmra.mrb[0].mxu0 %v2219
        %v2354 = vpop.f32.mrb[0].mxu0
        %v2355 = vadd.f32 0.0, %v2354
        %v2356 = vpop.f32.mrb[0].mxu0
        %v2357 = vpop.f32.mrb[0].mxu0
        %v2358 = vpop.f32.mrb[0].mxu0
        %2359 = vmatprep.mubr.bf16.mxu0 0
        %2360 = vmatmul.mubr.bf16.gmra.mrb[0].mxu0 %v2222
        %v2361 = vpop.f32.mrb[0].mxu0
        %v2362 = vadd.f32 0.0, %v2361
        %v2363 = vpop.f32.mrb[0].mxu0
        %v2364 = vpop.f32.mrb[0].mxu0
        %v2365 = vadd.f32 0.0, %v2364
        %v2366 = vpop.f32.mrb[0].mxu0
        %2367 = vmatprep.mubr.bf16.mxu0 0
        %2368 = vmatmul.mubr.bf16.gmra.mrb[0].mxu0 %v2225
        %v2369 = vpop.f32.mrb[0].mxu0
        %v2370 = vadd.f32 0.0, %v2369
        %v2371 = vpop.f32.mrb[0].mxu0
        %v2372 = vpop.f32.mrb[0].mxu0
        %v2373 = vadd.f32 0.0, %v2372
        %v2374 = vpop.f32.mrb[0].mxu0
        %2375 = vmatprep.mubr.bf16.mxu0 0
        %2376 = vmatmul.mubr.bf16.gmra.mrb[0].mxu0 %v2228
        %v2377 = vpop.f32.mrb[0].mxu0
        %v2378 = vpop.f32.mrb[0].mxu0
        %v2379 = vpop.f32.mrb[0].mxu0
        %v2380 = vadd.f32 0.0, %v2379
        %v2381 = vpop.f32.mrb[0].mxu0
        %2382 = vmatprep.mubr.bf16.mxu0 0
        %2383 = vmatmul.mubr.bf16.gmra.mrb[0].mxu0 %v2231
        %v2384 = vpop.f32.mrb[0].mxu0
        %v2385 = vadd.f32 0.0, %v2384
        %v2386 = vpop.f32.mrb[0].mxu0
        %v2387 = vpop.f32.mrb[0].mxu0
        %v2388 = vadd.f32 0.0, %v2387
        %v2389 = vpop.f32.mrb[0].mxu0
        %2390 = vmatprep.mubr.bf16.mxu0 0
        %2391 = vmatmul.mubr.bf16.gmra.mrb[0].mxu0 %v2234
        %v2392 = vpop.f32.mrb[0].mxu0
        %v2393 = vadd.f32 0.0, %v2392
        %v2394 = vpop.f32.mrb[0].mxu0
        %v2395 = vpop.f32.mrb[0].mxu0
        %v2396 = vpop.f32.mrb[0].mxu0
        %2397 = vmatprep.mubr.bf16.mxu0 0
        %2398 = vmatmul.mubr.bf16.gmra.mrb[0].mxu0 %v2237
        %v2399 = vpop.f32.mrb[0].mxu0
        %v2400 = vadd.f32 0.0, %v2399
        %v2401 = vpop.f32.mrb[0].mxu0
        %v2402 = vpop.f32.mrb[0].mxu0
        %v2403 = vadd.f32 0.0, %v2402
        %v2404 = vpop.f32.mrb[0].mxu0
        %2405 = vmatprep.mubr.bf16.mxu0 0
        %2406 = vmatmul.mubr.bf16.gmra.mrb[0].mxu0 %v2240
        %v2407 = vpop.f32.mrb[0].mxu0
        %v2408 = vadd.f32 0.0, %v2407
        %v2409 = vpop.f32.mrb[0].mxu0
        %v2410 = vpop.f32.mrb[0].mxu0
        %v2411 = vadd.f32 0.0, %v2410
        %v2412 = vpop.f32.mrb[0].mxu0
        %2413 = vmatprep.mubr.bf16.mxu0 0
        %2414 = vmatmul.mubr.bf16.gmra.mrb[0].mxu0 %v2243
        %v2415 = vpop.f32.mrb[0].mxu0
        %v2416 = vpop.f32.mrb[0].mxu0
        %v2417 = vpop.f32.mrb[0].mxu0
        %v2418 = vadd.f32 0.0, %v2417
        %v2419 = vpop.f32.mrb[0].mxu0
        %2420 = vmatprep.mubr.bf16.mxu0 0
        %2421 = vmatmul.mubr.bf16.gmra.mrb[0].mxu0 %v2246
        %v2422 = vpop.f32.mrb[0].mxu0
        %v2423 = vadd.f32 0.0, %v2422
        %v2424 = vpop.f32.mrb[0].mxu0
        %v2425 = vpop.f32.mrb[0].mxu0
        %v2426 = vadd.f32 0.0, %v2425
        %v2427 = vpop.f32.mrb[0].mxu0
        %2428 = vmatprep.mubr.bf16.mxu0 0
        %2429 = vmatmul.mubr.bf16.gmra.mrb[0].mxu0 %v2249
        %v2430 = vpop.f32.mrb[0].mxu0
        %v2431 = vadd.f32 0.0, %v2430
        %v2432 = vpop.f32.mrb[0].mxu0
        %v2433 = vpop.f32.mrb[0].mxu0
        %v2434 = vpop.f32.mrb[0].mxu0
        %2435 = vdwg.mxu0
        %v2436 = vadd.f32 %v1818, %v2286
        %v2437 = vadd.f32 %v1819, %v2289
        %v2438 = vadd.f32 %v1820, %v2294
        %v2439 = vadd.f32 %v1821, %v2297
        %v2440 = vadd.f32 %v1822, %v2304
        %v2441 = vadd.f32 %v1823, %v2309
        %v2442 = vadd.f32 %v1824, %v2312
        %v2443 = vadd.f32 %v1825, %v2317
        %v2444 = vadd.f32 %v1826, %v2324
        %v2445 = vadd.f32 %v1827, %v2327
        %v2446 = vadd.f32 %v1828, %v2332
        %v2447 = vadd.f32 %v1829, %v2335
        %v2448 = vadd.f32 %v1830, %v2342
        %v2449 = vadd.f32 %v1831, %v2347
        %v2450 = vadd.f32 %v1832, %v2350
        %v2451 = vadd.f32 %v1833, %v2355
        %v2452 = vadd.f32 %v1834, %v2362
        %v2453 = vadd.f32 %v1835, %v2365
        %v2454 = vadd.f32 %v1836, %v2370
        %v2455 = vadd.f32 %v1837, %v2373
        %v2456 = vadd.f32 %v1838, %v2380
        %v2457 = vadd.f32 %v1839, %v2385
        %v2458 = vadd.f32 %v1840, %v2388
        %v2459 = vadd.f32 %v1841, %v2393
        %v2460 = vadd.f32 %v1842, %v2400
        %v2461 = vadd.f32 %v1843, %v2403
        %v2462 = vadd.f32 %v1844, %v2408
        %v2463 = vadd.f32 %v1845, %v2411
        %v2464 = vadd.f32 %v1846, %v2418
        %v2465 = vadd.f32 %v1847, %v2423
        %v2466 = vadd.f32 %v1848, %v2426
        %v2467 = vadd.f32 %v1849, %v2431
        %v2468 = vld [vmem:[%s196 + $0x14] sm:$0xe]
        %s2469 = scalar_lea.vmem %s1, 160
        %v2470 = vld [vmem:[%s2469] sm:$0xf]
        %v2471 = vld [vmem:[%s2469 + $0x4] sm:$0xf]
        %v2472 = vld [vmem:[%s2469 + $0x8] sm:$0xf]
        %v2473 = vld [vmem:[%s2469 + $0xc] sm:$0xf]
        %v2474 = vld [vmem:[%s2469 + $0x10] sm:$0xf]
        %v2475 = vld [vmem:[%s2469 + $0x14] sm:$0xf]
        %v2476 = vld [vmem:[%s2469 + $0x18] sm:$0xf]
        %v2477 = vld [vmem:[%s2469 + $0x1c] sm:$0xf]
        %v2479 = vunpack.c.l.b16 %v2468
        %v2480 = vpack.c.b16 %v1942, %v2479
        %v2481 = vrot.slane %v2480, 1
        %v2482 = vrot.slane %v1983, 1
        %v2483 = vsel %vm1057, %v2481, %v2482
        %v2484 = vrot.slane %v1984, 1
        %v2485 = vsel %vm1057, %v2482, %v2484
        %v2486 = vrot.slane %v1985, 1
        %v2487 = vsel %vm1057, %v2484, %v2486
        %v2488 = vrot.slane %v1986, 1
        %v2489 = vsel %vm1057, %v2486, %v2488
        %v2490 = vrot.slane %v1987, 1
        %v2491 = vsel %vm1057, %v2488, %v2490
        %v2492 = vrot.slane %v1988, 1
        %v2493 = vsel %vm1057, %v2490, %v2492
        %v2494 = vrot.slane %v1989, 1
        %v2495 = vsel %vm1057, %v2492, %v2494
        %v2496 = vrot.slane %v1990, 1
        %v2497 = vsel %vm1057, %v2494, %v2496
        %v2498 = vrot.slane %v1991, 1
        %v2499 = vsel %vm1057, %v2496, %v2498
        %v2500 = vrot.slane %v1992, 1
        %v2501 = vsel %vm1057, %v2498, %v2500
        %v2502 = vrot.slane %v1993, 1
        %v2503 = vsel %vm1057, %v2500, %v2502
        %v2504 = vrot.slane %v1994, 1
        %v2505 = vsel %vm1057, %v2502, %v2504
        %v2506 = vrot.slane %v1995, 1
        %v2507 = vsel %vm1057, %v2504, %v2506
        %v2508 = vrot.slane %v1996, 1
        %v2509 = vsel %vm1057, %v2506, %v2508
        %v2510 = vrot.slane %v1997, 1
        %v2511 = vsel %vm1057, %v2508, %v2510
        %v2512 = vrot.slane %v1998, 1
        %v2513 = vsel %vm1057, %v2510, %v2512
        %v2514 = vrot.slane %v1999, 1
        %v2515 = vsel %vm1057, %v2512, %v2514
        %v2516 = vrot.slane %v2000, 1
        %v2517 = vsel %vm1057, %v2514, %v2516
        %v2518 = vrot.slane %v2001, 1
        %v2519 = vsel %vm1057, %v2516, %v2518
        %v2520 = vrot.slane %v2002, 1
        %v2521 = vsel %vm1057, %v2518, %v2520
        %v2530 = vunpack.c.l.b16 %v2470
        %v2531 = vunpack.c.l.b16 %v2471
        %v2532 = vunpack.c.l.b16 %v2472
        %v2533 = vunpack.c.l.b16 %v2473
        %v2534 = vunpack.c.l.b16 %v2474
        %v2535 = vunpack.c.l.b16 %v2475
        %v2536 = vunpack.c.l.b16 %v2476
        %v2537 = vunpack.c.l.b16 %v2477
        %v2538 = vpack.c.b16 %v2531, %v2530
        %v2539 = vpack.c.b16 %v2533, %v2532
        %v2540 = vpack.c.b16 %v2535, %v2534
        %v2541 = vpack.c.b16 %v2537, %v2536
        %v2547 = vsel %vm549, %v2483, 0
        %v2550 = vsel %vm549, %v2485, 0
        %v2553 = vsel %vm549, %v2487, 0
        %v2556 = vsel %vm549, %v2489, 0
        %v2559 = vsel %vm549, %v2491, 0
        %v2562 = vsel %vm549, %v2493, 0
        %v2565 = vsel %vm549, %v2495, 0
        %v2568 = vsel %vm549, %v2497, 0
        %v2571 = vsel %vm549, %v2499, 0
        %v2574 = vsel %vm549, %v2501, 0
        %v2577 = vsel %vm549, %v2503, 0
        %v2580 = vsel %vm549, %v2505, 0
        %v2583 = vsel %vm549, %v2507, 0
        %v2586 = vsel %vm549, %v2509, 0
        %v2589 = vsel %vm549, %v2511, 0
        %v2592 = vsel %vm549, %v2513, 0
        %v2595 = vsel %vm549, %v2515, 0
        %v2598 = vsel %vm549, %v2517, 0
        %v2601 = vsel %vm549, %v2519, 0
        %v2604 = vsel %vm549, %v2521, 0
        %2606 = vmatprep.subr.bf16.mxu0 0
        %2607 = vmatpush1.bf16.msra.mxu0 %v2538
        %2608 = vmatprep.subr.bf16.mxu0 0
        %2609 = vmatpush1.bf16.msra.mxu0 %v2539
        %2610 = vmatprep.subr.bf16.mxu0 0
        %2611 = vmatpush1.bf16.msra.mxu0 %v2540
        %2612 = vmatprep.subr.bf16.mxu0 0
        %2613 = vmatpush1.bf16.msra.mxu0 %v2541
        %2614 = vmatprep.subr.bf16.mxu0 0
        %2615 = vmatpush1.bf16.msra.mxu0 0
        %2616 = vmatprep.subr.bf16.mxu0 0
        %2617 = vmatpush1.bf16.msra.mxu0 0
        %2618 = vmatprep.subr.bf16.mxu0 0
        %2619 = vmatpush1.bf16.msra.mxu0 0
        %2620 = vmatprep.subr.bf16.mxu0 0
        %2621 = vmatpush1.bf16.msra.mxu0 0
        %2622 = vmatprep.subr.bf16.mxu0 0
        %2623 = vmatpush1.bf16.msra.mxu0 0
        %2624 = vmatprep.subr.bf16.mxu0 0
        %2625 = vmatpush1.bf16.msra.mxu0 0
        %2626 = vmatprep.subr.bf16.mxu0 0
        %2627 = vmatpush1.bf16.msra.mxu0 0
        %2628 = vmatprep.subr.bf16.mxu0 0
        %2629 = vmatpush1.bf16.msra.mxu0 0
        %2630 = vmatprep.subr.bf16.mxu0 0
        %2631 = vmatpush1.bf16.msra.mxu0 0
        %2632 = vmatprep.subr.bf16.mxu0 0
        %2633 = vmatpush1.bf16.msra.mxu0 0
        %2634 = vmatprep.subr.bf16.mxu0 0
        %2635 = vmatpush1.bf16.msra.mxu0 0
        %2636 = vmatprep.subr.bf16.mxu0 0
        %2637 = vmatpush1.bf16.msra.mxu0 0
        %2638 = vmatprep.mubr.bf16.mxu0 0
        %2639 = vmatmul.mubr.bf16.gmra.mrb[0].mxu0 %v2547
        %v2640 = vpop.f32.mrb[0].mxu0
        %v2641 = vadd.f32 0.0, %v2640
        %v2642 = vpop.f32.mrb[0].mxu0
        %v2643 = vpop.f32.mrb[0].mxu0
        %v2644 = vadd.f32 0.0, %v2643
        %v2645 = vpop.f32.mrb[0].mxu0
        %2646 = vmatprep.mubr.bf16.mxu0 0
        %2647 = vmatmul.mubr.bf16.gmra.mrb[0].mxu0 %v2550
        %v2648 = vpop.f32.mrb[0].mxu0
        %v2649 = vadd.f32 0.0, %v2648
        %v2650 = vpop.f32.mrb[0].mxu0
        %v2651 = vpop.f32.mrb[0].mxu0
        %v2652 = vadd.f32 0.0, %v2651
        %v2653 = vpop.f32.mrb[0].mxu0
        %2654 = vmatprep.mubr.bf16.mxu0 0
        %2655 = vmatmul.mubr.bf16.gmra.mrb[0].mxu0 %v2553
        %v2656 = vpop.f32.mrb[0].mxu0
        %v2657 = vpop.f32.mrb[0].mxu0
        %v2658 = vpop.f32.mrb[0].mxu0
        %v2659 = vadd.f32 0.0, %v2658
        %v2660 = vpop.f32.mrb[0].mxu0
        %2661 = vmatprep.mubr.bf16.mxu0 0
        %2662 = vmatmul.mubr.bf16.gmra.mrb[0].mxu0 %v2556
        %v2663 = vpop.f32.mrb[0].mxu0
        %v2664 = vadd.f32 0.0, %v2663
        %v2665 = vpop.f32.mrb[0].mxu0
        %v2666 = vpop.f32.mrb[0].mxu0
        %v2667 = vadd.f32 0.0, %v2666
        %v2668 = vpop.f32.mrb[0].mxu0
        %2669 = vmatprep.mubr.bf16.mxu0 0
        %2670 = vmatmul.mubr.bf16.gmra.mrb[0].mxu0 %v2559
        %v2671 = vpop.f32.mrb[0].mxu0
        %v2672 = vadd.f32 0.0, %v2671
        %v2673 = vpop.f32.mrb[0].mxu0
        %v2674 = vpop.f32.mrb[0].mxu0
        %v2675 = vpop.f32.mrb[0].mxu0
        %2676 = vmatprep.mubr.bf16.mxu0 0
        %2677 = vmatmul.mubr.bf16.gmra.mrb[0].mxu0 %v2562
        %v2678 = vpop.f32.mrb[0].mxu0
        %v2679 = vadd.f32 0.0, %v2678
        %v2680 = vpop.f32.mrb[0].mxu0
        %v2681 = vpop.f32.mrb[0].mxu0
        %v2682 = vadd.f32 0.0, %v2681
        %v2683 = vpop.f32.mrb[0].mxu0
        %2684 = vmatprep.mubr.bf16.mxu0 0
        %2685 = vmatmul.mubr.bf16.gmra.mrb[0].mxu0 %v2565
        %v2686 = vpop.f32.mrb[0].mxu0
        %v2687 = vadd.f32 0.0, %v2686
        %v2688 = vpop.f32.mrb[0].mxu0
        %v2689 = vpop.f32.mrb[0].mxu0
        %v2690 = vadd.f32 0.0, %v2689
        %v2691 = vpop.f32.mrb[0].mxu0
        %2692 = vmatprep.mubr.bf16.mxu0 0
        %2693 = vmatmul.mubr.bf16.gmra.mrb[0].mxu0 %v2568
        %v2694 = vpop.f32.mrb[0].mxu0
        %v2695 = vpop.f32.mrb[0].mxu0
        %v2696 = vpop.f32.mrb[0].mxu0
        %v2697 = vadd.f32 0.0, %v2696
        %v2698 = vpop.f32.mrb[0].mxu0
        %2699 = vmatprep.mubr.bf16.mxu0 0
        %2700 = vmatmul.mubr.bf16.gmra.mrb[0].mxu0 %v2571
        %v2701 = vpop.f32.mrb[0].mxu0
        %v2702 = vadd.f32 0.0, %v2701
        %v2703 = vpop.f32.mrb[0].mxu0
        %v2704 = vpop.f32.mrb[0].mxu0
        %v2705 = vadd.f32 0.0, %v2704
        %v2706 = vpop.f32.mrb[0].mxu0
        %2707 = vmatprep.mubr.bf16.mxu0 0
        %2708 = vmatmul.mubr.bf16.gmra.mrb[0].mxu0 %v2574
        %v2709 = vpop.f32.mrb[0].mxu0
        %v2710 = vadd.f32 0.0, %v2709
        %v2711 = vpop.f32.mrb[0].mxu0
        %v2712 = vpop.f32.mrb[0].mxu0
        %v2713 = vpop.f32.mrb[0].mxu0
        %2714 = vmatprep.mubr.bf16.mxu0 0
        %2715 = vmatmul.mubr.bf16.gmra.mrb[0].mxu0 %v2577
        %v2716 = vpop.f32.mrb[0].mxu0
        %v2717 = vadd.f32 0.0, %v2716
        %v2718 = vpop.f32.mrb[0].mxu0
        %v2719 = vpop.f32.mrb[0].mxu0
        %v2720 = vadd.f32 0.0, %v2719
        %v2721 = vpop.f32.mrb[0].mxu0
        %2722 = vmatprep.mubr.bf16.mxu0 0
        %2723 = vmatmul.mubr.bf16.gmra.mrb[0].mxu0 %v2580
        %v2724 = vpop.f32.mrb[0].mxu0
        %v2725 = vadd.f32 0.0, %v2724
        %v2726 = vpop.f32.mrb[0].mxu0
        %v2727 = vpop.f32.mrb[0].mxu0
        %v2728 = vadd.f32 0.0, %v2727
        %v2729 = vpop.f32.mrb[0].mxu0
        %2730 = vmatprep.mubr.bf16.mxu0 0
        %2731 = vmatmul.mubr.bf16.gmra.mrb[0].mxu0 %v2583
        %v2732 = vpop.f32.mrb[0].mxu0
        %v2733 = vpop.f32.mrb[0].mxu0
        %v2734 = vpop.f32.mrb[0].mxu0
        %v2735 = vadd.f32 0.0, %v2734
        %v2736 = vpop.f32.mrb[0].mxu0
        %2737 = vmatprep.mubr.bf16.mxu0 0
        %2738 = vmatmul.mubr.bf16.gmra.mrb[0].mxu0 %v2586
        %v2739 = vpop.f32.mrb[0].mxu0
        %v2740 = vadd.f32 0.0, %v2739
        %v2741 = vpop.f32.mrb[0].mxu0
        %v2742 = vpop.f32.mrb[0].mxu0
        %v2743 = vadd.f32 0.0, %v2742
        %v2744 = vpop.f32.mrb[0].mxu0
        %2745 = vmatprep.mubr.bf16.mxu0 0
        %2746 = vmatmul.mubr.bf16.gmra.mrb[0].mxu0 %v2589
        %v2747 = vpop.f32.mrb[0].mxu0
        %v2748 = vadd.f32 0.0, %v2747
        %v2749 = vpop.f32.mrb[0].mxu0
        %v2750 = vpop.f32.mrb[0].mxu0
        %v2751 = vpop.f32.mrb[0].mxu0
        %2752 = vmatprep.mubr.bf16.mxu0 0
        %2753 = vmatmul.mubr.bf16.gmra.mrb[0].mxu0 %v2592
        %v2754 = vpop.f32.mrb[0].mxu0
        %v2755 = vadd.f32 0.0, %v2754
        %v2756 = vpop.f32.mrb[0].mxu0
        %v2757 = vpop.f32.mrb[0].mxu0
        %v2758 = vadd.f32 0.0, %v2757
        %v2759 = vpop.f32.mrb[0].mxu0
        %2760 = vmatprep.mubr.bf16.mxu0 0
        %2761 = vmatmul.mubr.bf16.gmra.mrb[0].mxu0 %v2595
        %v2762 = vpop.f32.mrb[0].mxu0
        %v2763 = vadd.f32 0.0, %v2762
        %v2764 = vpop.f32.mrb[0].mxu0
        %v2765 = vpop.f32.mrb[0].mxu0
        %v2766 = vadd.f32 0.0, %v2765
        %v2767 = vpop.f32.mrb[0].mxu0
        %2768 = vmatprep.mubr.bf16.mxu0 0
        %2769 = vmatmul.mubr.bf16.gmra.mrb[0].mxu0 %v2598
        %v2770 = vpop.f32.mrb[0].mxu0
        %v2771 = vpop.f32.mrb[0].mxu0
        %v2772 = vpop.f32.mrb[0].mxu0
        %v2773 = vadd.f32 0.0, %v2772
        %v2774 = vpop.f32.mrb[0].mxu0
        %2775 = vmatprep.mubr.bf16.mxu0 0
        %2776 = vmatmul.mubr.bf16.gmra.mrb[0].mxu0 %v2601
        %v2777 = vpop.f32.mrb[0].mxu0
        %v2778 = vadd.f32 0.0, %v2777
        %v2779 = vpop.f32.mrb[0].mxu0
        %v2780 = vpop.f32.mrb[0].mxu0
        %v2781 = vadd.f32 0.0, %v2780
        %v2782 = vpop.f32.mrb[0].mxu0
        %2783 = vmatprep.mubr.bf16.mxu0 0
        %2784 = vmatmul.mubr.bf16.gmra.mrb[0].mxu0 %v2604
        %v2785 = vpop.f32.mrb[0].mxu0
        %v2786 = vadd.f32 0.0, %v2785
        %v2787 = vpop.f32.mrb[0].mxu0
        %v2788 = vpop.f32.mrb[0].mxu0
        %v2789 = vpop.f32.mrb[0].mxu0
        %2790 = vdwg.mxu0
        %v2791 = vadd.f32 %v2436, %v2641
        %v2792 = vadd.f32 %v2437, %v2644
        %v2793 = vadd.f32 %v2438, %v2649
        %v2794 = vadd.f32 %v2439, %v2652
        %v2795 = vadd.f32 %v2440, %v2659
        %v2796 = vadd.f32 %v2441, %v2664
        %v2797 = vadd.f32 %v2442, %v2667
        %v2798 = vadd.f32 %v2443, %v2672
        %v2799 = vadd.f32 %v2444, %v2679
        %v2800 = vadd.f32 %v2445, %v2682
        %v2801 = vadd.f32 %v2446, %v2687
        %v2802 = vadd.f32 %v2447, %v2690
        %v2803 = vadd.f32 %v2448, %v2697
        %v2804 = vadd.f32 %v2449, %v2702
        %v2805 = vadd.f32 %v2450, %v2705
        %v2806 = vadd.f32 %v2451, %v2710
        %v2807 = vadd.f32 %v2452, %v2717
        %v2808 = vadd.f32 %v2453, %v2720
        %v2809 = vadd.f32 %v2454, %v2725
        %v2810 = vadd.f32 %v2455, %v2728
        %v2811 = vadd.f32 %v2456, %v2735
        %v2812 = vadd.f32 %v2457, %v2740
        %v2813 = vadd.f32 %v2458, %v2743
        %v2814 = vadd.f32 %v2459, %v2748
        %v2815 = vadd.f32 %v2460, %v2755
        %v2816 = vadd.f32 %v2461, %v2758
        %v2817 = vadd.f32 %v2462, %v2763
        %v2818 = vadd.f32 %v2463, %v2766
        %v2819 = vadd.f32 %v2464, %v2773
        %v2820 = vadd.f32 %v2465, %v2778
        %v2821 = vadd.f32 %v2466, %v2781
        %v2822 = vadd.f32 %v2467, %v2786
        %v2823 = vld [vmem:[%s196 + $0x28] sm:$0xf]
        %v2824 = vld [vmem:[%s196 + $0x2c] sm:$0xf]
        %v2825 = vld [vmem:[%s196 + $0x30] sm:$0xf]
        %v2826 = vld [vmem:[%s196 + $0x34] sm:$0xf]
        %v2827 = vld [vmem:[%s196 + $0x38] sm:$0xf]
        %v2828 = vld [vmem:[%s196 + $0x3c] sm:$0xf]
        %v2829 = vld [vmem:[%s196 + $0x40] sm:$0xf]
        %v2830 = vld [vmem:[%s196 + $0x44] sm:$0xf]
        %v2831 = vld [vmem:[%s196 + $0x48] sm:$0xf]
        %v2832 = vld [vmem:[%s196 + $0x4c] sm:$0xf]
        %v2833 = vld [vmem:[%s196 + $0x50] sm:$0xf]
        %v2834 = vld [vmem:[%s196 + $0x54] sm:$0xf]
        %v2835 = vld [vmem:[%s196 + $0x58] sm:$0xf]
        %v2836 = vld [vmem:[%s196 + $0x5c] sm:$0xf]
        %v2837 = vld [vmem:[%s196 + $0x60] sm:$0xf]
        %v2838 = vld [vmem:[%s196 + $0x64] sm:$0xf]
        %v2839 = vld [vmem:[%s196 + $0x68] sm:$0xf]
        %v2840 = vld [vmem:[%s196 + $0x6c] sm:$0xf]
        %v2841 = vld [vmem:[%s196 + $0x70] sm:$0xf]
        %v2842 = vld [vmem:[%s196 + $0x74] sm:$0xf]
        %v2843 = vld [vmem:[%s196 + $0x78] sm:$0xf]
        %v2844 = vld [vmem:[%s196 + $0x7c] sm:$0xf]
        %v2845 = vld [vmem:[%s196 + $0x80] sm:$0xf]
        %v2846 = vld [vmem:[%s196 + $0x84] sm:$0xf]
        %v2847 = vld [vmem:[%s196 + $0x88] sm:$0xf]
        %v2848 = vld [vmem:[%s196 + $0x8c] sm:$0xf]
        %v2849 = vld [vmem:[%s196 + $0x90] sm:$0xf]
        %v2850 = vld [vmem:[%s196 + $0x94] sm:$0xf]
        %v2851 = vld [vmem:[%s196 + $0x98] sm:$0xf]
        %v2852 = vld [vmem:[%s196 + $0x9c] sm:$0xf]
        %v2853 = vld [vmem:[%s196 + $0xa0] sm:$0xf]
        %v2854 = vld [vmem:[%s196 + $0xa4] sm:$0xf]
        %v2855 = vld [vmem:[%s196 + $0xa8] sm:$0xf]
        %v2856 = vld [vmem:[%s196 + $0xac] sm:$0xf]
        %v2857 = vld [vmem:[%s196 + $0xb0] sm:$0xf]
        %v2858 = vld [vmem:[%s196 + $0xb4] sm:$0xf]
        %v2859 = vld [vmem:[%s196 + $0xb8] sm:$0xf]
        %v2860 = vld [vmem:[%s196 + $0xbc] sm:$0xf]
        %v2861 = vld [vmem:[%s196 + $0xc0] sm:$0xf]
        %v2862 = vld [vmem:[%s196 + $0xc4] sm:$0xf]
        %s2863 = scalar_lea.vmem %s1, 192
        %v2864 = vld [vmem:[%s2863] sm:$0xf]
        %v2865 = vld [vmem:[%s2863 + $0x4] sm:$0xf]
        %v2866 = vld [vmem:[%s2863 + $0x8] sm:$0xf]
        %v2867 = vld [vmem:[%s2863 + $0xc] sm:$0xf]
        %v2868 = vld [vmem:[%s2863 + $0x10] sm:$0xf]
        %v2869 = vld [vmem:[%s2863 + $0x14] sm:$0xf]
        %v2870 = vld [vmem:[%s2863 + $0x18] sm:$0xf]
        %v2871 = vld [vmem:[%s2863 + $0x1c] sm:$0xf]
        %v2912 = vunpack.c.l.b16 %v2823
        %v2913 = vunpack.c.l.b16 %v2824
        %v2914 = vunpack.c.l.b16 %v2825
        %v2915 = vunpack.c.l.b16 %v2826
        %v2916 = vunpack.c.l.b16 %v2827
        %v2917 = vunpack.c.l.b16 %v2828
        %v2918 = vunpack.c.l.b16 %v2829
        %v2919 = vunpack.c.l.b16 %v2830
        %v2920 = vunpack.c.l.b16 %v2831
        %v2921 = vunpack.c.l.b16 %v2832
        %v2922 = vunpack.c.l.b16 %v2833
        %v2923 = vunpack.c.l.b16 %v2834
        %v2924 = vunpack.c.l.b16 %v2835
        %v2925 = vunpack.c.l.b16 %v2836
        %v2926 = vunpack.c.l.b16 %v2837
        %v2927 = vunpack.c.l.b16 %v2838
        %v2928 = vunpack.c.l.b16 %v2839
        %v2929 = vunpack.c.l.b16 %v2840
        %v2930 = vunpack.c.l.b16 %v2841
        %v2931 = vunpack.c.l.b16 %v2842
        %v2932 = vunpack.c.l.b16 %v2843
        %v2933 = vunpack.c.l.b16 %v2844
        %v2934 = vunpack.c.l.b16 %v2845
        %v2935 = vunpack.c.l.b16 %v2846
        %v2936 = vunpack.c.l.b16 %v2847
        %v2937 = vunpack.c.l.b16 %v2848
        %v2938 = vunpack.c.l.b16 %v2849
        %v2939 = vunpack.c.l.b16 %v2850
        %v2940 = vunpack.c.l.b16 %v2851
        %v2941 = vunpack.c.l.b16 %v2852
        %v2942 = vunpack.c.l.b16 %v2853
        %v2943 = vunpack.c.l.b16 %v2854
        %v2944 = vunpack.c.l.b16 %v2855
        %v2945 = vunpack.c.l.b16 %v2856
        %v2946 = vunpack.c.l.b16 %v2857
        %v2947 = vunpack.c.l.b16 %v2858
        %v2948 = vunpack.c.l.b16 %v2859
        %v2949 = vunpack.c.l.b16 %v2860
        %v2950 = vunpack.c.l.b16 %v2861
        %v2951 = vunpack.c.l.b16 %v2862
        %v2952 = vpack.c.b16 %v2913, %v2912
        %v2953 = vpack.c.b16 %v2915, %v2914
        %v2954 = vpack.c.b16 %v2917, %v2916
        %v2955 = vpack.c.b16 %v2919, %v2918
        %v2956 = vpack.c.b16 %v2921, %v2920
        %v2957 = vpack.c.b16 %v2923, %v2922
        %v2958 = vpack.c.b16 %v2925, %v2924
        %v2959 = vpack.c.b16 %v2927, %v2926
        %v2960 = vpack.c.b16 %v2929, %v2928
        %v2961 = vpack.c.b16 %v2931, %v2930
        %v2962 = vpack.c.b16 %v2933, %v2932
        %v2963 = vpack.c.b16 %v2935, %v2934
        %v2964 = vpack.c.b16 %v2937, %v2936
        %v2965 = vpack.c.b16 %v2939, %v2938
        %v2966 = vpack.c.b16 %v2941, %v2940
        %v2967 = vpack.c.b16 %v2943, %v2942
        %v2968 = vpack.c.b16 %v2945, %v2944
        %v2969 = vpack.c.b16 %v2947, %v2946
        %v2970 = vpack.c.b16 %v2949, %v2948
        %v2971 = vpack.c.b16 %v2951, %v2950
        %v2980 = vunpack.c.l.b16 %v2864
        %v2981 = vunpack.c.l.b16 %v2865
        %v2982 = vunpack.c.l.b16 %v2866
        %v2983 = vunpack.c.l.b16 %v2867
        %v2984 = vunpack.c.l.b16 %v2868
        %v2985 = vunpack.c.l.b16 %v2869
        %v2986 = vunpack.c.l.b16 %v2870
        %v2987 = vunpack.c.l.b16 %v2871
        %v2988 = vpack.c.b16 %v2981, %v2980
        %v2989 = vpack.c.b16 %v2983, %v2982
        %v2990 = vpack.c.b16 %v2985, %v2984
        %v2991 = vpack.c.b16 %v2987, %v2986
        %v2997 = vsel %vm549, %v2952, 0
        %v3000 = vsel %vm549, %v2953, 0
        %v3003 = vsel %vm549, %v2954, 0
        %v3006 = vsel %vm549, %v2955, 0
        %v3009 = vsel %vm549, %v2956, 0
        %v3012 = vsel %vm549, %v2957, 0
        %v3015 = vsel %vm549, %v2958, 0
        %v3018 = vsel %vm549, %v2959, 0
        %v3021 = vsel %vm549, %v2960, 0
        %v3024 = vsel %vm549, %v2961, 0
        %v3027 = vsel %vm549, %v2962, 0
        %v3030 = vsel %vm549, %v2963, 0
        %v3033 = vsel %vm549, %v2964, 0
        %v3036 = vsel %vm549, %v2965, 0
        %v3039 = vsel %vm549, %v2966, 0
        %v3042 = vsel %vm549, %v2967, 0
        %v3045 = vsel %vm549, %v2968, 0
        %v3048 = vsel %vm549, %v2969, 0
        %v3051 = vsel %vm549, %v2970, 0
        %v3054 = vsel %vm549, %v2971, 0
        %3056 = vmatprep.subr.bf16.mxu0 0
        %3057 = vmatpush1.bf16.msra.mxu0 %v2988
        %3058 = vmatprep.subr.bf16.mxu0 0
        %3059 = vmatpush1.bf16.msra.mxu0 %v2989
        %3060 = vmatprep.subr.bf16.mxu0 0
        %3061 = vmatpush1.bf16.msra.mxu0 %v2990
        %3062 = vmatprep.subr.bf16.mxu0 0
        %3063 = vmatpush1.bf16.msra.mxu0 %v2991
        %3064 = vmatprep.subr.bf16.mxu0 0
        %3065 = vmatpush1.bf16.msra.mxu0 0
        %3066 = vmatprep.subr.bf16.mxu0 0
        %3067 = vmatpush1.bf16.msra.mxu0 0
        %3068 = vmatprep.subr.bf16.mxu0 0
        %3069 = vmatpush1.bf16.msra.mxu0 0
        %3070 = vmatprep.subr.bf16.mxu0 0
        %3071 = vmatpush1.bf16.msra.mxu0 0
        %3072 = vmatprep.subr.bf16.mxu0 0
        %3073 = vmatpush1.bf16.msra.mxu0 0
        %3074 = vmatprep.subr.bf16.mxu0 0
        %3075 = vmatpush1.bf16.msra.mxu0 0
        %3076 = vmatprep.subr.bf16.mxu0 0
        %3077 = vmatpush1.bf16.msra.mxu0 0
        %3078 = vmatprep.subr.bf16.mxu0 0
        %3079 = vmatpush1.bf16.msra.mxu0 0
        %3080 = vmatprep.subr.bf16.mxu0 0
        %3081 = vmatpush1.bf16.msra.mxu0 0
        %3082 = vmatprep.subr.bf16.mxu0 0
        %3083 = vmatpush1.bf16.msra.mxu0 0
        %3084 = vmatprep.subr.bf16.mxu0 0
        %3085 = vmatpush1.bf16.msra.mxu0 0
        %3086 = vmatprep.subr.bf16.mxu0 0
        %3087 = vmatpush1.bf16.msra.mxu0 0
        %3088 = vmatprep.mubr.bf16.mxu0 0
        %3089 = vmatmul.mubr.bf16.gmra.mrb[0].mxu0 %v2997
        %v3090 = vpop.f32.mrb[0].mxu0
        %v3091 = vadd.f32 0.0, %v3090
        %v3092 = vpop.f32.mrb[0].mxu0
        %v3093 = vpop.f32.mrb[0].mxu0
        %v3094 = vadd.f32 0.0, %v3093
        %v3095 = vpop.f32.mrb[0].mxu0
        %3096 = vmatprep.mubr.bf16.mxu0 0
        %3097 = vmatmul.mubr.bf16.gmra.mrb[0].mxu0 %v3000
        %v3098 = vpop.f32.mrb[0].mxu0
        %v3099 = vadd.f32 0.0, %v3098
        %v3100 = vpop.f32.mrb[0].mxu0
        %v3101 = vpop.f32.mrb[0].mxu0
        %v3102 = vadd.f32 0.0, %v3101
        %v3103 = vpop.f32.mrb[0].mxu0
        %3104 = vmatprep.mubr.bf16.mxu0 0
        %3105 = vmatmul.mubr.bf16.gmra.mrb[0].mxu0 %v3003
        %v3106 = vpop.f32.mrb[0].mxu0
        %v3107 = vpop.f32.mrb[0].mxu0
        %v3108 = vpop.f32.mrb[0].mxu0
        %v3109 = vadd.f32 0.0, %v3108
        %v3110 = vpop.f32.mrb[0].mxu0
        %3111 = vmatprep.mubr.bf16.mxu0 0
        %3112 = vmatmul.mubr.bf16.gmra.mrb[0].mxu0 %v3006
        %v3113 = vpop.f32.mrb[0].mxu0
        %v3114 = vadd.f32 0.0, %v3113
        %v3115 = vpop.f32.mrb[0].mxu0
        %v3116 = vpop.f32.mrb[0].mxu0
        %v3117 = vadd.f32 0.0, %v3116
        %v3118 = vpop.f32.mrb[0].mxu0
        %3119 = vmatprep.mubr.bf16.mxu0 0
        %3120 = vmatmul.mubr.bf16.gmra.mrb[0].mxu0 %v3009
        %v3121 = vpop.f32.mrb[0].mxu0
        %v3122 = vadd.f32 0.0, %v3121
        %v3123 = vpop.f32.mrb[0].mxu0
        %v3124 = vpop.f32.mrb[0].mxu0
        %v3125 = vpop.f32.mrb[0].mxu0
        %3126 = vmatprep.mubr.bf16.mxu0 0
        %3127 = vmatmul.mubr.bf16.gmra.mrb[0].mxu0 %v3012
        %v3128 = vpop.f32.mrb[0].mxu0
        %v3129 = vadd.f32 0.0, %v3128
        %v3130 = vpop.f32.mrb[0].mxu0
        %v3131 = vpop.f32.mrb[0].mxu0
        %v3132 = vadd.f32 0.0, %v3131
        %v3133 = vpop.f32.mrb[0].mxu0
        %3134 = vmatprep.mubr.bf16.mxu0 0
        %3135 = vmatmul.mubr.bf16.gmra.mrb[0].mxu0 %v3015
        %v3136 = vpop.f32.mrb[0].mxu0
        %v3137 = vadd.f32 0.0, %v3136
        %v3138 = vpop.f32.mrb[0].mxu0
        %v3139 = vpop.f32.mrb[0].mxu0
        %v3140 = vadd.f32 0.0, %v3139
        %v3141 = vpop.f32.mrb[0].mxu0
        %3142 = vmatprep.mubr.bf16.mxu0 0
        %3143 = vmatmul.mubr.bf16.gmra.mrb[0].mxu0 %v3018
        %v3144 = vpop.f32.mrb[0].mxu0
        %v3145 = vpop.f32.mrb[0].mxu0
        %v3146 = vpop.f32.mrb[0].mxu0
        %v3147 = vadd.f32 0.0, %v3146
        %v3148 = vpop.f32.mrb[0].mxu0
        %3149 = vmatprep.mubr.bf16.mxu0 0
        %3150 = vmatmul.mubr.bf16.gmra.mrb[0].mxu0 %v3021
        %v3151 = vpop.f32.mrb[0].mxu0
        %v3152 = vadd.f32 0.0, %v3151
        %v3153 = vpop.f32.mrb[0].mxu0
        %v3154 = vpop.f32.mrb[0].mxu0
        %v3155 = vadd.f32 0.0, %v3154
        %v3156 = vpop.f32.mrb[0].mxu0
        %3157 = vmatprep.mubr.bf16.mxu0 0
        %3158 = vmatmul.mubr.bf16.gmra.mrb[0].mxu0 %v3024
        %v3159 = vpop.f32.mrb[0].mxu0
        %v3160 = vadd.f32 0.0, %v3159
        %v3161 = vpop.f32.mrb[0].mxu0
        %v3162 = vpop.f32.mrb[0].mxu0
        %v3163 = vpop.f32.mrb[0].mxu0
        %3164 = vmatprep.mubr.bf16.mxu0 0
        %3165 = vmatmul.mubr.bf16.gmra.mrb[0].mxu0 %v3027
        %v3166 = vpop.f32.mrb[0].mxu0
        %v3167 = vadd.f32 0.0, %v3166
        %v3168 = vpop.f32.mrb[0].mxu0
        %v3169 = vpop.f32.mrb[0].mxu0
        %v3170 = vadd.f32 0.0, %v3169
        %v3171 = vpop.f32.mrb[0].mxu0
        %3172 = vmatprep.mubr.bf16.mxu0 0
        %3173 = vmatmul.mubr.bf16.gmra.mrb[0].mxu0 %v3030
        %v3174 = vpop.f32.mrb[0].mxu0
        %v3175 = vadd.f32 0.0, %v3174
        %v3176 = vpop.f32.mrb[0].mxu0
        %v3177 = vpop.f32.mrb[0].mxu0
        %v3178 = vadd.f32 0.0, %v3177
        %v3179 = vpop.f32.mrb[0].mxu0
        %3180 = vmatprep.mubr.bf16.mxu0 0
        %3181 = vmatmul.mubr.bf16.gmra.mrb[0].mxu0 %v3033
        %v3182 = vpop.f32.mrb[0].mxu0
        %v3183 = vpop.f32.mrb[0].mxu0
        %v3184 = vpop.f32.mrb[0].mxu0
        %v3185 = vadd.f32 0.0, %v3184
        %v3186 = vpop.f32.mrb[0].mxu0
        %3187 = vmatprep.mubr.bf16.mxu0 0
        %3188 = vmatmul.mubr.bf16.gmra.mrb[0].mxu0 %v3036
        %v3189 = vpop.f32.mrb[0].mxu0
        %v3190 = vadd.f32 0.0, %v3189
        %v3191 = vpop.f32.mrb[0].mxu0
        %v3192 = vpop.f32.mrb[0].mxu0
        %v3193 = vadd.f32 0.0, %v3192
        %v3194 = vpop.f32.mrb[0].mxu0
        %3195 = vmatprep.mubr.bf16.mxu0 0
        %3196 = vmatmul.mubr.bf16.gmra.mrb[0].mxu0 %v3039
        %v3197 = vpop.f32.mrb[0].mxu0
        %v3198 = vadd.f32 0.0, %v3197
        %v3199 = vpop.f32.mrb[0].mxu0
        %v3200 = vpop.f32.mrb[0].mxu0
        %v3201 = vpop.f32.mrb[0].mxu0
        %3202 = vmatprep.mubr.bf16.mxu0 0
        %3203 = vmatmul.mubr.bf16.gmra.mrb[0].mxu0 %v3042
        %v3204 = vpop.f32.mrb[0].mxu0
        %v3205 = vadd.f32 0.0, %v3204
        %v3206 = vpop.f32.mrb[0].mxu0
        %v3207 = vpop.f32.mrb[0].mxu0
        %v3208 = vadd.f32 0.0, %v3207
        %v3209 = vpop.f32.mrb[0].mxu0
        %3210 = vmatprep.mubr.bf16.mxu0 0
        %3211 = vmatmul.mubr.bf16.gmra.mrb[0].mxu0 %v3045
        %v3212 = vpop.f32.mrb[0].mxu0
        %v3213 = vadd.f32 0.0, %v3212
        %v3214 = vpop.f32.mrb[0].mxu0
        %v3215 = vpop.f32.mrb[0].mxu0
        %v3216 = vadd.f32 0.0, %v3215
        %v3217 = vpop.f32.mrb[0].mxu0
        %3218 = vmatprep.mubr.bf16.mxu0 0
        %3219 = vmatmul.mubr.bf16.gmra.mrb[0].mxu0 %v3048
        %v3220 = vpop.f32.mrb[0].mxu0
        %v3221 = vpop.f32.mrb[0].mxu0
        %v3222 = vpop.f32.mrb[0].mxu0
        %v3223 = vadd.f32 0.0, %v3222
        %v3224 = vpop.f32.mrb[0].mxu0
        %3225 = vmatprep.mubr.bf16.mxu0 0
        %3226 = vmatmul.mubr.bf16.gmra.mrb[0].mxu0 %v3051
        %v3227 = vpop.f32.mrb[0].mxu0
        %v3228 = vadd.f32 0.0, %v3227
        %v3229 = vpop.f32.mrb[0].mxu0
        %v3230 = vpop.f32.mrb[0].mxu0
        %v3231 = vadd.f32 0.0, %v3230
        %v3232 = vpop.f32.mrb[0].mxu0
        %3233 = vmatprep.mubr.bf16.mxu0 0
        %3234 = vmatmul.mubr.bf16.gmra.mrb[0].mxu0 %v3054
        %v3235 = vpop.f32.mrb[0].mxu0
        %v3236 = vadd.f32 0.0, %v3235
        %v3237 = vpop.f32.mrb[0].mxu0
        %v3238 = vpop.f32.mrb[0].mxu0
        %v3239 = vpop.f32.mrb[0].mxu0
        %3240 = vdwg.mxu0
        %v3241 = vadd.f32 %v2791, %v3091
        %v3242 = vadd.f32 %v2792, %v3094
        %v3243 = vadd.f32 %v2793, %v3099
        %v3244 = vadd.f32 %v2794, %v3102
        %v3245 = vadd.f32 %v2795, %v3109
        %v3246 = vadd.f32 %v2796, %v3114
        %v3247 = vadd.f32 %v2797, %v3117
        %v3248 = vadd.f32 %v2798, %v3122
        %v3249 = vadd.f32 %v2799, %v3129
        %v3250 = vadd.f32 %v2800, %v3132
        %v3251 = vadd.f32 %v2801, %v3137
        %v3252 = vadd.f32 %v2802, %v3140
        %v3253 = vadd.f32 %v2803, %v3147
        %v3254 = vadd.f32 %v2804, %v3152
        %v3255 = vadd.f32 %v2805, %v3155
        %v3256 = vadd.f32 %v2806, %v3160
        %v3257 = vadd.f32 %v2807, %v3167
        %v3258 = vadd.f32 %v2808, %v3170
        %v3259 = vadd.f32 %v2809, %v3175
        %v3260 = vadd.f32 %v2810, %v3178
        %v3261 = vadd.f32 %v2811, %v3185
        %v3262 = vadd.f32 %v2812, %v3190
        %v3263 = vadd.f32 %v2813, %v3193
        %v3264 = vadd.f32 %v2814, %v3198
        %v3265 = vadd.f32 %v2815, %v3205
        %v3266 = vadd.f32 %v2816, %v3208
        %v3267 = vadd.f32 %v2817, %v3213
        %v3268 = vadd.f32 %v2818, %v3216
        %v3269 = vadd.f32 %v2819, %v3223
        %v3270 = vadd.f32 %v2820, %v3228
        %v3271 = vadd.f32 %v2821, %v3231
        %v3272 = vadd.f32 %v2822, %v3236
        %v3273 = vld [vmem:[%s196 + $0x28] sm:$0xf]
        %v3274 = vld [vmem:[%s196 + $0x2c] sm:$0xf]
        %v3275 = vld [vmem:[%s196 + $0x30] sm:$0xf]
        %v3276 = vld [vmem:[%s196 + $0x34] sm:$0xf]
        %v3277 = vld [vmem:[%s196 + $0x38] sm:$0xf]
        %v3278 = vld [vmem:[%s196 + $0x3c] sm:$0xf]
        %v3279 = vld [vmem:[%s196 + $0x40] sm:$0xf]
        %v3280 = vld [vmem:[%s196 + $0x44] sm:$0xf]
        %v3281 = vld [vmem:[%s196 + $0x48] sm:$0xf]
        %v3282 = vld [vmem:[%s196 + $0x4c] sm:$0xf]
        %v3283 = vld [vmem:[%s196 + $0x50] sm:$0xf]
        %v3284 = vld [vmem:[%s196 + $0x54] sm:$0xf]
        %v3285 = vld [vmem:[%s196 + $0x58] sm:$0xf]
        %v3286 = vld [vmem:[%s196 + $0x5c] sm:$0xf]
        %v3287 = vld [vmem:[%s196 + $0x60] sm:$0xf]
        %v3288 = vld [vmem:[%s196 + $0x64] sm:$0xf]
        %v3289 = vld [vmem:[%s196 + $0x68] sm:$0xf]
        %v3290 = vld [vmem:[%s196 + $0x6c] sm:$0xf]
        %v3291 = vld [vmem:[%s196 + $0x70] sm:$0xf]
        %v3292 = vld [vmem:[%s196 + $0x74] sm:$0xf]
        %v3293 = vld [vmem:[%s196 + $0x78] sm:$0xf]
        %v3294 = vld [vmem:[%s196 + $0x7c] sm:$0xf]
        %v3295 = vld [vmem:[%s196 + $0x80] sm:$0xf]
        %v3296 = vld [vmem:[%s196 + $0x84] sm:$0xf]
        %v3297 = vld [vmem:[%s196 + $0x88] sm:$0xf]
        %v3298 = vld [vmem:[%s196 + $0x8c] sm:$0xf]
        %v3299 = vld [vmem:[%s196 + $0x90] sm:$0xf]
        %v3300 = vld [vmem:[%s196 + $0x94] sm:$0xf]
        %v3301 = vld [vmem:[%s196 + $0x98] sm:$0xf]
        %v3302 = vld [vmem:[%s196 + $0x9c] sm:$0xf]
        %v3303 = vld [vmem:[%s196 + $0xa0] sm:$0xf]
        %v3304 = vld [vmem:[%s196 + $0xa4] sm:$0xf]
        %v3305 = vld [vmem:[%s196 + $0xa8] sm:$0xf]
        %v3306 = vld [vmem:[%s196 + $0xac] sm:$0xf]
        %v3307 = vld [vmem:[%s196 + $0xb0] sm:$0xf]
        %v3308 = vld [vmem:[%s196 + $0xb4] sm:$0xf]
        %v3309 = vld [vmem:[%s196 + $0xb8] sm:$0xf]
        %v3310 = vld [vmem:[%s196 + $0xbc] sm:$0xf]
        %v3311 = vld [vmem:[%s196 + $0xc0] sm:$0xf]
        %v3312 = vld [vmem:[%s196 + $0xc4] sm:$0xf]
        %v3313 = vld [vmem:[%s196 + $0xc8] sm:$0x1]
        %s3314 = scalar_lea.vmem %s1, 224
        %v3315 = vld [vmem:[%s3314] sm:$0xf]
        %v3316 = vld [vmem:[%s3314 + $0x4] sm:$0xf]
        %v3317 = vld [vmem:[%s3314 + $0x8] sm:$0xf]
        %v3318 = vld [vmem:[%s3314 + $0xc] sm:$0xf]
        %v3319 = vld [vmem:[%s3314 + $0x10] sm:$0xf]
        %v3320 = vld [vmem:[%s3314 + $0x14] sm:$0xf]
        %v3321 = vld [vmem:[%s3314 + $0x18] sm:$0xf]
        %v3322 = vld [vmem:[%s3314 + $0x1c] sm:$0xf]
        %v3364 = vunpack.c.l.b16 %v3273
        %v3365 = vunpack.c.l.b16 %v3274
        %v3366 = vunpack.c.l.b16 %v3275
        %v3367 = vunpack.c.l.b16 %v3276
        %v3368 = vunpack.c.l.b16 %v3277
        %v3369 = vunpack.c.l.b16 %v3278
        %v3370 = vunpack.c.l.b16 %v3279
        %v3371 = vunpack.c.l.b16 %v3280
        %v3372 = vunpack.c.l.b16 %v3281
        %v3373 = vunpack.c.l.b16 %v3282
        %v3374 = vunpack.c.l.b16 %v3283
        %v3375 = vunpack.c.l.b16 %v3284
        %v3376 = vunpack.c.l.b16 %v3285
        %v3377 = vunpack.c.l.b16 %v3286
        %v3378 = vunpack.c.l.b16 %v3287
        %v3379 = vunpack.c.l.b16 %v3288
        %v3380 = vunpack.c.l.b16 %v3289
        %v3381 = vunpack.c.l.b16 %v3290
        %v3382 = vunpack.c.l.b16 %v3291
        %v3383 = vunpack.c.l.b16 %v3292
        %v3384 = vunpack.c.l.b16 %v3293
        %v3385 = vunpack.c.l.b16 %v3294
        %v3386 = vunpack.c.l.b16 %v3295
        %v3387 = vunpack.c.l.b16 %v3296
        %v3388 = vunpack.c.l.b16 %v3297
        %v3389 = vunpack.c.l.b16 %v3298
        %v3390 = vunpack.c.l.b16 %v3299
        %v3391 = vunpack.c.l.b16 %v3300
        %v3392 = vunpack.c.l.b16 %v3301
        %v3393 = vunpack.c.l.b16 %v3302
        %v3394 = vunpack.c.l.b16 %v3303
        %v3395 = vunpack.c.l.b16 %v3304
        %v3396 = vunpack.c.l.b16 %v3305
        %v3397 = vunpack.c.l.b16 %v3306
        %v3398 = vunpack.c.l.b16 %v3307
        %v3399 = vunpack.c.l.b16 %v3308
        %v3400 = vunpack.c.l.b16 %v3309
        %v3401 = vunpack.c.l.b16 %v3310
        %v3402 = vunpack.c.l.b16 %v3311
        %v3403 = vunpack.c.l.b16 %v3312
        %v3404 = vunpack.c.l.b16 %v3313
        %v3405 = vpack.c.b16 %v3365, %v3364
        %v3406 = vpack.c.b16 %v3367, %v3366
        %v3407 = vpack.c.b16 %v3369, %v3368
        %v3408 = vpack.c.b16 %v3371, %v3370
        %v3409 = vpack.c.b16 %v3373, %v3372
        %v3410 = vpack.c.b16 %v3375, %v3374
        %v3411 = vpack.c.b16 %v3377, %v3376
        %v3412 = vpack.c.b16 %v3379, %v3378
        %v3413 = vpack.c.b16 %v3381, %v3380
        %v3414 = vpack.c.b16 %v3383, %v3382
        %v3415 = vpack.c.b16 %v3385, %v3384
        %v3416 = vpack.c.b16 %v3387, %v3386
        %v3417 = vpack.c.b16 %v3389, %v3388
        %v3418 = vpack.c.b16 %v3391, %v3390
        %v3419 = vpack.c.b16 %v3393, %v3392
        %v3420 = vpack.c.b16 %v3395, %v3394
        %v3421 = vpack.c.b16 %v3397, %v3396
        %v3422 = vpack.c.b16 %v3399, %v3398
        %v3423 = vpack.c.b16 %v3401, %v3400
        %v3424 = vpack.c.b16 %v3403, %v3402
        %v3425 = vpack.c.b16 %v3404, %v3404
        %v3427 = vshrl.u32 %v3405, 16
        %v3429 = vshll.u32 %v3405, 16
        %v3431 = vrot.slane %v3429, 1
        %v3432 = vor.u32 %v3427, %v3431
        %v3434 = vshll.u32 %v3406, 16
        %v3436 = vrot.slane %v3434, 1
        %v3437 = vsel %vm360, %v3432, %v3436
        %v3438 = vshrl.u32 %v3406, 16
        %v3440 = vor.u32 %v3438, %v3436
        %v3442 = vshll.u32 %v3407, 16
        %v3444 = vrot.slane %v3442, 1
        %v3445 = vsel %vm360, %v3440, %v3444
        %v3446 = vshrl.u32 %v3407, 16
        %v3448 = vor.u32 %v3446, %v3444
        %v3450 = vshll.u32 %v3408, 16
        %v3452 = vrot.slane %v3450, 1
        %v3453 = vsel %vm360, %v3448, %v3452
        %v3454 = vshrl.u32 %v3408, 16
        %v3456 = vor.u32 %v3454, %v3452
        %v3458 = vshll.u32 %v3409, 16
        %v3460 = vrot.slane %v3458, 1
        %v3461 = vsel %vm360, %v3456, %v3460
        %v3462 = vshrl.u32 %v3409, 16
        %v3464 = vor.u32 %v3462, %v3460
        %v3466 = vshll.u32 %v3410, 16
        %v3468 = vrot.slane %v3466, 1
        %v3469 = vsel %vm360, %v3464, %v3468
        %v3470 = vshrl.u32 %v3410, 16
        %v3472 = vor.u32 %v3470, %v3468
        %v3474 = vshll.u32 %v3411, 16
        %v3476 = vrot.slane %v3474, 1
        %v3477 = vsel %vm360, %v3472, %v3476
        %v3478 = vshrl.u32 %v3411, 16
        %v3480 = vor.u32 %v3478, %v3476
        %v3482 = vshll.u32 %v3412, 16
        %v3484 = vrot.slane %v3482, 1
        %v3485 = vsel %vm360, %v3480, %v3484
        %v3486 = vshrl.u32 %v3412, 16
        %v3488 = vor.u32 %v3486, %v3484
        %v3490 = vshll.u32 %v3413, 16
        %v3492 = vrot.slane %v3490, 1
        %v3493 = vsel %vm360, %v3488, %v3492
        %v3494 = vshrl.u32 %v3413, 16
        %v3496 = vor.u32 %v3494, %v3492
        %v3498 = vshll.u32 %v3414, 16
        %v3500 = vrot.slane %v3498, 1
        %v3501 = vsel %vm360, %v3496, %v3500
        %v3502 = vshrl.u32 %v3414, 16
        %v3504 = vor.u32 %v3502, %v3500
        %v3506 = vshll.u32 %v3415, 16
        %v3508 = vrot.slane %v3506, 1
        %v3509 = vsel %vm360, %v3504, %v3508
        %v3510 = vshrl.u32 %v3415, 16
        %v3512 = vor.u32 %v3510, %v3508
        %v3514 = vshll.u32 %v3416, 16
        %v3516 = vrot.slane %v3514, 1
        %v3517 = vsel %vm360, %v3512, %v3516
        %v3518 = vshrl.u32 %v3416, 16
        %v3520 = vor.u32 %v3518, %v3516
        %v3522 = vshll.u32 %v3417, 16
        %v3524 = vrot.slane %v3522, 1
        %v3525 = vsel %vm360, %v3520, %v3524
        %v3526 = vshrl.u32 %v3417, 16
        %v3528 = vor.u32 %v3526, %v3524
        %v3530 = vshll.u32 %v3418, 16
        %v3532 = vrot.slane %v3530, 1
        %v3533 = vsel %vm360, %v3528, %v3532
        %v3534 = vshrl.u32 %v3418, 16
        %v3536 = vor.u32 %v3534, %v3532
        %v3538 = vshll.u32 %v3419, 16
        %v3540 = vrot.slane %v3538, 1
        %v3541 = vsel %vm360, %v3536, %v3540
        %v3542 = vshrl.u32 %v3419, 16
        %v3544 = vor.u32 %v3542, %v3540
        %v3546 = vshll.u32 %v3420, 16
        %v3548 = vrot.slane %v3546, 1
        %v3549 = vsel %vm360, %v3544, %v3548
        %v3550 = vshrl.u32 %v3420, 16
        %v3552 = vor.u32 %v3550, %v3548
        %v3554 = vshll.u32 %v3421, 16
        %v3556 = vrot.slane %v3554, 1
        %v3557 = vsel %vm360, %v3552, %v3556
        %v3558 = vshrl.u32 %v3421, 16
        %v3560 = vor.u32 %v3558, %v3556
        %v3562 = vshll.u32 %v3422, 16
        %v3564 = vrot.slane %v3562, 1
        %v3565 = vsel %vm360, %v3560, %v3564
        %v3566 = vshrl.u32 %v3422, 16
        %v3568 = vor.u32 %v3566, %v3564
        %v3570 = vshll.u32 %v3423, 16
        %v3572 = vrot.slane %v3570, 1
        %v3573 = vsel %vm360, %v3568, %v3572
        %v3574 = vshrl.u32 %v3423, 16
        %v3576 = vor.u32 %v3574, %v3572
        %v3578 = vshll.u32 %v3424, 16
        %v3580 = vrot.slane %v3578, 1
        %v3581 = vsel %vm360, %v3576, %v3580
        %v3582 = vshrl.u32 %v3424, 16
        %v3584 = vor.u32 %v3582, %v3580
        %v3586 = vshll.u32 %v3425, 16
        %v3588 = vrot.slane %v3586, 1
        %v3589 = vsel %vm360, %v3584, %v3588
        %v3598 = vunpack.c.l.b16 %v3315
        %v3599 = vunpack.c.l.b16 %v3316
        %v3600 = vunpack.c.l.b16 %v3317
        %v3601 = vunpack.c.l.b16 %v3318
        %v3602 = vunpack.c.l.b16 %v3319
        %v3603 = vunpack.c.l.b16 %v3320
        %v3604 = vunpack.c.l.b16 %v3321
        %v3605 = vunpack.c.l.b16 %v3322
        %v3606 = vpack.c.b16 %v3599, %v3598
        %v3607 = vpack.c.b16 %v3601, %v3600
        %v3608 = vpack.c.b16 %v3603, %v3602
        %v3609 = vpack.c.b16 %v3605, %v3604
        %v3615 = vsel %vm549, %v3437, 0
        %v3618 = vsel %vm549, %v3445, 0
        %v3621 = vsel %vm549, %v3453, 0
        %v3624 = vsel %vm549, %v3461, 0
        %v3627 = vsel %vm549, %v3469, 0
        %v3630 = vsel %vm549, %v3477, 0
        %v3633 = vsel %vm549, %v3485, 0
        %v3636 = vsel %vm549, %v3493, 0
        %v3639 = vsel %vm549, %v3501, 0
        %v3642 = vsel %vm549, %v3509, 0
        %v3645 = vsel %vm549, %v3517, 0
        %v3648 = vsel %vm549, %v3525, 0
        %v3651 = vsel %vm549, %v3533, 0
        %v3654 = vsel %vm549, %v3541, 0
        %v3657 = vsel %vm549, %v3549, 0
        %v3660 = vsel %vm549, %v3557, 0
        %v3663 = vsel %vm549, %v3565, 0
        %v3666 = vsel %vm549, %v3573, 0
        %v3669 = vsel %vm549, %v3581, 0
        %v3672 = vsel %vm549, %v3589, 0
        %3674 = vmatprep.subr.bf16.mxu0 0
        %3675 = vmatpush1.bf16.msra.mxu0 %v3606
        %3676 = vmatprep.subr.bf16.mxu0 0
        %3677 = vmatpush1.bf16.msra.mxu0 %v3607
        %3678 = vmatprep.subr.bf16.mxu0 0
        %3679 = vmatpush1.bf16.msra.mxu0 %v3608
        %3680 = vmatprep.subr.bf16.mxu0 0
        %3681 = vmatpush1.bf16.msra.mxu0 %v3609
        %3682 = vmatprep.subr.bf16.mxu0 0
        %3683 = vmatpush1.bf16.msra.mxu0 0
        %3684 = vmatprep.subr.bf16.mxu0 0
        %3685 = vmatpush1.bf16.msra.mxu0 0
        %3686 = vmatprep.subr.bf16.mxu0 0
        %3687 = vmatpush1.bf16.msra.mxu0 0
        %3688 = vmatprep.subr.bf16.mxu0 0
        %3689 = vmatpush1.bf16.msra.mxu0 0
        %3690 = vmatprep.subr.bf16.mxu0 0
        %3691 = vmatpush1.bf16.msra.mxu0 0
        %3692 = vmatprep.subr.bf16.mxu0 0
        %3693 = vmatpush1.bf16.msra.mxu0 0
        %3694 = vmatprep.subr.bf16.mxu0 0
        %3695 = vmatpush1.bf16.msra.mxu0 0
        %3696 = vmatprep.subr.bf16.mxu0 0
        %3697 = vmatpush1.bf16.msra.mxu0 0
        %3698 = vmatprep.subr.bf16.mxu0 0
        %3699 = vmatpush1.bf16.msra.mxu0 0
        %3700 = vmatprep.subr.bf16.mxu0 0
        %3701 = vmatpush1.bf16.msra.mxu0 0
        %3702 = vmatprep.subr.bf16.mxu0 0
        %3703 = vmatpush1.bf16.msra.mxu0 0
        %3704 = vmatprep.subr.bf16.mxu0 0
        %3705 = vmatpush1.bf16.msra.mxu0 0
        %3706 = vmatprep.mubr.bf16.mxu0 0
        %3707 = vmatmul.mubr.bf16.gmra.mrb[0].mxu0 %v3615
        %v3708 = vpop.f32.mrb[0].mxu0
        %v3709 = vadd.f32 0.0, %v3708
        %v3710 = vpop.f32.mrb[0].mxu0
        %v3711 = vpop.f32.mrb[0].mxu0
        %v3712 = vadd.f32 0.0, %v3711
        %v3713 = vpop.f32.mrb[0].mxu0
        %3714 = vmatprep.mubr.bf16.mxu0 0
        %3715 = vmatmul.mubr.bf16.gmra.mrb[0].mxu0 %v3618
        %v3716 = vpop.f32.mrb[0].mxu0
        %v3717 = vadd.f32 0.0, %v3716
        %v3718 = vpop.f32.mrb[0].mxu0
        %v3719 = vpop.f32.mrb[0].mxu0
        %v3720 = vadd.f32 0.0, %v3719
        %v3721 = vpop.f32.mrb[0].mxu0
        %3722 = vmatprep.mubr.bf16.mxu0 0
        %3723 = vmatmul.mubr.bf16.gmra.mrb[0].mxu0 %v3621
        %v3724 = vpop.f32.mrb[0].mxu0
        %v3725 = vpop.f32.mrb[0].mxu0
        %v3726 = vpop.f32.mrb[0].mxu0
        %v3727 = vadd.f32 0.0, %v3726
        %v3728 = vpop.f32.mrb[0].mxu0
        %3729 = vmatprep.mubr.bf16.mxu0 0
        %3730 = vmatmul.mubr.bf16.gmra.mrb[0].mxu0 %v3624
        %v3731 = vpop.f32.mrb[0].mxu0
        %v3732 = vadd.f32 0.0, %v3731
        %v3733 = vpop.f32.mrb[0].mxu0
        %v3734 = vpop.f32.mrb[0].mxu0
        %v3735 = vadd.f32 0.0, %v3734
        %v3736 = vpop.f32.mrb[0].mxu0
        %3737 = vmatprep.mubr.bf16.mxu0 0
        %3738 = vmatmul.mubr.bf16.gmra.mrb[0].mxu0 %v3627
        %v3739 = vpop.f32.mrb[0].mxu0
        %v3740 = vadd.f32 0.0, %v3739
        %v3741 = vpop.f32.mrb[0].mxu0
        %v3742 = vpop.f32.mrb[0].mxu0
        %v3743 = vpop.f32.mrb[0].mxu0
        %3744 = vmatprep.mubr.bf16.mxu0 0
        %3745 = vmatmul.mubr.bf16.gmra.mrb[0].mxu0 %v3630
        %v3746 = vpop.f32.mrb[0].mxu0
        %v3747 = vadd.f32 0.0, %v3746
        %v3748 = vpop.f32.mrb[0].mxu0
        %v3749 = vpop.f32.mrb[0].mxu0
        %v3750 = vadd.f32 0.0, %v3749
        %v3751 = vpop.f32.mrb[0].mxu0
        %3752 = vmatprep.mubr.bf16.mxu0 0
        %3753 = vmatmul.mubr.bf16.gmra.mrb[0].mxu0 %v3633
        %v3754 = vpop.f32.mrb[0].mxu0
        %v3755 = vadd.f32 0.0, %v3754
        %v3756 = vpop.f32.mrb[0].mxu0
        %v3757 = vpop.f32.mrb[0].mxu0
        %v3758 = vadd.f32 0.0, %v3757
        %v3759 = vpop.f32.mrb[0].mxu0
        %3760 = vmatprep.mubr.bf16.mxu0 0
        %3761 = vmatmul.mubr.bf16.gmra.mrb[0].mxu0 %v3636
        %v3762 = vpop.f32.mrb[0].mxu0
        %v3763 = vpop.f32.mrb[0].mxu0
        %v3764 = vpop.f32.mrb[0].mxu0
        %v3765 = vadd.f32 0.0, %v3764
        %v3766 = vpop.f32.mrb[0].mxu0
        %3767 = vmatprep.mubr.bf16.mxu0 0
        %3768 = vmatmul.mubr.bf16.gmra.mrb[0].mxu0 %v3639
        %v3769 = vpop.f32.mrb[0].mxu0
        %v3770 = vadd.f32 0.0, %v3769
        %v3771 = vpop.f32.mrb[0].mxu0
        %v3772 = vpop.f32.mrb[0].mxu0
        %v3773 = vadd.f32 0.0, %v3772
        %v3774 = vpop.f32.mrb[0].mxu0
        %3775 = vmatprep.mubr.bf16.mxu0 0
        %3776 = vmatmul.mubr.bf16.gmra.mrb[0].mxu0 %v3642
        %v3777 = vpop.f32.mrb[0].mxu0
        %v3778 = vadd.f32 0.0, %v3777
        %v3779 = vpop.f32.mrb[0].mxu0
        %v3780 = vpop.f32.mrb[0].mxu0
        %v3781 = vpop.f32.mrb[0].mxu0
        %3782 = vmatprep.mubr.bf16.mxu0 0
        %3783 = vmatmul.mubr.bf16.gmra.mrb[0].mxu0 %v3645
        %v3784 = vpop.f32.mrb[0].mxu0
        %v3785 = vadd.f32 0.0, %v3784
        %v3786 = vpop.f32.mrb[0].mxu0
        %v3787 = vpop.f32.mrb[0].mxu0
        %v3788 = vadd.f32 0.0, %v3787
        %v3789 = vpop.f32.mrb[0].mxu0
        %3790 = vmatprep.mubr.bf16.mxu0 0
        %3791 = vmatmul.mubr.bf16.gmra.mrb[0].mxu0 %v3648
        %v3792 = vpop.f32.mrb[0].mxu0
        %v3793 = vadd.f32 0.0, %v3792
        %v3794 = vpop.f32.mrb[0].mxu0
        %v3795 = vpop.f32.mrb[0].mxu0
        %v3796 = vadd.f32 0.0, %v3795
        %v3797 = vpop.f32.mrb[0].mxu0
        %3798 = vmatprep.mubr.bf16.mxu0 0
        %3799 = vmatmul.mubr.bf16.gmra.mrb[0].mxu0 %v3651
        %v3800 = vpop.f32.mrb[0].mxu0
        %v3801 = vpop.f32.mrb[0].mxu0
        %v3802 = vpop.f32.mrb[0].mxu0
        %v3803 = vadd.f32 0.0, %v3802
        %v3804 = vpop.f32.mrb[0].mxu0
        %3805 = vmatprep.mubr.bf16.mxu0 0
        %3806 = vmatmul.mubr.bf16.gmra.mrb[0].mxu0 %v3654
        %v3807 = vpop.f32.mrb[0].mxu0
        %v3808 = vadd.f32 0.0, %v3807
        %v3809 = vpop.f32.mrb[0].mxu0
        %v3810 = vpop.f32.mrb[0].mxu0
        %v3811 = vadd.f32 0.0, %v3810
        %v3812 = vpop.f32.mrb[0].mxu0
        %3813 = vmatprep.mubr.bf16.mxu0 0
        %3814 = vmatmul.mubr.bf16.gmra.mrb[0].mxu0 %v3657
        %v3815 = vpop.f32.mrb[0].mxu0
        %v3816 = vadd.f32 0.0, %v3815
        %v3817 = vpop.f32.mrb[0].mxu0
        %v3818 = vpop.f32.mrb[0].mxu0
        %v3819 = vpop.f32.mrb[0].mxu0
        %3820 = vmatprep.mubr.bf16.mxu0 0
        %3821 = vmatmul.mubr.bf16.gmra.mrb[0].mxu0 %v3660
        %v3822 = vpop.f32.mrb[0].mxu0
        %v3823 = vadd.f32 0.0, %v3822
        %v3824 = vpop.f32.mrb[0].mxu0
        %v3825 = vpop.f32.mrb[0].mxu0
        %v3826 = vadd.f32 0.0, %v3825
        %v3827 = vpop.f32.mrb[0].mxu0
        %3828 = vmatprep.mubr.bf16.mxu0 0
        %3829 = vmatmul.mubr.bf16.gmra.mrb[0].mxu0 %v3663
        %v3830 = vpop.f32.mrb[0].mxu0
        %v3831 = vadd.f32 0.0, %v3830
        %v3832 = vpop.f32.mrb[0].mxu0
        %v3833 = vpop.f32.mrb[0].mxu0
        %v3834 = vadd.f32 0.0, %v3833
        %v3835 = vpop.f32.mrb[0].mxu0
        %3836 = vmatprep.mubr.bf16.mxu0 0
        %3837 = vmatmul.mubr.bf16.gmra.mrb[0].mxu0 %v3666
        %v3838 = vpop.f32.mrb[0].mxu0
        %v3839 = vpop.f32.mrb[0].mxu0
        %v3840 = vpop.f32.mrb[0].mxu0
        %v3841 = vadd.f32 0.0, %v3840
        %v3842 = vpop.f32.mrb[0].mxu0
        %3843 = vmatprep.mubr.bf16.mxu0 0
        %3844 = vmatmul.mubr.bf16.gmra.mrb[0].mxu0 %v3669
        %v3845 = vpop.f32.mrb[0].mxu0
        %v3846 = vadd.f32 0.0, %v3845
        %v3847 = vpop.f32.mrb[0].mxu0
        %v3848 = vpop.f32.mrb[0].mxu0
        %v3849 = vadd.f32 0.0, %v3848
        %v3850 = vpop.f32.mrb[0].mxu0
        %3851 = vmatprep.mubr.bf16.mxu0 0
        %3852 = vmatmul.mubr.bf16.gmra.mrb[0].mxu0 %v3672
        %v3853 = vpop.f32.mrb[0].mxu0
        %v3854 = vadd.f32 0.0, %v3853
        %v3855 = vpop.f32.mrb[0].mxu0
        %v3856 = vpop.f32.mrb[0].mxu0
        %v3857 = vpop.f32.mrb[0].mxu0
        %3858 = vdwg.mxu0
        %v3859 = vadd.f32 %v3241, %v3709
        %v3860 = vadd.f32 %v3242, %v3712
        %v3861 = vadd.f32 %v3243, %v3717
        %v3862 = vadd.f32 %v3244, %v3720
        %v3863 = vadd.f32 %v3245, %v3727
        %v3864 = vadd.f32 %v3246, %v3732
        %v3865 = vadd.f32 %v3247, %v3735
        %v3866 = vadd.f32 %v3248, %v3740
        %v3867 = vadd.f32 %v3249, %v3747
        %v3868 = vadd.f32 %v3250, %v3750
        %v3869 = vadd.f32 %v3251, %v3755
        %v3870 = vadd.f32 %v3252, %v3758
        %v3871 = vadd.f32 %v3253, %v3765
        %v3872 = vadd.f32 %v3254, %v3770
        %v3873 = vadd.f32 %v3255, %v3773
        %v3874 = vadd.f32 %v3256, %v3778
        %v3875 = vadd.f32 %v3257, %v3785
        %v3876 = vadd.f32 %v3258, %v3788
        %v3877 = vadd.f32 %v3259, %v3793
        %v3878 = vadd.f32 %v3260, %v3796
        %v3879 = vadd.f32 %v3261, %v3803
        %v3880 = vadd.f32 %v3262, %v3808
        %v3881 = vadd.f32 %v3263, %v3811
        %v3882 = vadd.f32 %v3264, %v3816
        %v3883 = vadd.f32 %v3265, %v3823
        %v3884 = vadd.f32 %v3266, %v3826
        %v3885 = vadd.f32 %v3267, %v3831
        %v3886 = vadd.f32 %v3268, %v3834
        %v3887 = vadd.f32 %v3269, %v3841
        %v3888 = vadd.f32 %v3270, %v3846
        %v3889 = vadd.f32 %v3271, %v3849
        %v3890 = vadd.f32 %v3272, %v3854
        %v3891 = vld [vmem:[%s196 + $0x28] sm:$0xe]
        %s3892 = scalar_lea.vmem %s1, 256
        %v3893 = vld [vmem:[%s3892] sm:$0xf]
        %v3894 = vld [vmem:[%s3892 + $0x4] sm:$0xf]
        %v3895 = vld [vmem:[%s3892 + $0x8] sm:$0xf]
        %v3896 = vld [vmem:[%s3892 + $0xc] sm:$0xf]
        %v3897 = vld [vmem:[%s3892 + $0x10] sm:$0xf]
        %v3898 = vld [vmem:[%s3892 + $0x14] sm:$0xf]
        %v3899 = vld [vmem:[%s3892 + $0x18] sm:$0xf]
        %v3900 = vld [vmem:[%s3892 + $0x1c] sm:$0xf]
        %v3902 = vunpack.c.l.b16 %v3891
        %v3903 = vpack.c.b16 %v3365, %v3902
        %v3904 = vrot.slane %v3903, 1
        %v3905 = vrot.slane %v3406, 1
        %v3906 = vsel %vm1057, %v3904, %v3905
        %v3907 = vrot.slane %v3407, 1
        %v3908 = vsel %vm1057, %v3905, %v3907
        %v3909 = vrot.slane %v3408, 1
        %v3910 = vsel %vm1057, %v3907, %v3909
        %v3911 = vrot.slane %v3409, 1
        %v3912 = vsel %vm1057, %v3909, %v3911
        %v3913 = vrot.slane %v3410, 1
        %v3914 = vsel %vm1057, %v3911, %v3913
        %v3915 = vrot.slane %v3411, 1
        %v3916 = vsel %vm1057, %v3913, %v3915
        %v3917 = vrot.slane %v3412, 1
        %v3918 = vsel %vm1057, %v3915, %v3917
        %v3919 = vrot.slane %v3413, 1
        %v3920 = vsel %vm1057, %v3917, %v3919
        %v3921 = vrot.slane %v3414, 1
        %v3922 = vsel %vm1057, %v3919, %v3921
        %v3923 = vrot.slane %v3415, 1
        %v3924 = vsel %vm1057, %v3921, %v3923
        %v3925 = vrot.slane %v3416, 1
        %v3926 = vsel %vm1057, %v3923, %v3925
        %v3927 = vrot.slane %v3417, 1
        %v3928 = vsel %vm1057, %v3925, %v3927
        %v3929 = vrot.slane %v3418, 1
        %v3930 = vsel %vm1057, %v3927, %v3929
        %v3931 = vrot.slane %v3419, 1
        %v3932 = vsel %vm1057, %v3929, %v3931
        %v3933 = vrot.slane %v3420, 1
        %v3934 = vsel %vm1057, %v3931, %v3933
        %v3935 = vrot.slane %v3421, 1
        %v3936 = vsel %vm1057, %v3933, %v3935
        %v3937 = vrot.slane %v3422, 1
        %v3938 = vsel %vm1057, %v3935, %v3937
        %v3939 = vrot.slane %v3423, 1
        %v3940 = vsel %vm1057, %v3937, %v3939
        %v3941 = vrot.slane %v3424, 1
        %v3942 = vsel %vm1057, %v3939, %v3941
        %v3943 = vrot.slane %v3425, 1
        %v3944 = vsel %vm1057, %v3941, %v3943
        %v3953 = vunpack.c.l.b16 %v3893
        %v3954 = vunpack.c.l.b16 %v3894
        %v3955 = vunpack.c.l.b16 %v3895
        %v3956 = vunpack.c.l.b16 %v3896
        %v3957 = vunpack.c.l.b16 %v3897
        %v3958 = vunpack.c.l.b16 %v3898
        %v3959 = vunpack.c.l.b16 %v3899
        %v3960 = vunpack.c.l.b16 %v3900
        %v3961 = vpack.c.b16 %v3954, %v3953
        %v3962 = vpack.c.b16 %v3956, %v3955
        %v3963 = vpack.c.b16 %v3958, %v3957
        %v3964 = vpack.c.b16 %v3960, %v3959
        %v3970 = vsel %vm549, %v3906, 0
        %v3973 = vsel %vm549, %v3908, 0
        %v3976 = vsel %vm549, %v3910, 0
        %v3979 = vsel %vm549, %v3912, 0
        %v3982 = vsel %vm549, %v3914, 0
        %v3985 = vsel %vm549, %v3916, 0
        %v3988 = vsel %vm549, %v3918, 0
        %v3991 = vsel %vm549, %v3920, 0
        %v3994 = vsel %vm549, %v3922, 0
        %v3997 = vsel %vm549, %v3924, 0
        %v4000 = vsel %vm549, %v3926, 0
        %v4003 = vsel %vm549, %v3928, 0
        %v4006 = vsel %vm549, %v3930, 0
        %v4009 = vsel %vm549, %v3932, 0
        %v4012 = vsel %vm549, %v3934, 0
        %v4015 = vsel %vm549, %v3936, 0
        %v4018 = vsel %vm549, %v3938, 0
        %v4021 = vsel %vm549, %v3940, 0
        %v4024 = vsel %vm549, %v3942, 0
        %v4027 = vsel %vm549, %v3944, 0
        %4029 = vmatprep.subr.bf16.mxu0 0
        %4030 = vmatpush1.bf16.msra.mxu0 %v3961
        %4031 = vmatprep.subr.bf16.mxu0 0
        %4032 = vmatpush1.bf16.msra.mxu0 %v3962
        %4033 = vmatprep.subr.bf16.mxu0 0
        %4034 = vmatpush1.bf16.msra.mxu0 %v3963
        %4035 = vmatprep.subr.bf16.mxu0 0
        %4036 = vmatpush1.bf16.msra.mxu0 %v3964
        %4037 = vmatprep.subr.bf16.mxu0 0
        %4038 = vmatpush1.bf16.msra.mxu0 0
        %4039 = vmatprep.subr.bf16.mxu0 0
        %4040 = vmatpush1.bf16.msra.mxu0 0
        %4041 = vmatprep.subr.bf16.mxu0 0
        %4042 = vmatpush1.bf16.msra.mxu0 0
        %4043 = vmatprep.subr.bf16.mxu0 0
        %4044 = vmatpush1.bf16.msra.mxu0 0
        %4045 = vmatprep.subr.bf16.mxu0 0
        %4046 = vmatpush1.bf16.msra.mxu0 0
        %4047 = vmatprep.subr.bf16.mxu0 0
        %4048 = vmatpush1.bf16.msra.mxu0 0
        %4049 = vmatprep.subr.bf16.mxu0 0
        %4050 = vmatpush1.bf16.msra.mxu0 0
        %4051 = vmatprep.subr.bf16.mxu0 0
        %4052 = vmatpush1.bf16.msra.mxu0 0
        %4053 = vmatprep.subr.bf16.mxu0 0
        %4054 = vmatpush1.bf16.msra.mxu0 0
        %4055 = vmatprep.subr.bf16.mxu0 0
        %4056 = vmatpush1.bf16.msra.mxu0 0
        %4057 = vmatprep.subr.bf16.mxu0 0
        %4058 = vmatpush1.bf16.msra.mxu0 0
        %4059 = vmatprep.subr.bf16.mxu0 0
        %4060 = vmatpush1.bf16.msra.mxu0 0
        %4061 = vmatprep.mubr.bf16.mxu0 0
        %4062 = vmatmul.mubr.bf16.gmra.mrb[0].mxu0 %v3970
        %v4063 = vpop.f32.mrb[0].mxu0
        %v4064 = vadd.f32 0.0, %v4063
        %v4065 = vpop.f32.mrb[0].mxu0
        %v4066 = vpop.f32.mrb[0].mxu0
        %v4067 = vadd.f32 0.0, %v4066
        %v4068 = vpop.f32.mrb[0].mxu0
        %4069 = vmatprep.mubr.bf16.mxu0 0
        %4070 = vmatmul.mubr.bf16.gmra.mrb[0].mxu0 %v3973
        %v4071 = vpop.f32.mrb[0].mxu0
        %v4072 = vadd.f32 0.0, %v4071
        %v4073 = vpop.f32.mrb[0].mxu0
        %v4074 = vpop.f32.mrb[0].mxu0
        %v4075 = vadd.f32 0.0, %v4074
        %v4076 = vpop.f32.mrb[0].mxu0
        %4077 = vmatprep.mubr.bf16.mxu0 0
        %4078 = vmatmul.mubr.bf16.gmra.mrb[0].mxu0 %v3976
        %v4079 = vpop.f32.mrb[0].mxu0
        %v4080 = vpop.f32.mrb[0].mxu0
        %v4081 = vpop.f32.mrb[0].mxu0
        %v4082 = vadd.f32 0.0, %v4081
        %v4083 = vpop.f32.mrb[0].mxu0
        %4084 = vmatprep.mubr.bf16.mxu0 0
        %4085 = vmatmul.mubr.bf16.gmra.mrb[0].mxu0 %v3979
        %v4086 = vpop.f32.mrb[0].mxu0
        %v4087 = vadd.f32 0.0, %v4086
        %v4088 = vpop.f32.mrb[0].mxu0
        %v4089 = vpop.f32.mrb[0].mxu0
        %v4090 = vadd.f32 0.0, %v4089
        %v4091 = vpop.f32.mrb[0].mxu0
        %4092 = vmatprep.mubr.bf16.mxu0 0
        %4093 = vmatmul.mubr.bf16.gmra.mrb[0].mxu0 %v3982
        %v4094 = vpop.f32.mrb[0].mxu0
        %v4095 = vadd.f32 0.0, %v4094
        %v4096 = vpop.f32.mrb[0].mxu0
        %v4097 = vpop.f32.mrb[0].mxu0
        %v4098 = vpop.f32.mrb[0].mxu0
        %4099 = vmatprep.mubr.bf16.mxu0 0
        %4100 = vmatmul.mubr.bf16.gmra.mrb[0].mxu0 %v3985
        %v4101 = vpop.f32.mrb[0].mxu0
        %v4102 = vadd.f32 0.0, %v4101
        %v4103 = vpop.f32.mrb[0].mxu0
        %v4104 = vpop.f32.mrb[0].mxu0
        %v4105 = vadd.f32 0.0, %v4104
        %v4106 = vpop.f32.mrb[0].mxu0
        %4107 = vmatprep.mubr.bf16.mxu0 0
        %4108 = vmatmul.mubr.bf16.gmra.mrb[0].mxu0 %v3988
        %v4109 = vpop.f32.mrb[0].mxu0
        %v4110 = vadd.f32 0.0, %v4109
        %v4111 = vpop.f32.mrb[0].mxu0
        %v4112 = vpop.f32.mrb[0].mxu0
        %v4113 = vadd.f32 0.0, %v4112
        %v4114 = vpop.f32.mrb[0].mxu0
        %4115 = vmatprep.mubr.bf16.mxu0 0
        %4116 = vmatmul.mubr.bf16.gmra.mrb[0].mxu0 %v3991
        %v4117 = vpop.f32.mrb[0].mxu0
        %v4118 = vpop.f32.mrb[0].mxu0
        %v4119 = vpop.f32.mrb[0].mxu0
        %v4120 = vadd.f32 0.0, %v4119
        %v4121 = vpop.f32.mrb[0].mxu0
        %4122 = vmatprep.mubr.bf16.mxu0 0
        %4123 = vmatmul.mubr.bf16.gmra.mrb[0].mxu0 %v3994
        %v4124 = vpop.f32.mrb[0].mxu0
        %v4125 = vadd.f32 0.0, %v4124
        %v4126 = vpop.f32.mrb[0].mxu0
        %v4127 = vpop.f32.mrb[0].mxu0
        %v4128 = vadd.f32 0.0, %v4127
        %v4129 = vpop.f32.mrb[0].mxu0
        %4130 = vmatprep.mubr.bf16.mxu0 0
        %4131 = vmatmul.mubr.bf16.gmra.mrb[0].mxu0 %v3997
        %v4132 = vpop.f32.mrb[0].mxu0
        %v4133 = vadd.f32 0.0, %v4132
        %v4134 = vpop.f32.mrb[0].mxu0
        %v4135 = vpop.f32.mrb[0].mxu0
        %v4136 = vpop.f32.mrb[0].mxu0
        %4137 = vmatprep.mubr.bf16.mxu0 0
        %4138 = vmatmul.mubr.bf16.gmra.mrb[0].mxu0 %v4000
        %v4139 = vpop.f32.mrb[0].mxu0
        %v4140 = vadd.f32 0.0, %v4139
        %v4141 = vpop.f32.mrb[0].mxu0
        %v4142 = vpop.f32.mrb[0].mxu0
        %v4143 = vadd.f32 0.0, %v4142
        %v4144 = vpop.f32.mrb[0].mxu0
        %4145 = vmatprep.mubr.bf16.mxu0 0
        %4146 = vmatmul.mubr.bf16.gmra.mrb[0].mxu0 %v4003
        %v4147 = vpop.f32.mrb[0].mxu0
        %v4148 = vadd.f32 0.0, %v4147
        %v4149 = vpop.f32.mrb[0].mxu0
        %v4150 = vpop.f32.mrb[0].mxu0
        %v4151 = vadd.f32 0.0, %v4150
        %v4152 = vpop.f32.mrb[0].mxu0
        %4153 = vmatprep.mubr.bf16.mxu0 0
        %4154 = vmatmul.mubr.bf16.gmra.mrb[0].mxu0 %v4006
        %v4155 = vpop.f32.mrb[0].mxu0
        %v4156 = vpop.f32.mrb[0].mxu0
        %v4157 = vpop.f32.mrb[0].mxu0
        %v4158 = vadd.f32 0.0, %v4157
        %v4159 = vpop.f32.mrb[0].mxu0
        %4160 = vmatprep.mubr.bf16.mxu0 0
        %4161 = vmatmul.mubr.bf16.gmra.mrb[0].mxu0 %v4009
        %v4162 = vpop.f32.mrb[0].mxu0
        %v4163 = vadd.f32 0.0, %v4162
        %v4164 = vpop.f32.mrb[0].mxu0
        %v4165 = vpop.f32.mrb[0].mxu0
        %v4166 = vadd.f32 0.0, %v4165
        %v4167 = vpop.f32.mrb[0].mxu0
        %4168 = vmatprep.mubr.bf16.mxu0 0
        %4169 = vmatmul.mubr.bf16.gmra.mrb[0].mxu0 %v4012
        %v4170 = vpop.f32.mrb[0].mxu0
        %v4171 = vadd.f32 0.0, %v4170
        %v4172 = vpop.f32.mrb[0].mxu0
        %v4173 = vpop.f32.mrb[0].mxu0
        %v4174 = vpop.f32.mrb[0].mxu0
        %4175 = vmatprep.mubr.bf16.mxu0 0
        %4176 = vmatmul.mubr.bf16.gmra.mrb[0].mxu0 %v4015
        %v4177 = vpop.f32.mrb[0].mxu0
        %v4178 = vadd.f32 0.0, %v4177
        %v4179 = vpop.f32.mrb[0].mxu0
        %v4180 = vpop.f32.mrb[0].mxu0
        %v4181 = vadd.f32 0.0, %v4180
        %v4182 = vpop.f32.mrb[0].mxu0
        %4183 = vmatprep.mubr.bf16.mxu0 0
        %4184 = vmatmul.mubr.bf16.gmra.mrb[0].mxu0 %v4018
        %v4185 = vpop.f32.mrb[0].mxu0
        %v4186 = vadd.f32 0.0, %v4185
        %v4187 = vpop.f32.mrb[0].mxu0
        %v4188 = vpop.f32.mrb[0].mxu0
        %v4189 = vadd.f32 0.0, %v4188
        %v4190 = vpop.f32.mrb[0].mxu0
        %4191 = vmatprep.mubr.bf16.mxu0 0
        %4192 = vmatmul.mubr.bf16.gmra.mrb[0].mxu0 %v4021
        %v4193 = vpop.f32.mrb[0].mxu0
        %v4194 = vpop.f32.mrb[0].mxu0
        %v4195 = vpop.f32.mrb[0].mxu0
        %v4196 = vadd.f32 0.0, %v4195
        %v4197 = vpop.f32.mrb[0].mxu0
        %4198 = vmatprep.mubr.bf16.mxu0 0
        %4199 = vmatmul.mubr.bf16.gmra.mrb[0].mxu0 %v4024
        %v4200 = vpop.f32.mrb[0].mxu0
        %v4201 = vadd.f32 0.0, %v4200
        %v4202 = vpop.f32.mrb[0].mxu0
        %v4203 = vpop.f32.mrb[0].mxu0
        %v4204 = vadd.f32 0.0, %v4203
        %v4205 = vpop.f32.mrb[0].mxu0
        %4206 = vmatprep.mubr.bf16.mxu0 0
        %4207 = vmatmul.mubr.bf16.gmra.mrb[0].mxu0 %v4027
        %v4208 = vpop.f32.mrb[0].mxu0
        %v4209 = vadd.f32 0.0, %v4208
        %v4210 = vpop.f32.mrb[0].mxu0
        %v4211 = vpop.f32.mrb[0].mxu0
        %v4212 = vpop.f32.mrb[0].mxu0
        %4213 = vdwg.mxu0
        %v4214 = vadd.f32 %v3859, %v4064
        %v4215 = vadd.f32 %v3860, %v4067
        %v4216 = vadd.f32 %v3861, %v4072
        %v4217 = vadd.f32 %v3862, %v4075
        %v4218 = vadd.f32 %v3863, %v4082
        %v4219 = vadd.f32 %v3864, %v4087
        %v4220 = vadd.f32 %v3865, %v4090
        %v4221 = vadd.f32 %v3866, %v4095
        %v4222 = vadd.f32 %v3867, %v4102
        %v4223 = vadd.f32 %v3868, %v4105
        %v4224 = vadd.f32 %v3869, %v4110
        %v4225 = vadd.f32 %v3870, %v4113
        %v4226 = vadd.f32 %v3871, %v4120
        %v4227 = vadd.f32 %v3872, %v4125
        %v4228 = vadd.f32 %v3873, %v4128
        %v4229 = vadd.f32 %v3874, %v4133
        %v4230 = vadd.f32 %v3875, %v4140
        %v4231 = vadd.f32 %v3876, %v4143
        %v4232 = vadd.f32 %v3877, %v4148
        %v4233 = vadd.f32 %v3878, %v4151
        %v4234 = vadd.f32 %v3879, %v4158
        %v4235 = vadd.f32 %v3880, %v4163
        %v4236 = vadd.f32 %v3881, %v4166
        %v4237 = vadd.f32 %v3882, %v4171
        %v4238 = vadd.f32 %v3883, %v4178
        %v4239 = vadd.f32 %v3884, %v4181
        %v4240 = vadd.f32 %v3885, %v4186
        %v4241 = vadd.f32 %v3886, %v4189
        %v4242 = vadd.f32 %v3887, %v4196
        %v4243 = vadd.f32 %v3888, %v4201
        %v4244 = vadd.f32 %v3889, %v4204
        %v4245 = vadd.f32 %v3890, %v4209
        %v4246 = vld [vmem:[%s2] sm:$0x1]
        %v4248 = vlaneseq
        %v4249 = vshrl.u32 %v4248, 7
        %v4250 = vsub.s32 0, %v4249
        %v4251 = vrot.slane %v4246, %v4250
        %v4253 = vadd.f32 %v4214, %v4251
        %v4254 = vadd.f32 %v4215, %v4251
        %v4255 = vadd.f32 %v4216, %v4251
        %v4256 = vadd.f32 %v4217, %v4251
        %v4257 = vadd.f32 %v4218, %v4251
        %v4258 = vadd.f32 %v4219, %v4251
        %v4259 = vadd.f32 %v4220, %v4251
        %v4260 = vadd.f32 %v4221, %v4251
        %v4261 = vadd.f32 %v4222, %v4251
        %v4262 = vadd.f32 %v4223, %v4251
        %v4263 = vadd.f32 %v4224, %v4251
        %v4264 = vadd.f32 %v4225, %v4251
        %v4265 = vadd.f32 %v4226, %v4251
        %v4266 = vadd.f32 %v4227, %v4251
        %v4267 = vadd.f32 %v4228, %v4251
        %v4268 = vadd.f32 %v4229, %v4251
        %v4269 = vadd.f32 %v4230, %v4251
        %v4270 = vadd.f32 %v4231, %v4251
        %v4271 = vadd.f32 %v4232, %v4251
        %v4272 = vadd.f32 %v4233, %v4251
        %v4273 = vadd.f32 %v4234, %v4251
        %v4274 = vadd.f32 %v4235, %v4251
        %v4275 = vadd.f32 %v4236, %v4251
        %v4276 = vadd.f32 %v4237, %v4251
        %v4277 = vadd.f32 %v4238, %v4251
        %v4278 = vadd.f32 %v4239, %v4251
        %v4279 = vadd.f32 %v4240, %v4251
        %v4280 = vadd.f32 %v4241, %v4251
        %v4281 = vadd.f32 %v4242, %v4251
        %v4282 = vadd.f32 %v4243, %v4251
        %v4283 = vadd.f32 %v4244, %v4251
        %v4284 = vadd.f32 %v4245, %v4251
        %v4285 = vmax.f32 %v4253, 0.0
        %v4286 = vmax.f32 %v4254, 0.0
        %v4287 = vmax.f32 %v4255, 0.0
        %v4288 = vmax.f32 %v4256, 0.0
        %v4289 = vmax.f32 %v4257, 0.0
        %v4290 = vmax.f32 %v4258, 0.0
        %v4291 = vmax.f32 %v4259, 0.0
        %v4292 = vmax.f32 %v4260, 0.0
        %v4293 = vmax.f32 %v4261, 0.0
        %v4294 = vmax.f32 %v4262, 0.0
        %v4295 = vmax.f32 %v4263, 0.0
        %v4296 = vmax.f32 %v4264, 0.0
        %v4297 = vmax.f32 %v4265, 0.0
        %v4298 = vmax.f32 %v4266, 0.0
        %v4299 = vmax.f32 %v4267, 0.0
        %v4300 = vmax.f32 %v4268, 0.0
        %v4301 = vmax.f32 %v4269, 0.0
        %v4302 = vmax.f32 %v4270, 0.0
        %v4303 = vmax.f32 %v4271, 0.0
        %v4304 = vmax.f32 %v4272, 0.0
        %v4305 = vmax.f32 %v4273, 0.0
        %v4306 = vmax.f32 %v4274, 0.0
        %v4307 = vmax.f32 %v4275, 0.0
        %v4308 = vmax.f32 %v4276, 0.0
        %v4309 = vmax.f32 %v4277, 0.0
        %v4310 = vmax.f32 %v4278, 0.0
        %v4311 = vmax.f32 %v4279, 0.0
        %v4312 = vmax.f32 %v4280, 0.0
        %v4313 = vmax.f32 %v4281, 0.0
        %v4314 = vmax.f32 %v4282, 0.0
        %v4315 = vmax.f32 %v4283, 0.0
        %v4316 = vmax.f32 %v4284, 0.0
        %v4317 = vpack.c.bf16 %v4286, %v4285
        %v4318 = vpack.c.bf16 %v4288, %v4287
        %v4319 = vpack.c.bf16 %v4290, %v4289
        %v4320 = vpack.c.bf16 %v4292, %v4291
        %v4321 = vpack.c.bf16 %v4294, %v4293
        %v4322 = vpack.c.bf16 %v4296, %v4295
        %v4323 = vpack.c.bf16 %v4298, %v4297
        %v4324 = vpack.c.bf16 %v4300, %v4299
        %v4325 = vpack.c.bf16 %v4302, %v4301
        %v4326 = vpack.c.bf16 %v4304, %v4303
        %v4327 = vpack.c.bf16 %v4306, %v4305
        %v4328 = vpack.c.bf16 %v4308, %v4307
        %v4329 = vpack.c.bf16 %v4310, %v4309
        %v4330 = vpack.c.bf16 %v4312, %v4311
        %v4331 = vpack.c.bf16 %v4314, %v4313
        %v4332 = vpack.c.bf16 %v4316, %v4315
        %v4349 = vunpack.c.l.b16 %v4317
        %v4350 = vunpack.c.h.b16 %v4317
        %v4351 = vunpack.c.l.b16 %v4318
        %v4352 = vunpack.c.h.b16 %v4318
        %v4353 = vunpack.c.l.b16 %v4319
        %v4354 = vunpack.c.h.b16 %v4319
        %v4355 = vunpack.c.l.b16 %v4320
        %v4356 = vunpack.c.h.b16 %v4320
        %v4357 = vunpack.c.l.b16 %v4321
        %v4358 = vunpack.c.h.b16 %v4321
        %v4359 = vunpack.c.l.b16 %v4322
        %v4360 = vunpack.c.h.b16 %v4322
        %v4361 = vunpack.c.l.b16 %v4323
        %v4362 = vunpack.c.h.b16 %v4323
        %v4363 = vunpack.c.l.b16 %v4324
        %v4364 = vunpack.c.h.b16 %v4324
        %v4365 = vunpack.c.l.b16 %v4325
        %v4366 = vunpack.c.h.b16 %v4325
        %v4367 = vunpack.c.l.b16 %v4326
        %v4368 = vunpack.c.h.b16 %v4326
        %v4369 = vunpack.c.l.b16 %v4327
        %v4370 = vunpack.c.h.b16 %v4327
        %v4371 = vunpack.c.l.b16 %v4328
        %v4372 = vunpack.c.h.b16 %v4328
        %v4373 = vunpack.c.l.b16 %v4329
        %v4374 = vunpack.c.h.b16 %v4329
        %v4375 = vunpack.c.l.b16 %v4330
        %v4376 = vunpack.c.h.b16 %v4330
        %v4377 = vunpack.c.l.b16 %v4331
        %v4378 = vunpack.c.h.b16 %v4331
        %v4379 = vunpack.c.l.b16 %v4332
        %v4380 = vunpack.c.h.b16 %v4332
        %v4381 = vpack.c.b16 %v4349, %v4349
        %v4382 = vpack.c.b16 %v4350, %v4350
        %v4383 = vpack.c.b16 %v4351, %v4351
        %v4384 = vpack.c.b16 %v4352, %v4352
        %v4385 = vpack.c.b16 %v4353, %v4353
        %v4386 = vpack.c.b16 %v4354, %v4354
        %v4387 = vpack.c.b16 %v4355, %v4355
        %v4388 = vpack.c.b16 %v4356, %v4356
        %v4389 = vpack.c.b16 %v4357, %v4357
        %v4390 = vpack.c.b16 %v4358, %v4358
        %v4391 = vpack.c.b16 %v4359, %v4359
        %v4392 = vpack.c.b16 %v4360, %v4360
        %v4393 = vpack.c.b16 %v4361, %v4361
        %v4394 = vpack.c.b16 %v4362, %v4362
        %v4395 = vpack.c.b16 %v4363, %v4363
        %v4396 = vpack.c.b16 %v4364, %v4364
        %v4397 = vpack.c.b16 %v4365, %v4365
        %v4398 = vpack.c.b16 %v4366, %v4366
        %v4399 = vpack.c.b16 %v4367, %v4367
        %v4400 = vpack.c.b16 %v4368, %v4368
        %v4401 = vpack.c.b16 %v4369, %v4369
        %v4402 = vpack.c.b16 %v4370, %v4370
        %v4403 = vpack.c.b16 %v4371, %v4371
        %v4404 = vpack.c.b16 %v4372, %v4372
        %v4405 = vpack.c.b16 %v4373, %v4373
        %v4406 = vpack.c.b16 %v4374, %v4374
        %v4407 = vpack.c.b16 %v4375, %v4375
        %v4408 = vpack.c.b16 %v4376, %v4376
        %v4409 = vpack.c.b16 %v4377, %v4377
        %v4410 = vpack.c.b16 %v4378, %v4378
        %v4411 = vpack.c.b16 %v4379, %v4379
        %v4412 = vpack.c.b16 %v4380, %v4380
        %vm4445 = vcmask 519168
        %4446 = vst.msk [vmem:[%s187] sm:$0xf] %vm4445, %v4381
        %4447 = vst.msk [vmem:[%s187 + $0x4] sm:$0xf] %vm4445, %v4382
        %4448 = vst.msk [vmem:[%s187 + $0x8] sm:$0xf] %vm4445, %v4383
        %4449 = vst.msk [vmem:[%s187 + $0xc] sm:$0xf] %vm4445, %v4384
        %4450 = vst.msk [vmem:[%s187 + $0x10] sm:$0xf] %vm4445, %v4385
        %4451 = vst.msk [vmem:[%s187 + $0x14] sm:$0xf] %vm4445, %v4386
        %4452 = vst.msk [vmem:[%s187 + $0x18] sm:$0xf] %vm4445, %v4387
        %4453 = vst.msk [vmem:[%s187 + $0x1c] sm:$0xf] %vm4445, %v4388
        %4454 = vst.msk [vmem:[%s187 + $0x20] sm:$0xf] %vm4445, %v4389
        %4455 = vst.msk [vmem:[%s187 + $0x24] sm:$0xf] %vm4445, %v4390
        %4456 = vst.msk [vmem:[%s187 + $0x28] sm:$0xf] %vm4445, %v4391
        %4457 = vst.msk [vmem:[%s187 + $0x2c] sm:$0xf] %vm4445, %v4392
        %4458 = vst.msk [vmem:[%s187 + $0x30] sm:$0xf] %vm4445, %v4393
        %4459 = vst.msk [vmem:[%s187 + $0x34] sm:$0xf] %vm4445, %v4394
        %4460 = vst.msk [vmem:[%s187 + $0x38] sm:$0xf] %vm4445, %v4395
        %4461 = vst.msk [vmem:[%s187 + $0x3c] sm:$0xf] %vm4445, %v4396
        %4462 = vst.msk [vmem:[%s187 + $0x40] sm:$0xf] %vm4445, %v4397
        %4463 = vst.msk [vmem:[%s187 + $0x44] sm:$0xf] %vm4445, %v4398
        %4464 = vst.msk [vmem:[%s187 + $0x48] sm:$0xf] %vm4445, %v4399
        %4465 = vst.msk [vmem:[%s187 + $0x4c] sm:$0xf] %vm4445, %v4400
        %4466 = vst.msk [vmem:[%s187 + $0x50] sm:$0xf] %vm4445, %v4401
        %4467 = vst.msk [vmem:[%s187 + $0x54] sm:$0xf] %vm4445, %v4402
        %4468 = vst.msk [vmem:[%s187 + $0x58] sm:$0xf] %vm4445, %v4403
        %4469 = vst.msk [vmem:[%s187 + $0x5c] sm:$0xf] %vm4445, %v4404
        %4470 = vst.msk [vmem:[%s187 + $0x60] sm:$0xf] %vm4445, %v4405
        %4471 = vst.msk [vmem:[%s187 + $0x64] sm:$0xf] %vm4445, %v4406
        %4472 = vst.msk [vmem:[%s187 + $0x68] sm:$0xf] %vm4445, %v4407
        %4473 = vst.msk [vmem:[%s187 + $0x6c] sm:$0xf] %vm4445, %v4408
        %4474 = vst.msk [vmem:[%s187 + $0x70] sm:$0xf] %vm4445, %v4409
        %4475 = vst.msk [vmem:[%s187 + $0x74] sm:$0xf] %vm4445, %v4410
        %4476 = vst.msk [vmem:[%s187 + $0x78] sm:$0xf] %vm4445, %v4411
        %4477 = vst.msk [vmem:[%s187 + $0x7c] sm:$0xf] %vm4445, %v4412
        %s4478 = sand.u32 %s109, 1
        %s4479 = scalar_lea.sflag [#allocation3], %s4478
        %s4480 = sand.u32 %s109, 1
        %s4481 = smul.addr %s4480, 128
        %s4482 = scalar_lea.vmem [#allocation2], %s4481
        // Predicated region
        $region33: #{tpu_custom_call.1} parent=31 // pred_check
          %p4483 = pneg %p119
        $region34: #{tpu_custom_call.1} parent=31 // pred_check_branch
          %4485 = sbr.rel (%p4483) target = $region36
        $region35: #{tpu_custom_call.1} parent=31 // pred_region
          %s4486 = smul.u32 8, %s22
          %s4488 = ssub.s32 2048, 2048
          %4489 = vsyncadd %s4479, %s4488
          %s4490 = smul.addr %s4486, 4
          %s4491 = smul.addr %s21, 128
          %s4492 = sadd.s32 %s4490, %s4491
          %s4493 = smul.addr %s4492, 64
          %s4494 = scalar_lea.hbm %s3, %s4493
          %s4495 = sshll.u32 %s4482, 4
          %s4496 = int_to_ptr.vmem [resolvable:$true] %s4495
          %4501 = dma.vmem_to_hbm [thread:$0]  %s4496, 2048, %s4494, %s4479, 64, 64, 4
        $region36: #{tpu_custom_call.1} parent=31 // pred_fallthru
          _
      $region32: #{tpu_custom_call.1} parent=5 // pred_fallthru
        _
      %p4502 = scmp.le.s32.totalorder 2, %s12
      // Predicated region
      $region37: #{tpu_custom_call.1} parent=5 // pred_check
        %p4503 = pneg %p4502
      $region38: #{tpu_custom_call.1} parent=5 // pred_check_branch
        %4505 = sbr.rel (%p4503) target = $region40
      $region39: #{tpu_custom_call.1} parent=5 // pred_region
        %s4506 = ssub.s32 %s12, 2
        // Predicated region
        $region41: #{tpu_custom_call.1} parent=39 // pred_check
          %p4507 = pneg %p125
        $region42: #{tpu_custom_call.1} parent=39 // pred_check_branch
          %4509 = sbr.rel (%p4507) target = $region44
        $region43: #{tpu_custom_call.1} parent=39 // pred_region
          %s4510 = sand.u32 %s110, 1
          %s4511 = scalar_lea.sflag [#allocation3], %s4510
          %s4512 = sand.u32 %s110, 1
          %s4513 = smul.addr %s4512, 128
          %s4514 = scalar_lea.vmem [#allocation2], %s4513
          %4515 = dma.done %s4511, 2048
        $region44: #{tpu_custom_call.1} parent=39 // pred_fallthru
          _
      $region40: #{tpu_custom_call.1} parent=5 // pred_fallthru
        _
    $region6: #{tpu_custom_call.1} parent=1 // loop_footer
      %s16 = sadd.s32 1, %s12
    $region7: #{tpu_custom_call.1} parent=1 // loop_footer_branch
      %11 = sbr.rel target = $region3
    $region8: #{tpu_custom_call.1} parent=1 // loop_exit
      _
    %4516 = vsyncpa [#allocation3], 1
    %s4517 = scalar_lea.sflag [#allocation3], 1
    %4518 = vsyncpa %s4517, 1

</llo_original>
